<compile_context>
chip_gen: v6e
topology: v6e:2x2x1
jax: 0.10.0
libtpu: 0.0.40
codegen_flags: <defaults>
</compile_context>

<pallas_src>
import functools

import jax
import jax.numpy as jnp
import numpy as np
from jax import lax
from jax.experimental import pallas as pl
from jax.experimental.pallas import tpu as pltpu

BN_EPS = 1e-5


# ---------------------------------------------------------------------------
# The fused bottleneck kernel
# ---------------------------------------------------------------------------
def _bottleneck_kernel(*refs, n, h, w, s, p, downsampling):
    f32 = jnp.float32
    bf16 = jnp.bfloat16
    if downsampling:
        x_ref, w1_ref, w2_ref, w3_ref, wd_ref, bn_ref, o_ref, y1buf_ref = refs
    else:
        x_ref, w1_ref, w2_ref, w3_ref, bn_ref, o_ref, y1buf_ref = refs
        wd_ref = None
    ho, wo = h // s, w // s
    m1 = n * ho * wo                       # rows per parity class / output rows
    hp, wp = y1buf_ref.shape[1], y1buf_ref.shape[2]

    def bn_fold(y, row, relu):
        # Train-mode BatchNorm folded into one scale/shift FMA on the (M, C)
        # tile.  One-pass statistics: sum and sum-of-squares share one read of
        # y; rsqrt rides the EUP slot.  gamma/beta from the packed BN block.
        c = y.shape[1]
        gamma = bn_ref[row:row + 1, 0:c]
        beta = bn_ref[row + 1:row + 2, 0:c]
        mean = jnp.mean(y, axis=0, keepdims=True)
        meansq = jnp.mean(y * y, axis=0, keepdims=True)
        var = jnp.maximum(meansq - mean * mean, 0.0)   # biased; cancel guard
        scale = gamma * lax.rsqrt(var + BN_EPS)        # EUP
        shift = beta - mean * scale
        y = y * scale + shift
        return jnp.maximum(y, 0.0) if relu else y

    # ---- conv1: 1x1 -> BN -> ReLU over all N*H*W pixels (parity-ordered) ----
    x_bf = x_ref[...]                                         # (s*s*m1, cin) bf16
    y1 = jnp.dot(x_bf, w1_ref[...], preferred_element_type=f32)   # (s*s*m1, p)
    y1 = bn_fold(y1, 0, relu=True)

    # ---- scatter y1 into s*s zero-padded parity buffers (VMEM scratch) ------
    # Buffer class (A, B) holds padded-coordinate rows r ≡ A (mod s) and cols
    # c ≡ B (mod s) of zero-padded y1; every conv2 tap then reads a contiguous
    # window of exactly one buffer, for stride 1 and 2 alike.  Only the halo
    # strips that the data writes never touch are zero-filled.
    zero_row = jnp.zeros((n, 1, wp, p), f32)
    zero_col = jnp.zeros((n, hp, 1, p), f32)
    for a in range(s):
        for b in range(s):
            bc = a * s + b                                    # buffer class
            r0 = 1 if a == 0 else 0
            c0 = 1 if b == 0 else 0
            halo_rows = [0, hp - 1] if s == 1 else ([0] if a == 0 else [hp - 1])
            halo_cols = [0, wp - 1] if s == 1 else ([0] if b == 0 else [wp - 1])
            for r in halo_rows:
                y1buf_ref[bc * n:(bc + 1) * n, r:r + 1, :, :] = zero_row
            for c in halo_cols:
                y1buf_ref[bc * n:(bc + 1) * n, :, c:c + 1, :] = zero_col
            qc = ((a - 1) % s) * s + ((b - 1) % s)            # y1 parity chunk
            chunk = y1[qc * m1:(qc + 1) * m1, :].reshape(n, ho, wo, p)
            y1buf_ref[bc * n:(bc + 1) * n, r0:r0 + ho, c0:c0 + wo, :] = chunk

    # ---- conv2: 3x3 / stride s as 3 accumulated matmuls with K = 3*p --------
    acc = jnp.zeros((m1, p), f32)
    for kh in range(3):
        taps = []
        for kw in range(3):
            bc = (kh % s) * s + (kw % s)
            r0, c0 = kh // s, kw // s
            tap = y1buf_ref[bc * n:(bc + 1) * n, r0:r0 + ho, c0:c0 + wo, :]
            taps.append(tap.reshape(m1, p))
        tap3 = jnp.concatenate(taps, axis=1).astype(bf16)     # (m1, 3p)
        acc = acc + jnp.dot(tap3, w2_ref[kh], preferred_element_type=f32)
    y2 = bn_fold(acc, 2, relu=True)

    # ---- conv3: 1x1 -> BN ----------------------------------------------------
    y3 = jnp.dot(y2.astype(bf16), w3_ref[...], preferred_element_type=f32)
    y3 = bn_fold(y3, 4, relu=False)

    # ---- residual: stride-s subsample == parity chunk (0,0) == rows [0:m1] --
    if downsampling:
        res = jnp.dot(x_bf[0:m1, :], wd_ref[...], preferred_element_type=f32)
        res = bn_fold(res, 6, relu=False)
    else:
        res = x_bf[0:m1, :].astype(f32)                       # cin == cout

    o_ref[...] = jnp.maximum(y3 + res, 0.0).astype(o_ref.dtype)


# ---------------------------------------------------------------------------
# Bottleneck module (deterministic synthetic parameters)
# ---------------------------------------------------------------------------
class BottleneckPallas:
    def __init__(self, key, in_places, places, stride=1, downsampling=False,
                 expansion=4, out_dtype=jnp.bfloat16):
        assert stride in (1, 2), "ResNet bottleneck uses stride 1 or 2"
        self.in_places = in_places
        self.places = places
        self.stride = stride
        self.downsampling = downsampling
        self.expansion = expansion
        self.out_dtype = out_dtype
        out_places = places * expansion
        if not downsampling:
            assert stride == 1 and in_places == out_places, \
                "identity shortcut requires stride 1 and cin == places*expansion"
        ks = jax.random.split(key, 12)

        def conv_w(k, cout, cin, kh, kw):
            wgt = 0.1 * jax.random.normal(k, (cout, cin, kh, kw), jnp.float32)
            # store bf16-rounded weights so the in-kernel bf16 MXU path sees
            # exactly the same weight values as the f32 reference
            return wgt.astype(jnp.bfloat16).astype(jnp.float32)

        self.w1 = conv_w(ks[0], places, in_places, 1, 1)
        self.w2 = conv_w(ks[1], places, places, 3, 3)
        self.w3 = conv_w(ks[2], out_places, places, 1, 1)
        self.g1 = 1.0 + 0.1 * jax.random.normal(ks[3], (places,), jnp.float32)
        self.b1 = 0.1 * jax.random.normal(ks[4], (places,), jnp.float32)
        self.g2 = 1.0 + 0.1 * jax.random.normal(ks[5], (places,), jnp.float32)
        self.b2 = 0.1 * jax.random.normal(ks[6], (places,), jnp.float32)
        self.g3 = 1.0 + 0.1 * jax.random.normal(ks[7], (out_places,), jnp.float32)
        self.b3 = 0.1 * jax.random.normal(ks[8], (out_places,), jnp.float32)
        if downsampling:
            self.wd = conv_w(ks[9], out_places, in_places, 1, 1)
            self.gd = 1.0 + 0.1 * jax.random.normal(ks[10], (out_places,), jnp.float32)
            self.bd = 0.1 * jax.random.normal(ks[11], (out_places,), jnp.float32)

    def __call__(self, x_nchw):
        n, cin, h, w = x_nchw.shape
        s = self.stride
        p = self.places
        cout = p * self.expansion
        assert cin == self.in_places and h % s == 0 and w % s == 0
        ho, wo = h // s, w // s
        m1 = n * ho * wo
        cmax = max(p, cout)
        bf16 = jnp.bfloat16

        # --- wrapper-side layout plumbing (single pass over x) ---------------
        # NCHW -> parity-split channels-last rows in (row-parity a, col-parity
        # b, n, i, j) order; chunk (0, 0) is exactly the stride-s sub-grid the
        # residual path consumes.  The bf16 cast fuses into the same XLA op.
        # TODO(synk): elide by keeping activations channels-last across blocks.
        xp = jnp.transpose(x_nchw.reshape(n, cin, ho, s, wo, s),
                           (3, 5, 0, 2, 4, 1))
        x2d = xp.reshape(s * s * m1, cin).astype(bf16)

        # weights in matmul layout, bf16 for the MXU
        w1 = self.w1.reshape(p, cin).T.astype(bf16)                     # (cin, p)
        # (kh, kw, cin, cout) -> (3, 3*p, p): kw folded into the contraction
        w2 = jnp.transpose(self.w2, (2, 3, 1, 0)).reshape(3, 3 * p, p).astype(bf16)
        w3 = self.w3.reshape(cout, p).T.astype(bf16)                    # (p, cout)

        bn_rows = [self.g1, self.b1, self.g2, self.b2, self.g3, self.b3]
        operands = [x2d, w1, w2, w3]
        if self.downsampling:
            operands.append(self.wd.reshape(cout, cin).T.astype(bf16))  # (cin, cout)
            bn_rows += [self.gd, self.bd]

        # all BN params packed into one small VMEM block (one DMA)
        pad_row = lambda v: jnp.pad(v, (0, cmax - v.shape[0]))
        operands.append(jnp.stack([pad_row(v) for v in bn_rows]))       # (6|8, cmax)

        hp = ho + (2 if s == 1 else 1)   # padded parity-buffer extents
        wp = wo + (2 if s == 1 else 1)

        kernel = functools.partial(
            _bottleneck_kernel, n=n, h=h, w=w, s=s, p=p,
            downsampling=self.downsampling)
        vmem = pl.BlockSpec(memory_space=pltpu.MemorySpace.VMEM)

        out2d = pl.pallas_call(
            kernel,
            out_shape=jax.ShapeDtypeStruct((m1, cout), self.out_dtype),
            in_specs=[vmem] * len(operands),
            out_specs=vmem,
            scratch_shapes=[pltpu.VMEM((s * s * n, hp, wp, p), jnp.float32)],
            compiler_params=pltpu.CompilerParams(
                vmem_limit_bytes=32 * 1024 * 1024),
        )(*operands)

        out = out2d.reshape(n, ho, wo, cout)
        # TODO(synk): return NHWC directly for channels-last pipelines.
        return jnp.transpose(out, (0, 3, 1, 2))                          # NCHW


# ---------------------------------------------------------------------------
# Pure-JAX reference (train-mode BatchNorm, same params)
# ---------------------------------------------------------------------------
def _bn_train(x_nchw, gamma, beta):
    mean = jnp.mean(x_nchw, axis=(0, 2, 3), keepdims=True)
    var = jnp.mean(jnp.square(x_nchw - mean), axis=(0, 2, 3), keepdims=True)
    return ((x_nchw - mean) * lax.rsqrt(var + BN_EPS)
            * gamma.reshape(1, -1, 1, 1) + beta.reshape(1, -1, 1, 1))


def ref_forward(m, x):
    conv = lambda x, wgt, s, pad: lax.conv_general_dilated(
        x, wgt, (s, s), [(pad, pad), (pad, pad)],
        dimension_numbers=("NCHW", "OIHW", "NCHW"))
    y = jax.nn.relu(_bn_train(conv(x, m.w1, 1, 0), m.g1, m.b1))
    y = jax.nn.relu(_bn_train(conv(y, m.w2, m.stride, 1), m.g2, m.b2))
    y = _bn_train(conv(y, m.w3, 1, 0), m.g3, m.b3)
    res = _bn_train(conv(x, m.wd, m.stride, 0), m.gd, m.bd) if m.downsampling else x
    return jax.nn.relu(y + res)


if __name__ == "__main__":
    key = jax.random.PRNGKey(0)
    k_x1, k_x2, k_m1, k_m2 = jax.random.split(key, 4)

    # Case 1: projection shortcut, stride 2
    x1 = jax.random.normal(k_x1, (2, 4, 16, 16), jnp.float32)
    m1 = BottleneckPallas(k_m1, in_places=4, places=4, stride=2,
                          downsampling=True, expansion=4)
    out1 = jax.block_until_ready(m1(x1))
    assert out1.shape == (2, 16, 8, 8)
    np.testing.assert_allclose(np.asarray(out1.astype(jnp.float32)),
                               np.asarray(ref_forward(m1, x1)),
                               rtol=3e-2, atol=3e-2)  # bf16 in/activations/out

    # Case 2: identity shortcut, stride 1
    x2 = jax.random.normal(k_x2, (2, 16, 8, 8), jnp.float32)
    m2 = BottleneckPallas(k_m2, in_places=16, places=4, stride=1,
                          downsampling=False, expansion=4)
    out2 = jax.block_until_ready(m2(x2))
    assert out2.shape == (2, 16, 8, 8)
    np.testing.assert_allclose(np.asarray(out2.astype(jnp.float32)),
                               np.asarray(ref_forward(m2, x2)),
                               rtol=3e-2, atol=3e-2)

    print("KERNEL_OK")
</pallas_src>

<mosaic_0001>
module attributes {stable_mosaic.version = 11 : i64} {
  func.func @_bottleneck_kernel(%arg0: memref<512x4xbf16, #tpu.memory_space<vmem>>, %arg1: memref<4x4xbf16, #tpu.memory_space<vmem>>, %arg2: memref<3x12x4xbf16, #tpu.memory_space<vmem>>, %arg3: memref<4x16xbf16, #tpu.memory_space<vmem>>, %arg4: memref<4x16xbf16, #tpu.memory_space<vmem>>, %arg5: memref<8x16xf32, #tpu.memory_space<vmem>>, %arg6: memref<128x16xbf16, #tpu.memory_space<vmem>>, %arg7: memref<8x9x9x4xf32, #tpu.memory_space<vmem>>) attributes {dimension_semantics = [], scalar_prefetch = 0 : i64, scratch_operands = 1 : i64, tpu.core_type = #tpu.core_type<tc>} {
    %c0 = arith.constant 0 : index
    %c0_0 = arith.constant 0 : index
    %0 = vector.load %arg0[%c0, %c0_0] : memref<512x4xbf16, #tpu.memory_space<vmem>>, vector<512x4xbf16>
    %c0_1 = arith.constant 0 : index
    %c0_2 = arith.constant 0 : index
    %1 = vector.load %arg1[%c0_1, %c0_2] : memref<4x4xbf16, #tpu.memory_space<vmem>>, vector<4x4xbf16>
    %cst = arith.constant dense<0.000000e+00> : vector<512x4xf32>
    %2 = tpu.matmul %0, %1, %cst {dimension_numbers = #tpu.dot_dimension_numbers<[1], [0], [0], [1], [0, 0, 1, 1], [], []>} : vector<512x4xbf16>, vector<4x4xbf16>, vector<512x4xf32> -> vector<512x4xf32>
    %c0_3 = arith.constant 0 : index
    %c0_4 = arith.constant 0 : index
    %3 = vector.load %arg5[%c0_3, %c0_4] : memref<8x16xf32, #tpu.memory_space<vmem>>, vector<1x4xf32>
    %c1 = arith.constant 1 : index
    %c0_5 = arith.constant 0 : index
    %4 = vector.load %arg5[%c1, %c0_5] : memref<8x16xf32, #tpu.memory_space<vmem>>, vector<1x4xf32>
    %cst_6 = arith.constant dense<0.000000e+00> : vector<4xf32>
    %5 = vector.multi_reduction <add>, %2, %cst_6 [0] : vector<512x4xf32> to vector<4xf32>
    %6 = vector.shape_cast %5 : vector<4xf32> to vector<1x4xf32>
    %cst_7 = arith.constant 5.120000e+02 : f32
    %7 = vector.broadcast %cst_7 : f32 to vector<1x4xf32>
    %8 = arith.divf %6, %7 : vector<1x4xf32>
    %9 = arith.mulf %2, %2 : vector<512x4xf32>
    %cst_8 = arith.constant dense<0.000000e+00> : vector<4xf32>
    %10 = vector.multi_reduction <add>, %9, %cst_8 [0] : vector<512x4xf32> to vector<4xf32>
    %11 = vector.shape_cast %10 : vector<4xf32> to vector<1x4xf32>
    %cst_9 = arith.constant 5.120000e+02 : f32
    %12 = vector.broadcast %cst_9 : f32 to vector<1x4xf32>
    %13 = arith.divf %11, %12 : vector<1x4xf32>
    %14 = arith.mulf %8, %8 : vector<1x4xf32>
    %15 = arith.subf %13, %14 : vector<1x4xf32>
    %cst_10 = arith.constant 0.000000e+00 : f32
    %16 = vector.broadcast %cst_10 : f32 to vector<1x4xf32>
    %17 = arith.maximumf %15, %16 : vector<1x4xf32>
    %cst_11 = arith.constant 9.99999974E-6 : f32
    %18 = vector.broadcast %cst_11 : f32 to vector<1x4xf32>
    %19 = arith.addf %17, %18 : vector<1x4xf32>
    %20 = math.rsqrt %19 : vector<1x4xf32>
    %21 = arith.mulf %3, %20 : vector<1x4xf32>
    %22 = arith.mulf %8, %21 : vector<1x4xf32>
    %23 = arith.subf %4, %22 : vector<1x4xf32>
    %24 = vector.broadcast %21 : vector<1x4xf32> to vector<512x4xf32>
    %25 = arith.mulf %2, %24 : vector<512x4xf32>
    %26 = vector.broadcast %23 : vector<1x4xf32> to vector<512x4xf32>
    %27 = arith.addf %25, %26 : vector<512x4xf32>
    %cst_12 = arith.constant 0.000000e+00 : f32
    %28 = vector.broadcast %cst_12 : f32 to vector<512x4xf32>
    %29 = arith.maximumf %27, %28 : vector<512x4xf32>
    %cst_13 = arith.constant 0.000000e+00 : f32
    %30 = vector.broadcast %cst_13 : f32 to vector<2x1x9x4xf32>
    %cst_14 = arith.constant 0.000000e+00 : f32
    %31 = vector.broadcast %cst_14 : f32 to vector<2x9x1x4xf32>
    %c0_15 = arith.constant 0 : index
    %c0_16 = arith.constant 0 : index
    %c0_17 = arith.constant 0 : index
    %c0_18 = arith.constant 0 : index
    %32 = vector.load %arg7[%c0_15, %c0_16, %c0_17, %c0_18] : memref<8x9x9x4xf32, #tpu.memory_space<vmem>>, vector<2x1x9x4xf32>
    tpu.vector_store %arg7[%c0_15, %c0_16, %c0_17, %c0_18], %30 {strides = array<i32>} : memref<8x9x9x4xf32, #tpu.memory_space<vmem>>, vector<2x1x9x4xf32>,
    %c0_19 = arith.constant 0 : index
    %c0_20 = arith.constant 0 : index
    %c0_21 = arith.constant 0 : index
    %c0_22 = arith.constant 0 : index
    %33 = vector.load %arg7[%c0_19, %c0_20, %c0_21, %c0_22] : memref<8x9x9x4xf32, #tpu.memory_space<vmem>>, vector<2x9x1x4xf32>
    tpu.vector_store %arg7[%c0_19, %c0_20, %c0_21, %c0_22], %31 {strides = array<i32>} : memref<8x9x9x4xf32, #tpu.memory_space<vmem>>, vector<2x9x1x4xf32>,
    %34 = vector.extract_strided_slice %29 {offsets = [384, 0], sizes = [128, 4], strides = [1, 1]} : vector<512x4xf32> to vector<128x4xf32>
    %35 = vector.shape_cast %34 : vector<128x4xf32> to vector<2x8x8x4xf32>
    %c0_23 = arith.constant 0 : index
    %c1_24 = arith.constant 1 : index
    %c1_25 = arith.constant 1 : index
    %c0_26 = arith.constant 0 : index
    %36 = vector.load %arg7[%c0_23, %c1_24, %c1_25, %c0_26] : memref<8x9x9x4xf32, #tpu.memory_space<vmem>>, vector<2x8x8x4xf32>
    tpu.vector_store %arg7[%c0_23, %c1_24, %c1_25, %c0_26], %35 {strides = array<i32>} : memref<8x9x9x4xf32, #tpu.memory_space<vmem>>, vector<2x8x8x4xf32>,
    %c2 = arith.constant 2 : index
    %c0_27 = arith.constant 0 : index
    %c0_28 = arith.constant 0 : index
    %c0_29 = arith.constant 0 : index
    %37 = vector.load %arg7[%c2, %c0_27, %c0_28, %c0_29] : memref<8x9x9x4xf32, #tpu.memory_space<vmem>>, vector<2x1x9x4xf32>
    tpu.vector_store %arg7[%c2, %c0_27, %c0_28, %c0_29], %30 {strides = array<i32>} : memref<8x9x9x4xf32, #tpu.memory_space<vmem>>, vector<2x1x9x4xf32>,
    %c2_30 = arith.constant 2 : index
    %c0_31 = arith.constant 0 : index
    %c8 = arith.constant 8 : index
    %c0_32 = arith.constant 0 : index
    %38 = vector.load %arg7[%c2_30, %c0_31, %c8, %c0_32] : memref<8x9x9x4xf32, #tpu.memory_space<vmem>>, vector<2x9x1x4xf32>
    tpu.vector_store %arg7[%c2_30, %c0_31, %c8, %c0_32], %31 {strides = array<i32>} : memref<8x9x9x4xf32, #tpu.memory_space<vmem>>, vector<2x9x1x4xf32>,
    %39 = vector.extract_strided_slice %29 {offsets = [256, 0], sizes = [128, 4], strides = [1, 1]} : vector<512x4xf32> to vector<128x4xf32>
    %40 = vector.shape_cast %39 : vector<128x4xf32> to vector<2x8x8x4xf32>
    %c2_33 = arith.constant 2 : index
    %c1_34 = arith.constant 1 : index
    %c0_35 = arith.constant 0 : index
    %c0_36 = arith.constant 0 : index
    %41 = vector.load %arg7[%c2_33, %c1_34, %c0_35, %c0_36] : memref<8x9x9x4xf32, #tpu.memory_space<vmem>>, vector<2x8x8x4xf32>
    tpu.vector_store %arg7[%c2_33, %c1_34, %c0_35, %c0_36], %40 {strides = array<i32>} : memref<8x9x9x4xf32, #tpu.memory_space<vmem>>, vector<2x8x8x4xf32>,
    %c4 = arith.constant 4 : index
    %c8_37 = arith.constant 8 : index
    %c0_38 = arith.constant 0 : index
    %c0_39 = arith.constant 0 : index
    %42 = vector.load %arg7[%c4, %c8_37, %c0_38, %c0_39] : memref<8x9x9x4xf32, #tpu.memory_space<vmem>>, vector<2x1x9x4xf32>
    tpu.vector_store %arg7[%c4, %c8_37, %c0_38, %c0_39], %30 {strides = array<i32>} : memref<8x9x9x4xf32, #tpu.memory_space<vmem>>, vector<2x1x9x4xf32>,
    %c4_40 = arith.constant 4 : index
    %c0_41 = arith.constant 0 : index
    %c0_42 = arith.constant 0 : index
    %c0_43 = arith.constant 0 : index
    %43 = vector.load %arg7[%c4_40, %c0_41, %c0_42, %c0_43] : memref<8x9x9x4xf32, #tpu.memory_space<vmem>>, vector<2x9x1x4xf32>
    tpu.vector_store %arg7[%c4_40, %c0_41, %c0_42, %c0_43], %31 {strides = array<i32>} : memref<8x9x9x4xf32, #tpu.memory_space<vmem>>, vector<2x9x1x4xf32>,
    %44 = vector.extract_strided_slice %29 {offsets = [128, 0], sizes = [128, 4], strides = [1, 1]} : vector<512x4xf32> to vector<128x4xf32>
    %45 = vector.shape_cast %44 : vector<128x4xf32> to vector<2x8x8x4xf32>
    %c4_44 = arith.constant 4 : index
    %c0_45 = arith.constant 0 : index
    %c1_46 = arith.constant 1 : index
    %c0_47 = arith.constant 0 : index
    %46 = vector.load %arg7[%c4_44, %c0_45, %c1_46, %c0_47] : memref<8x9x9x4xf32, #tpu.memory_space<vmem>>, vector<2x8x8x4xf32>
    tpu.vector_store %arg7[%c4_44, %c0_45, %c1_46, %c0_47], %45 {strides = array<i32>} : memref<8x9x9x4xf32, #tpu.memory_space<vmem>>, vector<2x8x8x4xf32>,
    %c6 = arith.constant 6 : index
    %c8_48 = arith.constant 8 : index
    %c0_49 = arith.constant 0 : index
    %c0_50 = arith.constant 0 : index
    %47 = vector.load %arg7[%c6, %c8_48, %c0_49, %c0_50] : memref<8x9x9x4xf32, #tpu.memory_space<vmem>>, vector<2x1x9x4xf32>
    tpu.vector_store %arg7[%c6, %c8_48, %c0_49, %c0_50], %30 {strides = array<i32>} : memref<8x9x9x4xf32, #tpu.memory_space<vmem>>, vector<2x1x9x4xf32>,
    %c6_51 = arith.constant 6 : index
    %c0_52 = arith.constant 0 : index
    %c8_53 = arith.constant 8 : index
    %c0_54 = arith.constant 0 : index
    %48 = vector.load %arg7[%c6_51, %c0_52, %c8_53, %c0_54] : memref<8x9x9x4xf32, #tpu.memory_space<vmem>>, vector<2x9x1x4xf32>
    tpu.vector_store %arg7[%c6_51, %c0_52, %c8_53, %c0_54], %31 {strides = array<i32>} : memref<8x9x9x4xf32, #tpu.memory_space<vmem>>, vector<2x9x1x4xf32>,
    %49 = vector.extract_strided_slice %29 {offsets = [0, 0], sizes = [128, 4], strides = [1, 1]} : vector<512x4xf32> to vector<128x4xf32>
    %50 = vector.shape_cast %49 : vector<128x4xf32> to vector<2x8x8x4xf32>
    %c6_55 = arith.constant 6 : index
    %c0_56 = arith.constant 0 : index
    %c0_57 = arith.constant 0 : index
    %c0_58 = arith.constant 0 : index
    %51 = vector.load %arg7[%c6_55, %c0_56, %c0_57, %c0_58] : memref<8x9x9x4xf32, #tpu.memory_space<vmem>>, vector<2x8x8x4xf32>
    tpu.vector_store %arg7[%c6_55, %c0_56, %c0_57, %c0_58], %50 {strides = array<i32>} : memref<8x9x9x4xf32, #tpu.memory_space<vmem>>, vector<2x8x8x4xf32>,
    %cst_59 = arith.constant 0.000000e+00 : f32
    %52 = vector.broadcast %cst_59 : f32 to vector<128x4xf32>
    %c0_60 = arith.constant 0 : index
    %c0_61 = arith.constant 0 : index
    %c0_62 = arith.constant 0 : index
    %c0_63 = arith.constant 0 : index
    %53 = vector.load %arg7[%c0_60, %c0_61, %c0_62, %c0_63] : memref<8x9x9x4xf32, #tpu.memory_space<vmem>>, vector<2x8x8x4xf32>
    %54 = vector.shape_cast %53 : vector<2x8x8x4xf32> to vector<128x4xf32>
    %c2_64 = arith.constant 2 : index
    %c0_65 = arith.constant 0 : index
    %c0_66 = arith.constant 0 : index
    %c0_67 = arith.constant 0 : index
    %55 = vector.load %arg7[%c2_64, %c0_65, %c0_66, %c0_67] : memref<8x9x9x4xf32, #tpu.memory_space<vmem>>, vector<2x8x8x4xf32>
    %56 = vector.shape_cast %55 : vector<2x8x8x4xf32> to vector<128x4xf32>
    %c0_68 = arith.constant 0 : index
    %c0_69 = arith.constant 0 : index
    %c1_70 = arith.constant 1 : index
    %c0_71 = arith.constant 0 : index
    %57 = vector.load %arg7[%c0_68, %c0_69, %c1_70, %c0_71] : memref<8x9x9x4xf32, #tpu.memory_space<vmem>>, vector<2x8x8x4xf32>
    %58 = vector.shape_cast %57 : vector<2x8x8x4xf32> to vector<128x4xf32>
    %59 = tpu.concatenate %54, %56, %58 in 1 : vector<128x4xf32>, vector<128x4xf32>, vector<128x4xf32> -> vector<128x12xf32>
    %60 = arith.truncf %59 : vector<128x12xf32> to vector<128x12xbf16>
    %c0_72 = arith.constant 0 : index
    %c0_73 = arith.constant 0 : index
    %c0_74 = arith.constant 0 : index
    %61 = vector.load %arg2[%c0_72, %c0_73, %c0_74] : memref<3x12x4xbf16, #tpu.memory_space<vmem>>, vector<1x12x4xbf16>
    %62 = vector.shape_cast %61 : vector<1x12x4xbf16> to vector<12x4xbf16>
    %cst_75 = arith.constant dense<0.000000e+00> : vector<128x4xf32>
    %63 = tpu.matmul %60, %62, %cst_75 {dimension_numbers = #tpu.dot_dimension_numbers<[1], [0], [0], [1], [0, 0, 1, 1], [], []>} : vector<128x12xbf16>, vector<12x4xbf16>, vector<128x4xf32> -> vector<128x4xf32>
    %64 = arith.addf %52, %63 : vector<128x4xf32>
    %c4_76 = arith.constant 4 : index
    %c0_77 = arith.constant 0 : index
    %c0_78 = arith.constant 0 : index
    %c0_79 = arith.constant 0 : index
    %65 = vector.load %arg7[%c4_76, %c0_77, %c0_78, %c0_79] : memref<8x9x9x4xf32, #tpu.memory_space<vmem>>, vector<2x8x8x4xf32>
    %66 = vector.shape_cast %65 : vector<2x8x8x4xf32> to vector<128x4xf32>
    %c6_80 = arith.constant 6 : index
    %c0_81 = arith.constant 0 : index
    %c0_82 = arith.constant 0 : index
    %c0_83 = arith.constant 0 : index
    %67 = vector.load %arg7[%c6_80, %c0_81, %c0_82, %c0_83] : memref<8x9x9x4xf32, #tpu.memory_space<vmem>>, vector<2x8x8x4xf32>
    %68 = vector.shape_cast %67 : vector<2x8x8x4xf32> to vector<128x4xf32>
    %c4_84 = arith.constant 4 : index
    %c0_85 = arith.constant 0 : index
    %c1_86 = arith.constant 1 : index
    %c0_87 = arith.constant 0 : index
    %69 = vector.load %arg7[%c4_84, %c0_85, %c1_86, %c0_87] : memref<8x9x9x4xf32, #tpu.memory_space<vmem>>, vector<2x8x8x4xf32>
    %70 = vector.shape_cast %69 : vector<2x8x8x4xf32> to vector<128x4xf32>
    %71 = tpu.concatenate %66, %68, %70 in 1 : vector<128x4xf32>, vector<128x4xf32>, vector<128x4xf32> -> vector<128x12xf32>
    %72 = arith.truncf %71 : vector<128x12xf32> to vector<128x12xbf16>
    %c1_88 = arith.constant 1 : index
    %c0_89 = arith.constant 0 : index
    %c0_90 = arith.constant 0 : index
    %73 = vector.load %arg2[%c1_88, %c0_89, %c0_90] : memref<3x12x4xbf16, #tpu.memory_space<vmem>>, vector<1x12x4xbf16>
    %74 = vector.shape_cast %73 : vector<1x12x4xbf16> to vector<12x4xbf16>
    %cst_91 = arith.constant dense<0.000000e+00> : vector<128x4xf32>
    %75 = tpu.matmul %72, %74, %cst_91 {dimension_numbers = #tpu.dot_dimension_numbers<[1], [0], [0], [1], [0, 0, 1, 1], [], []>} : vector<128x12xbf16>, vector<12x4xbf16>, vector<128x4xf32> -> vector<128x4xf32>
    %76 = arith.addf %64, %75 : vector<128x4xf32>
    %c0_92 = arith.constant 0 : index
    %c1_93 = arith.constant 1 : index
    %c0_94 = arith.constant 0 : index
    %c0_95 = arith.constant 0 : index
    %77 = vector.load %arg7[%c0_92, %c1_93, %c0_94, %c0_95] : memref<8x9x9x4xf32, #tpu.memory_space<vmem>>, vector<2x8x8x4xf32>
    %78 = vector.shape_cast %77 : vector<2x8x8x4xf32> to vector<128x4xf32>
    %c2_96 = arith.constant 2 : index
    %c1_97 = arith.constant 1 : index
    %c0_98 = arith.constant 0 : index
    %c0_99 = arith.constant 0 : index
    %79 = vector.load %arg7[%c2_96, %c1_97, %c0_98, %c0_99] : memref<8x9x9x4xf32, #tpu.memory_space<vmem>>, vector<2x8x8x4xf32>
    %80 = vector.shape_cast %79 : vector<2x8x8x4xf32> to vector<128x4xf32>
    %c0_100 = arith.constant 0 : index
    %c1_101 = arith.constant 1 : index
    %c1_102 = arith.constant 1 : index
    %c0_103 = arith.constant 0 : index
    %81 = vector.load %arg7[%c0_100, %c1_101, %c1_102, %c0_103] : memref<8x9x9x4xf32, #tpu.memory_space<vmem>>, vector<2x8x8x4xf32>
    %82 = vector.shape_cast %81 : vector<2x8x8x4xf32> to vector<128x4xf32>
    %83 = tpu.concatenate %78, %80, %82 in 1 : vector<128x4xf32>, vector<128x4xf32>, vector<128x4xf32> -> vector<128x12xf32>
    %84 = arith.truncf %83 : vector<128x12xf32> to vector<128x12xbf16>
    %c2_104 = arith.constant 2 : index
    %c0_105 = arith.constant 0 : index
    %c0_106 = arith.constant 0 : index
    %85 = vector.load %arg2[%c2_104, %c0_105, %c0_106] : memref<3x12x4xbf16, #tpu.memory_space<vmem>>, vector<1x12x4xbf16>
    %86 = vector.shape_cast %85 : vector<1x12x4xbf16> to vector<12x4xbf16>
    %cst_107 = arith.constant dense<0.000000e+00> : vector<128x4xf32>
    %87 = tpu.matmul %84, %86, %cst_107 {dimension_numbers = #tpu.dot_dimension_numbers<[1], [0], [0], [1], [0, 0, 1, 1], [], []>} : vector<128x12xbf16>, vector<12x4xbf16>, vector<128x4xf32> -> vector<128x4xf32>
    %88 = arith.addf %76, %87 : vector<128x4xf32>
    %c2_108 = arith.constant 2 : index
    %c0_109 = arith.constant 0 : index
    %89 = vector.load %arg5[%c2_108, %c0_109] : memref<8x16xf32, #tpu.memory_space<vmem>>, vector<1x4xf32>
    %c3 = arith.constant 3 : index
    %c0_110 = arith.constant 0 : index
    %90 = vector.load %arg5[%c3, %c0_110] : memref<8x16xf32, #tpu.memory_space<vmem>>, vector<1x4xf32>
    %cst_111 = arith.constant dense<0.000000e+00> : vector<4xf32>
    %91 = vector.multi_reduction <add>, %88, %cst_111 [0] : vector<128x4xf32> to vector<4xf32>
    %92 = vector.shape_cast %91 : vector<4xf32> to vector<1x4xf32>
    %cst_112 = arith.constant 1.280000e+02 : f32
    %93 = vector.broadcast %cst_112 : f32 to vector<1x4xf32>
    %94 = arith.divf %92, %93 : vector<1x4xf32>
    %95 = arith.mulf %88, %88 : vector<128x4xf32>
    %cst_113 = arith.constant dense<0.000000e+00> : vector<4xf32>
    %96 = vector.multi_reduction <add>, %95, %cst_113 [0] : vector<128x4xf32> to vector<4xf32>
    %97 = vector.shape_cast %96 : vector<4xf32> to vector<1x4xf32>
    %cst_114 = arith.constant 1.280000e+02 : f32
    %98 = vector.broadcast %cst_114 : f32 to vector<1x4xf32>
    %99 = arith.divf %97, %98 : vector<1x4xf32>
    %100 = arith.mulf %94, %94 : vector<1x4xf32>
    %101 = arith.subf %99, %100 : vector<1x4xf32>
    %cst_115 = arith.constant 0.000000e+00 : f32
    %102 = vector.broadcast %cst_115 : f32 to vector<1x4xf32>
    %103 = arith.maximumf %101, %102 : vector<1x4xf32>
    %cst_116 = arith.constant 9.99999974E-6 : f32
    %104 = vector.broadcast %cst_116 : f32 to vector<1x4xf32>
    %105 = arith.addf %103, %104 : vector<1x4xf32>
    %106 = math.rsqrt %105 : vector<1x4xf32>
    %107 = arith.mulf %89, %106 : vector<1x4xf32>
    %108 = arith.mulf %94, %107 : vector<1x4xf32>
    %109 = arith.subf %90, %108 : vector<1x4xf32>
    %110 = vector.broadcast %107 : vector<1x4xf32> to vector<128x4xf32>
    %111 = arith.mulf %88, %110 : vector<128x4xf32>
    %112 = vector.broadcast %109 : vector<1x4xf32> to vector<128x4xf32>
    %113 = arith.addf %111, %112 : vector<128x4xf32>
    %cst_117 = arith.constant 0.000000e+00 : f32
    %114 = vector.broadcast %cst_117 : f32 to vector<128x4xf32>
    %115 = arith.maximumf %113, %114 : vector<128x4xf32>
    %116 = arith.truncf %115 : vector<128x4xf32> to vector<128x4xbf16>
    %c0_118 = arith.constant 0 : index
    %c0_119 = arith.constant 0 : index
    %117 = vector.load %arg3[%c0_118, %c0_119] : memref<4x16xbf16, #tpu.memory_space<vmem>>, vector<4x16xbf16>
    %cst_120 = arith.constant dense<0.000000e+00> : vector<128x16xf32>
    %118 = tpu.matmul %116, %117, %cst_120 {dimension_numbers = #tpu.dot_dimension_numbers<[1], [0], [0], [1], [0, 0, 1, 1], [], []>} : vector<128x4xbf16>, vector<4x16xbf16>, vector<128x16xf32> -> vector<128x16xf32>
    %c4_121 = arith.constant 4 : index
    %c0_122 = arith.constant 0 : index
    %119 = vector.load %arg5[%c4_121, %c0_122] : memref<8x16xf32, #tpu.memory_space<vmem>>, vector<1x16xf32>
    %c5 = arith.constant 5 : index
    %c0_123 = arith.constant 0 : index
    %120 = vector.load %arg5[%c5, %c0_123] : memref<8x16xf32, #tpu.memory_space<vmem>>, vector<1x16xf32>
    %cst_124 = arith.constant dense<0.000000e+00> : vector<16xf32>
    %121 = vector.multi_reduction <add>, %118, %cst_124 [0] : vector<128x16xf32> to vector<16xf32>
    %122 = vector.shape_cast %121 : vector<16xf32> to vector<1x16xf32>
    %cst_125 = arith.constant 1.280000e+02 : f32
    %123 = vector.broadcast %cst_125 : f32 to vector<1x16xf32>
    %124 = arith.divf %122, %123 : vector<1x16xf32>
    %125 = arith.mulf %118, %118 : vector<128x16xf32>
    %cst_126 = arith.constant dense<0.000000e+00> : vector<16xf32>
    %126 = vector.multi_reduction <add>, %125, %cst_126 [0] : vector<128x16xf32> to vector<16xf32>
    %127 = vector.shape_cast %126 : vector<16xf32> to vector<1x16xf32>
    %cst_127 = arith.constant 1.280000e+02 : f32
    %128 = vector.broadcast %cst_127 : f32 to vector<1x16xf32>
    %129 = arith.divf %127, %128 : vector<1x16xf32>
    %130 = arith.mulf %124, %124 : vector<1x16xf32>
    %131 = arith.subf %129, %130 : vector<1x16xf32>
    %cst_128 = arith.constant 0.000000e+00 : f32
    %132 = vector.broadcast %cst_128 : f32 to vector<1x16xf32>
    %133 = arith.maximumf %131, %132 : vector<1x16xf32>
    %cst_129 = arith.constant 9.99999974E-6 : f32
    %134 = vector.broadcast %cst_129 : f32 to vector<1x16xf32>
    %135 = arith.addf %133, %134 : vector<1x16xf32>
    %136 = math.rsqrt %135 : vector<1x16xf32>
    %137 = arith.mulf %119, %136 : vector<1x16xf32>
    %138 = arith.mulf %124, %137 : vector<1x16xf32>
    %139 = arith.subf %120, %138 : vector<1x16xf32>
    %140 = vector.broadcast %137 : vector<1x16xf32> to vector<128x16xf32>
    %141 = arith.mulf %118, %140 : vector<128x16xf32>
    %142 = vector.broadcast %139 : vector<1x16xf32> to vector<128x16xf32>
    %143 = arith.addf %141, %142 : vector<128x16xf32>
    %144 = vector.extract_strided_slice %0 {offsets = [0, 0], sizes = [128, 4], strides = [1, 1]} : vector<512x4xbf16> to vector<128x4xbf16>
    %c0_130 = arith.constant 0 : index
    %c0_131 = arith.constant 0 : index
    %145 = vector.load %arg4[%c0_130, %c0_131] : memref<4x16xbf16, #tpu.memory_space<vmem>>, vector<4x16xbf16>
    %cst_132 = arith.constant dense<0.000000e+00> : vector<128x16xf32>
    %146 = tpu.matmul %144, %145, %cst_132 {dimension_numbers = #tpu.dot_dimension_numbers<[1], [0], [0], [1], [0, 0, 1, 1], [], []>} : vector<128x4xbf16>, vector<4x16xbf16>, vector<128x16xf32> -> vector<128x16xf32>
    %c6_133 = arith.constant 6 : index
    %c0_134 = arith.constant 0 : index
    %147 = vector.load %arg5[%c6_133, %c0_134] : memref<8x16xf32, #tpu.memory_space<vmem>>, vector<1x16xf32>
    %c7 = arith.constant 7 : index
    %c0_135 = arith.constant 0 : index
    %148 = vector.load %arg5[%c7, %c0_135] : memref<8x16xf32, #tpu.memory_space<vmem>>, vector<1x16xf32>
    %cst_136 = arith.constant dense<0.000000e+00> : vector<16xf32>
    %149 = vector.multi_reduction <add>, %146, %cst_136 [0] : vector<128x16xf32> to vector<16xf32>
    %150 = vector.shape_cast %149 : vector<16xf32> to vector<1x16xf32>
    %cst_137 = arith.constant 1.280000e+02 : f32
    %151 = vector.broadcast %cst_137 : f32 to vector<1x16xf32>
    %152 = arith.divf %150, %151 : vector<1x16xf32>
    %153 = arith.mulf %146, %146 : vector<128x16xf32>
    %cst_138 = arith.constant dense<0.000000e+00> : vector<16xf32>
    %154 = vector.multi_reduction <add>, %153, %cst_138 [0] : vector<128x16xf32> to vector<16xf32>
    %155 = vector.shape_cast %154 : vector<16xf32> to vector<1x16xf32>
    %cst_139 = arith.constant 1.280000e+02 : f32
    %156 = vector.broadcast %cst_139 : f32 to vector<1x16xf32>
    %157 = arith.divf %155, %156 : vector<1x16xf32>
    %158 = arith.mulf %152, %152 : vector<1x16xf32>
    %159 = arith.subf %157, %158 : vector<1x16xf32>
    %cst_140 = arith.constant 0.000000e+00 : f32
    %160 = vector.broadcast %cst_140 : f32 to vector<1x16xf32>
    %161 = arith.maximumf %159, %160 : vector<1x16xf32>
    %cst_141 = arith.constant 9.99999974E-6 : f32
    %162 = vector.broadcast %cst_141 : f32 to vector<1x16xf32>
    %163 = arith.addf %161, %162 : vector<1x16xf32>
    %164 = math.rsqrt %163 : vector<1x16xf32>
    %165 = arith.mulf %147, %164 : vector<1x16xf32>
    %166 = arith.mulf %152, %165 : vector<1x16xf32>
    %167 = arith.subf %148, %166 : vector<1x16xf32>
    %168 = vector.broadcast %165 : vector<1x16xf32> to vector<128x16xf32>
    %169 = arith.mulf %146, %168 : vector<128x16xf32>
    %170 = vector.broadcast %167 : vector<1x16xf32> to vector<128x16xf32>
    %171 = arith.addf %169, %170 : vector<128x16xf32>
    %172 = arith.addf %143, %171 : vector<128x16xf32>
    %cst_142 = arith.constant 0.000000e+00 : f32
    %173 = vector.broadcast %cst_142 : f32 to vector<128x16xf32>
    %174 = arith.maximumf %172, %173 : vector<128x16xf32>
    %175 = arith.truncf %174 : vector<128x16xf32> to vector<128x16xbf16>
    %c0_143 = arith.constant 0 : index
    %c0_144 = arith.constant 0 : index
    %176 = vector.load %arg6[%c0_143, %c0_144] : memref<128x16xbf16, #tpu.memory_space<vmem>>, vector<128x16xbf16>
    tpu.vector_store %arg6[%c0_143, %c0_144], %175 {strides = array<i32>} : memref<128x16xbf16, #tpu.memory_space<vmem>>, vector<128x16xbf16>,
    return
  }
}

</mosaic_0001>

<llo_original>
// kernel: tpu_custom_call.1
$region0: #{tpu_custom_call.1}
  #allocation0 [shape = 'u32[]', space=smem, size = 0x4, offset = 0x4, fixed_abs, tag = 'smem constant byte address 0x4 - core index']
  #allocation1 [shape = 'u32[144,128]{1,0:T(1,128)}', space=vmem, size = 0x12000, scoped, tag = 'internal scratch']
  #allocation2 [shape = 'f32[8,9,9,4]{3,2,1,0:T(8,128)}', space=vmem, size = 0x90000, scoped, tag = 'scratch operand']
  %s0 = inlined_call_operand.vmem [shape: bf16[512,4], index: 0, kind: input, shape index: {}]
  %s1 = inlined_call_operand.vmem [shape: bf16[4,4], index: 1, kind: input, shape index: {}]
  %s2 = inlined_call_operand.vmem [shape: bf16[3,12,4], index: 2, kind: input, shape index: {}]
  %s3 = inlined_call_operand.vmem [shape: bf16[4,16], index: 3, kind: input, shape index: {}]
  %s4 = inlined_call_operand.vmem [shape: bf16[4,16], index: 4, kind: input, shape index: {}]
  %s5 = inlined_call_operand.vmem [shape: f32[8,16], index: 5, kind: input, shape index: {}]
  %s6 = inlined_call_operand.vmem [shape: bf16[128,16], index: 6, kind: output, shape index: {}]
  %s7 = sld [smem:[#allocation0]]
  $region34: #{tpu_custom_call.1} parent=0
    _
  %s9 = ssub.s32 1, %s7
  %s10 = scalar_select 0, %s9, %s7
  // Predicated region
  $region2: #{tpu_custom_call.1} parent=0 // pred_check
    _
  $region3: #{tpu_custom_call.1} parent=0 // pred_check_branch
    %12 = sbr.rel (0) target = $region5
  $region4: #{tpu_custom_call.1} parent=0 // pred_region
    _
  $region5: #{tpu_custom_call.1} parent=0 // pred_fallthru
    _
  // Predicated region
  $region6: #{tpu_custom_call.1} parent=0 // pred_check
    _
  $region7: #{tpu_custom_call.1} parent=0 // pred_check_branch
    %14 = sbr.rel (0) target = $region9
  $region8: #{tpu_custom_call.1} parent=0 // pred_region
    _
  $region9: #{tpu_custom_call.1} parent=0 // pred_fallthru
    _
  // Predicated region
  $region10: #{tpu_custom_call.1} parent=0 // pred_check
    _
  $region11: #{tpu_custom_call.1} parent=0 // pred_check_branch
    %16 = sbr.rel (0) target = $region13
  $region12: #{tpu_custom_call.1} parent=0 // pred_region
    _
  $region13: #{tpu_custom_call.1} parent=0 // pred_fallthru
    _
  // Predicated region
  $region14: #{tpu_custom_call.1} parent=0 // pred_check
    _
  $region15: #{tpu_custom_call.1} parent=0 // pred_check_branch
    %18 = sbr.rel (0) target = $region17
  $region16: #{tpu_custom_call.1} parent=0 // pred_region
    _
  $region17: #{tpu_custom_call.1} parent=0 // pred_fallthru
    _
  // Predicated region
  $region18: #{tpu_custom_call.1} parent=0 // pred_check
    _
  $region19: #{tpu_custom_call.1} parent=0 // pred_check_branch
    %20 = sbr.rel (0) target = $region21
  $region20: #{tpu_custom_call.1} parent=0 // pred_region
    _
  $region21: #{tpu_custom_call.1} parent=0 // pred_fallthru
    _
  // Predicated region
  $region22: #{tpu_custom_call.1} parent=0 // pred_check
    _
  $region23: #{tpu_custom_call.1} parent=0 // pred_check_branch
    %22 = sbr.rel (0) target = $region25
  $region24: #{tpu_custom_call.1} parent=0 // pred_region
    _
  $region25: #{tpu_custom_call.1} parent=0 // pred_fallthru
    _
  %v24 = vld [vmem:[%s0] sm:$0xf]
  %v25 = vld [vmem:[%s0 + $0x4] sm:$0xf]
  %v26 = vld [vmem:[%s0 + $0x8] sm:$0xf]
  %v27 = vld [vmem:[%s0 + $0xc] sm:$0xf]
  %v28 = vld [vmem:[%s0 + $0x10] sm:$0xf]
  %v29 = vld [vmem:[%s0 + $0x14] sm:$0xf]
  %v30 = vld [vmem:[%s0 + $0x18] sm:$0xf]
  %v31 = vld [vmem:[%s0 + $0x1c] sm:$0xf]
  %v32 = vld [vmem:[%s0 + $0x20] sm:$0xf]
  %v33 = vld [vmem:[%s0 + $0x24] sm:$0xf]
  %v34 = vld [vmem:[%s0 + $0x28] sm:$0xf]
  %v35 = vld [vmem:[%s0 + $0x2c] sm:$0xf]
  %v36 = vld [vmem:[%s0 + $0x30] sm:$0xf]
  %v37 = vld [vmem:[%s0 + $0x34] sm:$0xf]
  %v38 = vld [vmem:[%s0 + $0x38] sm:$0xf]
  %v39 = vld [vmem:[%s0 + $0x3c] sm:$0xf]
  %v40 = vld [vmem:[%s0 + $0x40] sm:$0xf]
  %v41 = vld [vmem:[%s0 + $0x44] sm:$0xf]
  %v42 = vld [vmem:[%s0 + $0x48] sm:$0xf]
  %v43 = vld [vmem:[%s0 + $0x4c] sm:$0xf]
  %v44 = vld [vmem:[%s0 + $0x50] sm:$0xf]
  %v45 = vld [vmem:[%s0 + $0x54] sm:$0xf]
  %v46 = vld [vmem:[%s0 + $0x58] sm:$0xf]
  %v47 = vld [vmem:[%s0 + $0x5c] sm:$0xf]
  %v48 = vld [vmem:[%s0 + $0x60] sm:$0xf]
  %v49 = vld [vmem:[%s0 + $0x64] sm:$0xf]
  %v50 = vld [vmem:[%s0 + $0x68] sm:$0xf]
  %v51 = vld [vmem:[%s0 + $0x6c] sm:$0xf]
  %v52 = vld [vmem:[%s0 + $0x70] sm:$0xf]
  %v53 = vld [vmem:[%s0 + $0x74] sm:$0xf]
  %v54 = vld [vmem:[%s0 + $0x78] sm:$0xf]
  %v55 = vld [vmem:[%s0 + $0x7c] sm:$0xf]
  %v56 = vld [vmem:[%s0 + $0x80] sm:$0xf]
  %v57 = vld [vmem:[%s0 + $0x84] sm:$0xf]
  %v58 = vld [vmem:[%s0 + $0x88] sm:$0xf]
  %v59 = vld [vmem:[%s0 + $0x8c] sm:$0xf]
  %v60 = vld [vmem:[%s0 + $0x90] sm:$0xf]
  %v61 = vld [vmem:[%s0 + $0x94] sm:$0xf]
  %v62 = vld [vmem:[%s0 + $0x98] sm:$0xf]
  %v63 = vld [vmem:[%s0 + $0x9c] sm:$0xf]
  %v64 = vld [vmem:[%s0 + $0xa0] sm:$0xf]
  %v65 = vld [vmem:[%s0 + $0xa4] sm:$0xf]
  %v66 = vld [vmem:[%s0 + $0xa8] sm:$0xf]
  %v67 = vld [vmem:[%s0 + $0xac] sm:$0xf]
  %v68 = vld [vmem:[%s0 + $0xb0] sm:$0xf]
  %v69 = vld [vmem:[%s0 + $0xb4] sm:$0xf]
  %v70 = vld [vmem:[%s0 + $0xb8] sm:$0xf]
  %v71 = vld [vmem:[%s0 + $0xbc] sm:$0xf]
  %v72 = vld [vmem:[%s0 + $0xc0] sm:$0xf]
  %v73 = vld [vmem:[%s0 + $0xc4] sm:$0xf]
  %v74 = vld [vmem:[%s0 + $0xc8] sm:$0xf]
  %v75 = vld [vmem:[%s0 + $0xcc] sm:$0xf]
  %v76 = vld [vmem:[%s0 + $0xd0] sm:$0xf]
  %v77 = vld [vmem:[%s0 + $0xd4] sm:$0xf]
  %v78 = vld [vmem:[%s0 + $0xd8] sm:$0xf]
  %v79 = vld [vmem:[%s0 + $0xdc] sm:$0xf]
  %v80 = vld [vmem:[%s0 + $0xe0] sm:$0xf]
  %v81 = vld [vmem:[%s0 + $0xe4] sm:$0xf]
  %v82 = vld [vmem:[%s0 + $0xe8] sm:$0xf]
  %v83 = vld [vmem:[%s0 + $0xec] sm:$0xf]
  %v84 = vld [vmem:[%s0 + $0xf0] sm:$0xf]
  %v85 = vld [vmem:[%s0 + $0xf4] sm:$0xf]
  %v86 = vld [vmem:[%s0 + $0xf8] sm:$0xf]
  %v87 = vld [vmem:[%s0 + $0xfc] sm:$0xf]
  %v88 = vld [vmem:[%s1] sm:$0x3]
  %v153 = vunpack.c.l.b16 %v24
  %v154 = vunpack.c.l.b16 %v25
  %v155 = vunpack.c.l.b16 %v26
  %v156 = vunpack.c.l.b16 %v27
  %v157 = vunpack.c.l.b16 %v28
  %v158 = vunpack.c.l.b16 %v29
  %v159 = vunpack.c.l.b16 %v30
  %v160 = vunpack.c.l.b16 %v31
  %v161 = vunpack.c.l.b16 %v32
  %v162 = vunpack.c.l.b16 %v33
  %v163 = vunpack.c.l.b16 %v34
  %v164 = vunpack.c.l.b16 %v35
  %v165 = vunpack.c.l.b16 %v36
  %v166 = vunpack.c.l.b16 %v37
  %v167 = vunpack.c.l.b16 %v38
  %v168 = vunpack.c.l.b16 %v39
  %v169 = vunpack.c.l.b16 %v40
  %v170 = vunpack.c.l.b16 %v41
  %v171 = vunpack.c.l.b16 %v42
  %v172 = vunpack.c.l.b16 %v43
  %v173 = vunpack.c.l.b16 %v44
  %v174 = vunpack.c.l.b16 %v45
  %v175 = vunpack.c.l.b16 %v46
  %v176 = vunpack.c.l.b16 %v47
  %v177 = vunpack.c.l.b16 %v48
  %v178 = vunpack.c.l.b16 %v49
  %v179 = vunpack.c.l.b16 %v50
  %v180 = vunpack.c.l.b16 %v51
  %v181 = vunpack.c.l.b16 %v52
  %v182 = vunpack.c.l.b16 %v53
  %v183 = vunpack.c.l.b16 %v54
  %v184 = vunpack.c.l.b16 %v55
  %v185 = vunpack.c.l.b16 %v56
  %v186 = vunpack.c.l.b16 %v57
  %v187 = vunpack.c.l.b16 %v58
  %v188 = vunpack.c.l.b16 %v59
  %v189 = vunpack.c.l.b16 %v60
  %v190 = vunpack.c.l.b16 %v61
  %v191 = vunpack.c.l.b16 %v62
  %v192 = vunpack.c.l.b16 %v63
  %v193 = vunpack.c.l.b16 %v64
  %v194 = vunpack.c.l.b16 %v65
  %v195 = vunpack.c.l.b16 %v66
  %v196 = vunpack.c.l.b16 %v67
  %v197 = vunpack.c.l.b16 %v68
  %v198 = vunpack.c.l.b16 %v69
  %v199 = vunpack.c.l.b16 %v70
  %v200 = vunpack.c.l.b16 %v71
  %v201 = vunpack.c.l.b16 %v72
  %v202 = vunpack.c.l.b16 %v73
  %v203 = vunpack.c.l.b16 %v74
  %v204 = vunpack.c.l.b16 %v75
  %v205 = vunpack.c.l.b16 %v76
  %v206 = vunpack.c.l.b16 %v77
  %v207 = vunpack.c.l.b16 %v78
  %v208 = vunpack.c.l.b16 %v79
  %v209 = vunpack.c.l.b16 %v80
  %v210 = vunpack.c.l.b16 %v81
  %v211 = vunpack.c.l.b16 %v82
  %v212 = vunpack.c.l.b16 %v83
  %v213 = vunpack.c.l.b16 %v84
  %v214 = vunpack.c.l.b16 %v85
  %v215 = vunpack.c.l.b16 %v86
  %v216 = vunpack.c.l.b16 %v87
  %v217 = vpack.c.b16 %v154, %v153
  %v218 = vpack.c.b16 %v156, %v155
  %v219 = vpack.c.b16 %v158, %v157
  %v220 = vpack.c.b16 %v160, %v159
  %v221 = vpack.c.b16 %v162, %v161
  %v222 = vpack.c.b16 %v164, %v163
  %v223 = vpack.c.b16 %v166, %v165
  %v224 = vpack.c.b16 %v168, %v167
  %v225 = vpack.c.b16 %v170, %v169
  %v226 = vpack.c.b16 %v172, %v171
  %v227 = vpack.c.b16 %v174, %v173
  %v228 = vpack.c.b16 %v176, %v175
  %v229 = vpack.c.b16 %v178, %v177
  %v230 = vpack.c.b16 %v180, %v179
  %v231 = vpack.c.b16 %v182, %v181
  %v232 = vpack.c.b16 %v184, %v183
  %v233 = vpack.c.b16 %v186, %v185
  %v234 = vpack.c.b16 %v188, %v187
  %v235 = vpack.c.b16 %v190, %v189
  %v236 = vpack.c.b16 %v192, %v191
  %v237 = vpack.c.b16 %v194, %v193
  %v238 = vpack.c.b16 %v196, %v195
  %v239 = vpack.c.b16 %v198, %v197
  %v240 = vpack.c.b16 %v200, %v199
  %v241 = vpack.c.b16 %v202, %v201
  %v242 = vpack.c.b16 %v204, %v203
  %v243 = vpack.c.b16 %v206, %v205
  %v244 = vpack.c.b16 %v208, %v207
  %v245 = vpack.c.b16 %v210, %v209
  %v246 = vpack.c.b16 %v212, %v211
  %v247 = vpack.c.b16 %v214, %v213
  %v248 = vpack.c.b16 %v216, %v215
  %vm249 = vcmask 31744
  %v251 = vsel %vm249, %v217, 0
  %v254 = vsel %vm249, %v218, 0
  %v257 = vsel %vm249, %v219, 0
  %v260 = vsel %vm249, %v220, 0
  %v263 = vsel %vm249, %v221, 0
  %v266 = vsel %vm249, %v222, 0
  %v269 = vsel %vm249, %v223, 0
  %v272 = vsel %vm249, %v224, 0
  %v275 = vsel %vm249, %v225, 0
  %v278 = vsel %vm249, %v226, 0
  %v281 = vsel %vm249, %v227, 0
  %v284 = vsel %vm249, %v228, 0
  %v287 = vsel %vm249, %v229, 0
  %v290 = vsel %vm249, %v230, 0
  %v293 = vsel %vm249, %v231, 0
  %v296 = vsel %vm249, %v232, 0
  %v299 = vsel %vm249, %v233, 0
  %v302 = vsel %vm249, %v234, 0
  %v305 = vsel %vm249, %v235, 0
  %v308 = vsel %vm249, %v236, 0
  %v311 = vsel %vm249, %v237, 0
  %v314 = vsel %vm249, %v238, 0
  %v317 = vsel %vm249, %v239, 0
  %v320 = vsel %vm249, %v240, 0
  %v323 = vsel %vm249, %v241, 0
  %v326 = vsel %vm249, %v242, 0
  %v329 = vsel %vm249, %v243, 0
  %v332 = vsel %vm249, %v244, 0
  %v335 = vsel %vm249, %v245, 0
  %v338 = vsel %vm249, %v246, 0
  %v341 = vsel %vm249, %v247, 0
  %v344 = vsel %vm249, %v248, 0
  %vm346 = vcmask 1041408
  %v348 = vsel %vm346, %v88, 0
  %350 = vmatprep.subr.bf16.mxu0 0
  %351 = vmatpush1.bf16.msra.mxu0 0
  %352 = vmatprep.subr.bf16.mxu0 0
  %353 = vmatpush1.bf16.msra.mxu0 0
  %354 = vmatprep.subr.bf16.mxu0 0
  %355 = vmatpush1.bf16.msra.mxu0 0
  %356 = vmatprep.subr.bf16.mxu0 0
  %357 = vmatpush1.bf16.msra.mxu0 0
  %358 = vmatprep.subr.bf16.mxu0 0
  %359 = vmatpush1.bf16.msra.mxu0 0
  %360 = vmatprep.subr.bf16.mxu0 0
  %361 = vmatpush1.bf16.msra.mxu0 0
  %362 = vmatprep.subr.bf16.mxu0 0
  %363 = vmatpush1.bf16.msra.mxu0 0
  %364 = vmatprep.subr.bf16.mxu0 0
  %365 = vmatpush1.bf16.msra.mxu0 %v348
  %366 = vmatprep.subr.bf16.mxu0 0
  %367 = vmatpush2.bf16.msra.mxu0 0
  %368 = vmatprep.subr.bf16.mxu0 0
  %369 = vmatpush2.bf16.msra.mxu0 0
  %370 = vmatprep.subr.bf16.mxu0 0
  %371 = vmatpush2.bf16.msra.mxu0 0
  %372 = vmatprep.subr.bf16.mxu0 0
  %373 = vmatpush2.bf16.msra.mxu0 0
  %374 = vmatprep.subr.bf16.mxu0 0
  %375 = vmatpush2.bf16.msra.mxu0 0
  %376 = vmatprep.subr.bf16.mxu0 0
  %377 = vmatpush2.bf16.msra.mxu0 0
  %378 = vmatprep.subr.bf16.mxu0 0
  %379 = vmatpush2.bf16.msra.mxu0 0
  %380 = vmatprep.subr.bf16.mxu0 0
  %381 = vmatpush2.bf16.msra.mxu0 0
  %382 = vmatprep.mubr.bf16.mxu0 0
  %383 = vmatmul.mubr.bf16.gmra.mxu0 %v251
  %v384 = vpop.f32.mrf.mxu0
  %v385 = vadd.f32 0.0, %v384
  %v386 = vpop.f32.mrf.mxu0
  %v387 = vpop.f32.mrf.mxu0
  %v388 = vadd.f32 0.0, %v387
  %v389 = vpop.f32.mrf.mxu0
  %390 = vmatprep.mubr.bf16.mxu0 0
  %391 = vmatmul.mubr.bf16.gmra.mxu0 %v254
  %v392 = vpop.f32.mrf.mxu0
  %v393 = vadd.f32 0.0, %v392
  %v394 = vpop.f32.mrf.mxu0
  %v395 = vpop.f32.mrf.mxu0
  %v396 = vadd.f32 0.0, %v395
  %v397 = vpop.f32.mrf.mxu0
  %398 = vmatprep.mubr.bf16.mxu0 0
  %399 = vmatmul.mubr.bf16.gmra.mxu0 %v257
  %v400 = vpop.f32.mrf.mxu0
  %v401 = vadd.f32 0.0, %v400
  %v402 = vpop.f32.mrf.mxu0
  %v403 = vpop.f32.mrf.mxu0
  %v404 = vadd.f32 0.0, %v403
  %v405 = vpop.f32.mrf.mxu0
  %406 = vmatprep.mubr.bf16.mxu0 0
  %407 = vmatmul.mubr.bf16.gmra.mxu0 %v260
  %v408 = vpop.f32.mrf.mxu0
  %v409 = vadd.f32 0.0, %v408
  %v410 = vpop.f32.mrf.mxu0
  %v411 = vpop.f32.mrf.mxu0
  %v412 = vadd.f32 0.0, %v411
  %v413 = vpop.f32.mrf.mxu0
  %414 = vmatprep.mubr.bf16.mxu0 0
  %415 = vmatmul.mubr.bf16.gmra.mxu0 %v263
  %v416 = vpop.f32.mrf.mxu0
  %v417 = vadd.f32 0.0, %v416
  %v418 = vpop.f32.mrf.mxu0
  %v419 = vpop.f32.mrf.mxu0
  %v420 = vadd.f32 0.0, %v419
  %v421 = vpop.f32.mrf.mxu0
  %422 = vmatprep.mubr.bf16.mxu0 0
  %423 = vmatmul.mubr.bf16.gmra.mxu0 %v266
  %v424 = vpop.f32.mrf.mxu0
  %v425 = vadd.f32 0.0, %v424
  %v426 = vpop.f32.mrf.mxu0
  %v427 = vpop.f32.mrf.mxu0
  %v428 = vadd.f32 0.0, %v427
  %v429 = vpop.f32.mrf.mxu0
  %430 = vmatprep.mubr.bf16.mxu0 0
  %431 = vmatmul.mubr.bf16.gmra.mxu0 %v269
  %v432 = vpop.f32.mrf.mxu0
  %v433 = vadd.f32 0.0, %v432
  %v434 = vpop.f32.mrf.mxu0
  %v435 = vpop.f32.mrf.mxu0
  %v436 = vadd.f32 0.0, %v435
  %v437 = vpop.f32.mrf.mxu0
  %438 = vmatprep.mubr.bf16.mxu0 0
  %439 = vmatmul.mubr.bf16.gmra.mxu0 %v272
  %v440 = vpop.f32.mrf.mxu0
  %v441 = vadd.f32 0.0, %v440
  %v442 = vpop.f32.mrf.mxu0
  %v443 = vpop.f32.mrf.mxu0
  %v444 = vadd.f32 0.0, %v443
  %v445 = vpop.f32.mrf.mxu0
  %446 = vmatprep.mubr.bf16.mxu0 0
  %447 = vmatmul.mubr.bf16.gmra.mxu0 %v275
  %v448 = vpop.f32.mrf.mxu0
  %v449 = vadd.f32 0.0, %v448
  %v450 = vpop.f32.mrf.mxu0
  %v451 = vpop.f32.mrf.mxu0
  %v452 = vadd.f32 0.0, %v451
  %v453 = vpop.f32.mrf.mxu0
  %454 = vmatprep.mubr.bf16.mxu0 0
  %455 = vmatmul.mubr.bf16.gmra.mxu0 %v278
  %v456 = vpop.f32.mrf.mxu0
  %v457 = vadd.f32 0.0, %v456
  %v458 = vpop.f32.mrf.mxu0
  %v459 = vpop.f32.mrf.mxu0
  %v460 = vadd.f32 0.0, %v459
  %v461 = vpop.f32.mrf.mxu0
  %462 = vmatprep.mubr.bf16.mxu0 0
  %463 = vmatmul.mubr.bf16.gmra.mxu0 %v281
  %v464 = vpop.f32.mrf.mxu0
  %v465 = vadd.f32 0.0, %v464
  %v466 = vpop.f32.mrf.mxu0
  %v467 = vpop.f32.mrf.mxu0
  %v468 = vadd.f32 0.0, %v467
  %v469 = vpop.f32.mrf.mxu0
  %470 = vmatprep.mubr.bf16.mxu0 0
  %471 = vmatmul.mubr.bf16.gmra.mxu0 %v284
  %v472 = vpop.f32.mrf.mxu0
  %v473 = vadd.f32 0.0, %v472
  %v474 = vpop.f32.mrf.mxu0
  %v475 = vpop.f32.mrf.mxu0
  %v476 = vadd.f32 0.0, %v475
  %v477 = vpop.f32.mrf.mxu0
  %478 = vmatprep.mubr.bf16.mxu0 0
  %479 = vmatmul.mubr.bf16.gmra.mxu0 %v287
  %v480 = vpop.f32.mrf.mxu0
  %v481 = vadd.f32 0.0, %v480
  %v482 = vpop.f32.mrf.mxu0
  %v483 = vpop.f32.mrf.mxu0
  %v484 = vadd.f32 0.0, %v483
  %v485 = vpop.f32.mrf.mxu0
  %486 = vmatprep.mubr.bf16.mxu0 0
  %487 = vmatmul.mubr.bf16.gmra.mxu0 %v290
  %v488 = vpop.f32.mrf.mxu0
  %v489 = vadd.f32 0.0, %v488
  %v490 = vpop.f32.mrf.mxu0
  %v491 = vpop.f32.mrf.mxu0
  %v492 = vadd.f32 0.0, %v491
  %v493 = vpop.f32.mrf.mxu0
  %494 = vmatprep.mubr.bf16.mxu0 0
  %495 = vmatmul.mubr.bf16.gmra.mxu0 %v293
  %v496 = vpop.f32.mrf.mxu0
  %v497 = vadd.f32 0.0, %v496
  %v498 = vpop.f32.mrf.mxu0
  %v499 = vpop.f32.mrf.mxu0
  %v500 = vadd.f32 0.0, %v499
  %v501 = vpop.f32.mrf.mxu0
  %502 = vmatprep.mubr.bf16.mxu0 0
  %503 = vmatmul.mubr.bf16.gmra.mxu0 %v296
  %v504 = vpop.f32.mrf.mxu0
  %v505 = vadd.f32 0.0, %v504
  %v506 = vpop.f32.mrf.mxu0
  %v507 = vpop.f32.mrf.mxu0
  %v508 = vadd.f32 0.0, %v507
  %v509 = vpop.f32.mrf.mxu0
  %510 = vmatprep.mubr.bf16.mxu0 0
  %511 = vmatmul.mubr.bf16.gmra.mxu0 %v299
  %v512 = vpop.f32.mrf.mxu0
  %v513 = vadd.f32 0.0, %v512
  %v514 = vpop.f32.mrf.mxu0
  %v515 = vpop.f32.mrf.mxu0
  %v516 = vadd.f32 0.0, %v515
  %v517 = vpop.f32.mrf.mxu0
  %518 = vmatprep.mubr.bf16.mxu0 0
  %519 = vmatmul.mubr.bf16.gmra.mxu0 %v302
  %v520 = vpop.f32.mrf.mxu0
  %v521 = vadd.f32 0.0, %v520
  %v522 = vpop.f32.mrf.mxu0
  %v523 = vpop.f32.mrf.mxu0
  %v524 = vadd.f32 0.0, %v523
  %v525 = vpop.f32.mrf.mxu0
  %526 = vmatprep.mubr.bf16.mxu0 0
  %527 = vmatmul.mubr.bf16.gmra.mxu0 %v305
  %v528 = vpop.f32.mrf.mxu0
  %v529 = vadd.f32 0.0, %v528
  %v530 = vpop.f32.mrf.mxu0
  %v531 = vpop.f32.mrf.mxu0
  %v532 = vadd.f32 0.0, %v531
  %v533 = vpop.f32.mrf.mxu0
  %534 = vmatprep.mubr.bf16.mxu0 0
  %535 = vmatmul.mubr.bf16.gmra.mxu0 %v308
  %v536 = vpop.f32.mrf.mxu0
  %v537 = vadd.f32 0.0, %v536
  %v538 = vpop.f32.mrf.mxu0
  %v539 = vpop.f32.mrf.mxu0
  %v540 = vadd.f32 0.0, %v539
  %v541 = vpop.f32.mrf.mxu0
  %542 = vmatprep.mubr.bf16.mxu0 0
  %543 = vmatmul.mubr.bf16.gmra.mxu0 %v311
  %v544 = vpop.f32.mrf.mxu0
  %v545 = vadd.f32 0.0, %v544
  %v546 = vpop.f32.mrf.mxu0
  %v547 = vpop.f32.mrf.mxu0
  %v548 = vadd.f32 0.0, %v547
  %v549 = vpop.f32.mrf.mxu0
  %550 = vmatprep.mubr.bf16.mxu0 0
  %551 = vmatmul.mubr.bf16.gmra.mxu0 %v314
  %v552 = vpop.f32.mrf.mxu0
  %v553 = vadd.f32 0.0, %v552
  %v554 = vpop.f32.mrf.mxu0
  %v555 = vpop.f32.mrf.mxu0
  %v556 = vadd.f32 0.0, %v555
  %v557 = vpop.f32.mrf.mxu0
  %558 = vmatprep.mubr.bf16.mxu0 0
  %559 = vmatmul.mubr.bf16.gmra.mxu0 %v317
  %v560 = vpop.f32.mrf.mxu0
  %v561 = vadd.f32 0.0, %v560
  %v562 = vpop.f32.mrf.mxu0
  %v563 = vpop.f32.mrf.mxu0
  %v564 = vadd.f32 0.0, %v563
  %v565 = vpop.f32.mrf.mxu0
  %566 = vmatprep.mubr.bf16.mxu0 0
  %567 = vmatmul.mubr.bf16.gmra.mxu0 %v320
  %v568 = vpop.f32.mrf.mxu0
  %v569 = vadd.f32 0.0, %v568
  %v570 = vpop.f32.mrf.mxu0
  %v571 = vpop.f32.mrf.mxu0
  %v572 = vadd.f32 0.0, %v571
  %v573 = vpop.f32.mrf.mxu0
  %574 = vmatprep.mubr.bf16.mxu0 0
  %575 = vmatmul.mubr.bf16.gmra.mxu0 %v323
  %v576 = vpop.f32.mrf.mxu0
  %v577 = vadd.f32 0.0, %v576
  %v578 = vpop.f32.mrf.mxu0
  %v579 = vpop.f32.mrf.mxu0
  %v580 = vadd.f32 0.0, %v579
  %v581 = vpop.f32.mrf.mxu0
  %582 = vmatprep.mubr.bf16.mxu0 0
  %583 = vmatmul.mubr.bf16.gmra.mxu0 %v326
  %v584 = vpop.f32.mrf.mxu0
  %v585 = vadd.f32 0.0, %v584
  %v586 = vpop.f32.mrf.mxu0
  %v587 = vpop.f32.mrf.mxu0
  %v588 = vadd.f32 0.0, %v587
  %v589 = vpop.f32.mrf.mxu0
  %590 = vmatprep.mubr.bf16.mxu0 0
  %591 = vmatmul.mubr.bf16.gmra.mxu0 %v329
  %v592 = vpop.f32.mrf.mxu0
  %v593 = vadd.f32 0.0, %v592
  %v594 = vpop.f32.mrf.mxu0
  %v595 = vpop.f32.mrf.mxu0
  %v596 = vadd.f32 0.0, %v595
  %v597 = vpop.f32.mrf.mxu0
  %598 = vmatprep.mubr.bf16.mxu0 0
  %599 = vmatmul.mubr.bf16.gmra.mxu0 %v332
  %v600 = vpop.f32.mrf.mxu0
  %v601 = vadd.f32 0.0, %v600
  %v602 = vpop.f32.mrf.mxu0
  %v603 = vpop.f32.mrf.mxu0
  %v604 = vadd.f32 0.0, %v603
  %v605 = vpop.f32.mrf.mxu0
  %606 = vmatprep.mubr.bf16.mxu0 0
  %607 = vmatmul.mubr.bf16.gmra.mxu0 %v335
  %v608 = vpop.f32.mrf.mxu0
  %v609 = vadd.f32 0.0, %v608
  %v610 = vpop.f32.mrf.mxu0
  %v611 = vpop.f32.mrf.mxu0
  %v612 = vadd.f32 0.0, %v611
  %v613 = vpop.f32.mrf.mxu0
  %614 = vmatprep.mubr.bf16.mxu0 0
  %615 = vmatmul.mubr.bf16.gmra.mxu0 %v338
  %v616 = vpop.f32.mrf.mxu0
  %v617 = vadd.f32 0.0, %v616
  %v618 = vpop.f32.mrf.mxu0
  %v619 = vpop.f32.mrf.mxu0
  %v620 = vadd.f32 0.0, %v619
  %v621 = vpop.f32.mrf.mxu0
  %622 = vmatprep.mubr.bf16.mxu0 0
  %623 = vmatmul.mubr.bf16.gmra.mxu0 %v341
  %v624 = vpop.f32.mrf.mxu0
  %v625 = vadd.f32 0.0, %v624
  %v626 = vpop.f32.mrf.mxu0
  %v627 = vpop.f32.mrf.mxu0
  %v628 = vadd.f32 0.0, %v627
  %v629 = vpop.f32.mrf.mxu0
  %630 = vmatprep.mubr.bf16.mxu0 0
  %631 = vmatmul.mubr.bf16.gmra.mxu0 %v344
  %v632 = vpop.f32.mrf.mxu0
  %v633 = vadd.f32 0.0, %v632
  %v634 = vpop.f32.mrf.mxu0
  %v635 = vpop.f32.mrf.mxu0
  %v636 = vadd.f32 0.0, %v635
  %v637 = vpop.f32.mrf.mxu0
  %638 = vdwg.mxu0
  %v639 = vld [vmem:[%s5] sm:$0x1]
  %v640 = vld [vmem:[%s5 + $0x1] sm:$0x1]
  %v641 = vsel %vm249, %v385, 0.0
  %v642 = vsel %vm249, %v388, 0.0
  %v643 = vadd.f32 %v641, %v642
  %v644 = vsel %vm249, %v393, 0.0
  %v645 = vadd.f32 %v643, %v644
  %v646 = vsel %vm249, %v396, 0.0
  %v647 = vadd.f32 %v645, %v646
  %v648 = vsel %vm249, %v401, 0.0
  %v649 = vadd.f32 %v647, %v648
  %v650 = vsel %vm249, %v404, 0.0
  %v651 = vadd.f32 %v649, %v650
  %v652 = vsel %vm249, %v409, 0.0
  %v653 = vadd.f32 %v651, %v652
  %v654 = vsel %vm249, %v412, 0.0
  %v655 = vadd.f32 %v653, %v654
  %v656 = vsel %vm249, %v417, 0.0
  %v657 = vadd.f32 %v655, %v656
  %v658 = vsel %vm249, %v420, 0.0
  %v659 = vadd.f32 %v657, %v658
  %v660 = vsel %vm249, %v425, 0.0
  %v661 = vadd.f32 %v659, %v660
  %v662 = vsel %vm249, %v428, 0.0
  %v663 = vadd.f32 %v661, %v662
  %v664 = vsel %vm249, %v433, 0.0
  %v665 = vadd.f32 %v663, %v664
  %v666 = vsel %vm249, %v436, 0.0
  %v667 = vadd.f32 %v665, %v666
  %v668 = vsel %vm249, %v441, 0.0
  %v669 = vadd.f32 %v667, %v668
  %v670 = vsel %vm249, %v444, 0.0
  %v671 = vadd.f32 %v669, %v670
  %v672 = vsel %vm249, %v449, 0.0
  %v673 = vadd.f32 %v671, %v672
  %v674 = vsel %vm249, %v452, 0.0
  %v675 = vadd.f32 %v673, %v674
  %v676 = vsel %vm249, %v457, 0.0
  %v677 = vadd.f32 %v675, %v676
  %v678 = vsel %vm249, %v460, 0.0
  %v679 = vadd.f32 %v677, %v678
  %v680 = vsel %vm249, %v465, 0.0
  %v681 = vadd.f32 %v679, %v680
  %v682 = vsel %vm249, %v468, 0.0
  %v683 = vadd.f32 %v681, %v682
  %v684 = vsel %vm249, %v473, 0.0
  %v685 = vadd.f32 %v683, %v684
  %v686 = vsel %vm249, %v476, 0.0
  %v687 = vadd.f32 %v685, %v686
  %v688 = vsel %vm249, %v481, 0.0
  %v689 = vadd.f32 %v687, %v688
  %v690 = vsel %vm249, %v484, 0.0
  %v691 = vadd.f32 %v689, %v690
  %v692 = vsel %vm249, %v489, 0.0
  %v693 = vadd.f32 %v691, %v692
  %v694 = vsel %vm249, %v492, 0.0
  %v695 = vadd.f32 %v693, %v694
  %v696 = vsel %vm249, %v497, 0.0
  %v697 = vadd.f32 %v695, %v696
  %v698 = vsel %vm249, %v500, 0.0
  %v699 = vadd.f32 %v697, %v698
  %v700 = vsel %vm249, %v505, 0.0
  %v701 = vadd.f32 %v699, %v700
  %v702 = vsel %vm249, %v508, 0.0
  %v703 = vadd.f32 %v701, %v702
  %v704 = vsel %vm249, %v513, 0.0
  %v705 = vadd.f32 %v703, %v704
  %v706 = vsel %vm249, %v516, 0.0
  %v707 = vadd.f32 %v705, %v706
  %v708 = vsel %vm249, %v521, 0.0
  %v709 = vadd.f32 %v707, %v708
  %v710 = vsel %vm249, %v524, 0.0
  %v711 = vadd.f32 %v709, %v710
  %v712 = vsel %vm249, %v529, 0.0
  %v713 = vadd.f32 %v711, %v712
  %v714 = vsel %vm249, %v532, 0.0
  %v715 = vadd.f32 %v713, %v714
  %v716 = vsel %vm249, %v537, 0.0
  %v717 = vadd.f32 %v715, %v716
  %v718 = vsel %vm249, %v540, 0.0
  %v719 = vadd.f32 %v717, %v718
  %v720 = vsel %vm249, %v545, 0.0
  %v721 = vadd.f32 %v719, %v720
  %v722 = vsel %vm249, %v548, 0.0
  %v723 = vadd.f32 %v721, %v722
  %v724 = vsel %vm249, %v553, 0.0
  %v725 = vadd.f32 %v723, %v724
  %v726 = vsel %vm249, %v556, 0.0
  %v727 = vadd.f32 %v725, %v726
  %v728 = vsel %vm249, %v561, 0.0
  %v729 = vadd.f32 %v727, %v728
  %v730 = vsel %vm249, %v564, 0.0
  %v731 = vadd.f32 %v729, %v730
  %v732 = vsel %vm249, %v569, 0.0
  %v733 = vadd.f32 %v731, %v732
  %v734 = vsel %vm249, %v572, 0.0
  %v735 = vadd.f32 %v733, %v734
  %v736 = vsel %vm249, %v577, 0.0
  %v737 = vadd.f32 %v735, %v736
  %v738 = vsel %vm249, %v580, 0.0
  %v739 = vadd.f32 %v737, %v738
  %v740 = vsel %vm249, %v585, 0.0
  %v741 = vadd.f32 %v739, %v740
  %v742 = vsel %vm249, %v588, 0.0
  %v743 = vadd.f32 %v741, %v742
  %v744 = vsel %vm249, %v593, 0.0
  %v745 = vadd.f32 %v743, %v744
  %v746 = vsel %vm249, %v596, 0.0
  %v747 = vadd.f32 %v745, %v746
  %v748 = vsel %vm249, %v601, 0.0
  %v749 = vadd.f32 %v747, %v748
  %v750 = vsel %vm249, %v604, 0.0
  %v751 = vadd.f32 %v749, %v750
  %v752 = vsel %vm249, %v609, 0.0
  %v753 = vadd.f32 %v751, %v752
  %v754 = vsel %vm249, %v612, 0.0
  %v755 = vadd.f32 %v753, %v754
  %v756 = vsel %vm249, %v617, 0.0
  %v757 = vadd.f32 %v755, %v756
  %v758 = vsel %vm249, %v620, 0.0
  %v759 = vadd.f32 %v757, %v758
  %v760 = vsel %vm249, %v625, 0.0
  %v761 = vadd.f32 %v759, %v760
  %v762 = vsel %vm249, %v628, 0.0
  %v763 = vadd.f32 %v761, %v762
  %v764 = vsel %vm249, %v633, 0.0
  %v765 = vadd.f32 %v763, %v764
  %v766 = vsel %vm249, %v636, 0.0
  %v767 = vadd.f32 %v765, %v766
  %v768 = vrot.slane %v767, 4
  %v769 = vadd.f32 %v767, %v768
  %v770 = vrot.slane %v769, 2
  %v771 = vadd.f32 %v769, %v770
  %v772 = vrot.slane %v771, 1
  %v773 = vadd.f32 %v771, %v772
  %v774 = vrcp.pop 512.0
  %v775 = vmul.f32 %v773, %v774
  %v776 = vmul.f32 %v385, %v385
  %v777 = vmul.f32 %v388, %v388
  %v778 = vmul.f32 %v393, %v393
  %v779 = vmul.f32 %v396, %v396
  %v780 = vmul.f32 %v401, %v401
  %v781 = vmul.f32 %v404, %v404
  %v782 = vmul.f32 %v409, %v409
  %v783 = vmul.f32 %v412, %v412
  %v784 = vmul.f32 %v417, %v417
  %v785 = vmul.f32 %v420, %v420
  %v786 = vmul.f32 %v425, %v425
  %v787 = vmul.f32 %v428, %v428
  %v788 = vmul.f32 %v433, %v433
  %v789 = vmul.f32 %v436, %v436
  %v790 = vmul.f32 %v441, %v441
  %v791 = vmul.f32 %v444, %v444
  %v792 = vmul.f32 %v449, %v449
  %v793 = vmul.f32 %v452, %v452
  %v794 = vmul.f32 %v457, %v457
  %v795 = vmul.f32 %v460, %v460
  %v796 = vmul.f32 %v465, %v465
  %v797 = vmul.f32 %v468, %v468
  %v798 = vmul.f32 %v473, %v473
  %v799 = vmul.f32 %v476, %v476
  %v800 = vmul.f32 %v481, %v481
  %v801 = vmul.f32 %v484, %v484
  %v802 = vmul.f32 %v489, %v489
  %v803 = vmul.f32 %v492, %v492
  %v804 = vmul.f32 %v497, %v497
  %v805 = vmul.f32 %v500, %v500
  %v806 = vmul.f32 %v505, %v505
  %v807 = vmul.f32 %v508, %v508
  %v808 = vmul.f32 %v513, %v513
  %v809 = vmul.f32 %v516, %v516
  %v810 = vmul.f32 %v521, %v521
  %v811 = vmul.f32 %v524, %v524
  %v812 = vmul.f32 %v529, %v529
  %v813 = vmul.f32 %v532, %v532
  %v814 = vmul.f32 %v537, %v537
  %v815 = vmul.f32 %v540, %v540
  %v816 = vmul.f32 %v545, %v545
  %v817 = vmul.f32 %v548, %v548
  %v818 = vmul.f32 %v553, %v553
  %v819 = vmul.f32 %v556, %v556
  %v820 = vmul.f32 %v561, %v561
  %v821 = vmul.f32 %v564, %v564
  %v822 = vmul.f32 %v569, %v569
  %v823 = vmul.f32 %v572, %v572
  %v824 = vmul.f32 %v577, %v577
  %v825 = vmul.f32 %v580, %v580
  %v826 = vmul.f32 %v585, %v585
  %v827 = vmul.f32 %v588, %v588
  %v828 = vmul.f32 %v593, %v593
  %v829 = vmul.f32 %v596, %v596
  %v830 = vmul.f32 %v601, %v601
  %v831 = vmul.f32 %v604, %v604
  %v832 = vmul.f32 %v609, %v609
  %v833 = vmul.f32 %v612, %v612
  %v834 = vmul.f32 %v617, %v617
  %v835 = vmul.f32 %v620, %v620
  %v836 = vmul.f32 %v625, %v625
  %v837 = vmul.f32 %v628, %v628
  %v838 = vmul.f32 %v633, %v633
  %v839 = vmul.f32 %v636, %v636
  %v840 = vsel %vm249, %v776, 0.0
  %v841 = vsel %vm249, %v777, 0.0
  %v842 = vadd.f32 %v840, %v841
  %v843 = vsel %vm249, %v778, 0.0
  %v844 = vadd.f32 %v842, %v843
  %v845 = vsel %vm249, %v779, 0.0
  %v846 = vadd.f32 %v844, %v845
  %v847 = vsel %vm249, %v780, 0.0
  %v848 = vadd.f32 %v846, %v847
  %v849 = vsel %vm249, %v781, 0.0
  %v850 = vadd.f32 %v848, %v849
  %v851 = vsel %vm249, %v782, 0.0
  %v852 = vadd.f32 %v850, %v851
  %v853 = vsel %vm249, %v783, 0.0
  %v854 = vadd.f32 %v852, %v853
  %v855 = vsel %vm249, %v784, 0.0
  %v856 = vadd.f32 %v854, %v855
  %v857 = vsel %vm249, %v785, 0.0
  %v858 = vadd.f32 %v856, %v857
  %v859 = vsel %vm249, %v786, 0.0
  %v860 = vadd.f32 %v858, %v859
  %v861 = vsel %vm249, %v787, 0.0
  %v862 = vadd.f32 %v860, %v861
  %v863 = vsel %vm249, %v788, 0.0
  %v864 = vadd.f32 %v862, %v863
  %v865 = vsel %vm249, %v789, 0.0
  %v866 = vadd.f32 %v864, %v865
  %v867 = vsel %vm249, %v790, 0.0
  %v868 = vadd.f32 %v866, %v867
  %v869 = vsel %vm249, %v791, 0.0
  %v870 = vadd.f32 %v868, %v869
  %v871 = vsel %vm249, %v792, 0.0
  %v872 = vadd.f32 %v870, %v871
  %v873 = vsel %vm249, %v793, 0.0
  %v874 = vadd.f32 %v872, %v873
  %v875 = vsel %vm249, %v794, 0.0
  %v876 = vadd.f32 %v874, %v875
  %v877 = vsel %vm249, %v795, 0.0
  %v878 = vadd.f32 %v876, %v877
  %v879 = vsel %vm249, %v796, 0.0
  %v880 = vadd.f32 %v878, %v879
  %v881 = vsel %vm249, %v797, 0.0
  %v882 = vadd.f32 %v880, %v881
  %v883 = vsel %vm249, %v798, 0.0
  %v884 = vadd.f32 %v882, %v883
  %v885 = vsel %vm249, %v799, 0.0
  %v886 = vadd.f32 %v884, %v885
  %v887 = vsel %vm249, %v800, 0.0
  %v888 = vadd.f32 %v886, %v887
  %v889 = vsel %vm249, %v801, 0.0
  %v890 = vadd.f32 %v888, %v889
  %v891 = vsel %vm249, %v802, 0.0
  %v892 = vadd.f32 %v890, %v891
  %v893 = vsel %vm249, %v803, 0.0
  %v894 = vadd.f32 %v892, %v893
  %v895 = vsel %vm249, %v804, 0.0
  %v896 = vadd.f32 %v894, %v895
  %v897 = vsel %vm249, %v805, 0.0
  %v898 = vadd.f32 %v896, %v897
  %v899 = vsel %vm249, %v806, 0.0
  %v900 = vadd.f32 %v898, %v899
  %v901 = vsel %vm249, %v807, 0.0
  %v902 = vadd.f32 %v900, %v901
  %v903 = vsel %vm249, %v808, 0.0
  %v904 = vadd.f32 %v902, %v903
  %v905 = vsel %vm249, %v809, 0.0
  %v906 = vadd.f32 %v904, %v905
  %v907 = vsel %vm249, %v810, 0.0
  %v908 = vadd.f32 %v906, %v907
  %v909 = vsel %vm249, %v811, 0.0
  %v910 = vadd.f32 %v908, %v909
  %v911 = vsel %vm249, %v812, 0.0
  %v912 = vadd.f32 %v910, %v911
  %v913 = vsel %vm249, %v813, 0.0
  %v914 = vadd.f32 %v912, %v913
  %v915 = vsel %vm249, %v814, 0.0
  %v916 = vadd.f32 %v914, %v915
  %v917 = vsel %vm249, %v815, 0.0
  %v918 = vadd.f32 %v916, %v917
  %v919 = vsel %vm249, %v816, 0.0
  %v920 = vadd.f32 %v918, %v919
  %v921 = vsel %vm249, %v817, 0.0
  %v922 = vadd.f32 %v920, %v921
  %v923 = vsel %vm249, %v818, 0.0
  %v924 = vadd.f32 %v922, %v923
  %v925 = vsel %vm249, %v819, 0.0
  %v926 = vadd.f32 %v924, %v925
  %v927 = vsel %vm249, %v820, 0.0
  %v928 = vadd.f32 %v926, %v927
  %v929 = vsel %vm249, %v821, 0.0
  %v930 = vadd.f32 %v928, %v929
  %v931 = vsel %vm249, %v822, 0.0
  %v932 = vadd.f32 %v930, %v931
  %v933 = vsel %vm249, %v823, 0.0
  %v934 = vadd.f32 %v932, %v933
  %v935 = vsel %vm249, %v824, 0.0
  %v936 = vadd.f32 %v934, %v935
  %v937 = vsel %vm249, %v825, 0.0
  %v938 = vadd.f32 %v936, %v937
  %v939 = vsel %vm249, %v826, 0.0
  %v940 = vadd.f32 %v938, %v939
  %v941 = vsel %vm249, %v827, 0.0
  %v942 = vadd.f32 %v940, %v941
  %v943 = vsel %vm249, %v828, 0.0
  %v944 = vadd.f32 %v942, %v943
  %v945 = vsel %vm249, %v829, 0.0
  %v946 = vadd.f32 %v944, %v945
  %v947 = vsel %vm249, %v830, 0.0
  %v948 = vadd.f32 %v946, %v947
  %v949 = vsel %vm249, %v831, 0.0
  %v950 = vadd.f32 %v948, %v949
  %v951 = vsel %vm249, %v832, 0.0
  %v952 = vadd.f32 %v950, %v951
  %v953 = vsel %vm249, %v833, 0.0
  %v954 = vadd.f32 %v952, %v953
  %v955 = vsel %vm249, %v834, 0.0
  %v956 = vadd.f32 %v954, %v955
  %v957 = vsel %vm249, %v835, 0.0
  %v958 = vadd.f32 %v956, %v957
  %v959 = vsel %vm249, %v836, 0.0
  %v960 = vadd.f32 %v958, %v959
  %v961 = vsel %vm249, %v837, 0.0
  %v962 = vadd.f32 %v960, %v961
  %v963 = vsel %vm249, %v838, 0.0
  %v964 = vadd.f32 %v962, %v963
  %v965 = vsel %vm249, %v839, 0.0
  %v966 = vadd.f32 %v964, %v965
  %v967 = vrot.slane %v966, 4
  %v968 = vadd.f32 %v966, %v967
  %v969 = vrot.slane %v968, 2
  %v970 = vadd.f32 %v968, %v969
  %v971 = vrot.slane %v970, 1
  %v972 = vadd.f32 %v970, %v971
  %v973 = vmul.f32 %v972, %v774
  %v974 = vmul.f32 %v775, %v775
  %v975 = vsub.f32 %v973, %v974
  %v976 = vmax.f32 %v975, 0.0
  %v977 = vadd.f32 %v976, 1e-05
  %v978 = vrsqrt.pop %v977
  %v979 = vmul.f32 %v639, %v978
  %v980 = vmul.f32 %v775, %v979
  %v981 = vsub.f32 %v640, %v980
  %v982 = vlaneseq
  %v983 = vshrl.u32 %v982, 7
  %v984 = vsub.s32 0, %v983
  %v985 = vrot.slane %v979, %v984
  %v986 = vmul.f32 %v385, %v985
  %v987 = vmul.f32 %v388, %v985
  %v988 = vmul.f32 %v393, %v985
  %v989 = vmul.f32 %v396, %v985
  %v990 = vmul.f32 %v401, %v985
  %v991 = vmul.f32 %v404, %v985
  %v992 = vmul.f32 %v409, %v985
  %v993 = vmul.f32 %v412, %v985
  %v994 = vmul.f32 %v417, %v985
  %v995 = vmul.f32 %v420, %v985
  %v996 = vmul.f32 %v425, %v985
  %v997 = vmul.f32 %v428, %v985
  %v998 = vmul.f32 %v433, %v985
  %v999 = vmul.f32 %v436, %v985
  %v1000 = vmul.f32 %v441, %v985
  %v1001 = vmul.f32 %v444, %v985
  %v1002 = vmul.f32 %v449, %v985
  %v1003 = vmul.f32 %v452, %v985
  %v1004 = vmul.f32 %v457, %v985
  %v1005 = vmul.f32 %v460, %v985
  %v1006 = vmul.f32 %v465, %v985
  %v1007 = vmul.f32 %v468, %v985
  %v1008 = vmul.f32 %v473, %v985
  %v1009 = vmul.f32 %v476, %v985
  %v1010 = vmul.f32 %v481, %v985
  %v1011 = vmul.f32 %v484, %v985
  %v1012 = vmul.f32 %v489, %v985
  %v1013 = vmul.f32 %v492, %v985
  %v1014 = vmul.f32 %v497, %v985
  %v1015 = vmul.f32 %v500, %v985
  %v1016 = vmul.f32 %v505, %v985
  %v1017 = vmul.f32 %v508, %v985
  %v1018 = vmul.f32 %v513, %v985
  %v1019 = vmul.f32 %v516, %v985
  %v1020 = vmul.f32 %v521, %v985
  %v1021 = vmul.f32 %v524, %v985
  %v1022 = vmul.f32 %v529, %v985
  %v1023 = vmul.f32 %v532, %v985
  %v1024 = vmul.f32 %v537, %v985
  %v1025 = vmul.f32 %v540, %v985
  %v1026 = vmul.f32 %v545, %v985
  %v1027 = vmul.f32 %v548, %v985
  %v1028 = vmul.f32 %v553, %v985
  %v1029 = vmul.f32 %v556, %v985
  %v1030 = vmul.f32 %v561, %v985
  %v1031 = vmul.f32 %v564, %v985
  %v1032 = vmul.f32 %v569, %v985
  %v1033 = vmul.f32 %v572, %v985
  %v1034 = vmul.f32 %v577, %v985
  %v1035 = vmul.f32 %v580, %v985
  %v1036 = vmul.f32 %v585, %v985
  %v1037 = vmul.f32 %v588, %v985
  %v1038 = vmul.f32 %v593, %v985
  %v1039 = vmul.f32 %v596, %v985
  %v1040 = vmul.f32 %v601, %v985
  %v1041 = vmul.f32 %v604, %v985
  %v1042 = vmul.f32 %v609, %v985
  %v1043 = vmul.f32 %v612, %v985
  %v1044 = vmul.f32 %v617, %v985
  %v1045 = vmul.f32 %v620, %v985
  %v1046 = vmul.f32 %v625, %v985
  %v1047 = vmul.f32 %v628, %v985
  %v1048 = vmul.f32 %v633, %v985
  %v1049 = vmul.f32 %v636, %v985
  %v1050 = vlaneseq
  %v1051 = vshrl.u32 %v1050, 7
  %v1052 = vsub.s32 0, %v1051
  %v1053 = vrot.slane %v981, %v1052
  %v1054 = vadd.f32 %v986, %v1053
  %v1055 = vadd.f32 %v987, %v1053
  %v1056 = vadd.f32 %v988, %v1053
  %v1057 = vadd.f32 %v989, %v1053
  %v1058 = vadd.f32 %v990, %v1053
  %v1059 = vadd.f32 %v991, %v1053
  %v1060 = vadd.f32 %v992, %v1053
  %v1061 = vadd.f32 %v993, %v1053
  %v1062 = vadd.f32 %v994, %v1053
  %v1063 = vadd.f32 %v995, %v1053
  %v1064 = vadd.f32 %v996, %v1053
  %v1065 = vadd.f32 %v997, %v1053
  %v1066 = vadd.f32 %v998, %v1053
  %v1067 = vadd.f32 %v999, %v1053
  %v1068 = vadd.f32 %v1000, %v1053
  %v1069 = vadd.f32 %v1001, %v1053
  %v1070 = vadd.f32 %v1002, %v1053
  %v1071 = vadd.f32 %v1003, %v1053
  %v1072 = vadd.f32 %v1004, %v1053
  %v1073 = vadd.f32 %v1005, %v1053
  %v1074 = vadd.f32 %v1006, %v1053
  %v1075 = vadd.f32 %v1007, %v1053
  %v1076 = vadd.f32 %v1008, %v1053
  %v1077 = vadd.f32 %v1009, %v1053
  %v1078 = vadd.f32 %v1010, %v1053
  %v1079 = vadd.f32 %v1011, %v1053
  %v1080 = vadd.f32 %v1012, %v1053
  %v1081 = vadd.f32 %v1013, %v1053
  %v1082 = vadd.f32 %v1014, %v1053
  %v1083 = vadd.f32 %v1015, %v1053
  %v1084 = vadd.f32 %v1016, %v1053
  %v1085 = vadd.f32 %v1017, %v1053
  %v1086 = vadd.f32 %v1018, %v1053
  %v1087 = vadd.f32 %v1019, %v1053
  %v1088 = vadd.f32 %v1020, %v1053
  %v1089 = vadd.f32 %v1021, %v1053
  %v1090 = vadd.f32 %v1022, %v1053
  %v1091 = vadd.f32 %v1023, %v1053
  %v1092 = vadd.f32 %v1024, %v1053
  %v1093 = vadd.f32 %v1025, %v1053
  %v1094 = vadd.f32 %v1026, %v1053
  %v1095 = vadd.f32 %v1027, %v1053
  %v1096 = vadd.f32 %v1028, %v1053
  %v1097 = vadd.f32 %v1029, %v1053
  %v1098 = vadd.f32 %v1030, %v1053
  %v1099 = vadd.f32 %v1031, %v1053
  %v1100 = vadd.f32 %v1032, %v1053
  %v1101 = vadd.f32 %v1033, %v1053
  %v1102 = vadd.f32 %v1034, %v1053
  %v1103 = vadd.f32 %v1035, %v1053
  %v1104 = vadd.f32 %v1036, %v1053
  %v1105 = vadd.f32 %v1037, %v1053
  %v1106 = vadd.f32 %v1038, %v1053
  %v1107 = vadd.f32 %v1039, %v1053
  %v1108 = vadd.f32 %v1040, %v1053
  %v1109 = vadd.f32 %v1041, %v1053
  %v1110 = vadd.f32 %v1042, %v1053
  %v1111 = vadd.f32 %v1043, %v1053
  %v1112 = vadd.f32 %v1044, %v1053
  %v1113 = vadd.f32 %v1045, %v1053
  %v1114 = vadd.f32 %v1046, %v1053
  %v1115 = vadd.f32 %v1047, %v1053
  %v1116 = vadd.f32 %v1048, %v1053
  %v1117 = vadd.f32 %v1049, %v1053
  %v1118 = vmax.f32 %v1054, 0.0
  %v1119 = vmax.f32 %v1055, 0.0
  %v1120 = vmax.f32 %v1056, 0.0
  %v1121 = vmax.f32 %v1057, 0.0
  %v1122 = vmax.f32 %v1058, 0.0
  %v1123 = vmax.f32 %v1059, 0.0
  %v1124 = vmax.f32 %v1060, 0.0
  %v1125 = vmax.f32 %v1061, 0.0
  %v1126 = vmax.f32 %v1062, 0.0
  %v1127 = vmax.f32 %v1063, 0.0
  %v1128 = vmax.f32 %v1064, 0.0
  %v1129 = vmax.f32 %v1065, 0.0
  %v1130 = vmax.f32 %v1066, 0.0
  %v1131 = vmax.f32 %v1067, 0.0
  %v1132 = vmax.f32 %v1068, 0.0
  %v1133 = vmax.f32 %v1069, 0.0
  %v1134 = vmax.f32 %v1070, 0.0
  %v1135 = vmax.f32 %v1071, 0.0
  %v1136 = vmax.f32 %v1072, 0.0
  %v1137 = vmax.f32 %v1073, 0.0
  %v1138 = vmax.f32 %v1074, 0.0
  %v1139 = vmax.f32 %v1075, 0.0
  %v1140 = vmax.f32 %v1076, 0.0
  %v1141 = vmax.f32 %v1077, 0.0
  %v1142 = vmax.f32 %v1078, 0.0
  %v1143 = vmax.f32 %v1079, 0.0
  %v1144 = vmax.f32 %v1080, 0.0
  %v1145 = vmax.f32 %v1081, 0.0
  %v1146 = vmax.f32 %v1082, 0.0
  %v1147 = vmax.f32 %v1083, 0.0
  %v1148 = vmax.f32 %v1084, 0.0
  %v1149 = vmax.f32 %v1085, 0.0
  %v1150 = vmax.f32 %v1086, 0.0
  %v1151 = vmax.f32 %v1087, 0.0
  %v1152 = vmax.f32 %v1088, 0.0
  %v1153 = vmax.f32 %v1089, 0.0
  %v1154 = vmax.f32 %v1090, 0.0
  %v1155 = vmax.f32 %v1091, 0.0
  %v1156 = vmax.f32 %v1092, 0.0
  %v1157 = vmax.f32 %v1093, 0.0
  %v1158 = vmax.f32 %v1094, 0.0
  %v1159 = vmax.f32 %v1095, 0.0
  %v1160 = vmax.f32 %v1096, 0.0
  %v1161 = vmax.f32 %v1097, 0.0
  %v1162 = vmax.f32 %v1098, 0.0
  %v1163 = vmax.f32 %v1099, 0.0
  %v1164 = vmax.f32 %v1100, 0.0
  %v1165 = vmax.f32 %v1101, 0.0
  %v1166 = vmax.f32 %v1102, 0.0
  %v1167 = vmax.f32 %v1103, 0.0
  %v1168 = vmax.f32 %v1104, 0.0
  %v1169 = vmax.f32 %v1105, 0.0
  %v1170 = vmax.f32 %v1106, 0.0
  %v1171 = vmax.f32 %v1107, 0.0
  %v1172 = vmax.f32 %v1108, 0.0
  %v1173 = vmax.f32 %v1109, 0.0
  %v1174 = vmax.f32 %v1110, 0.0
  %v1175 = vmax.f32 %v1111, 0.0
  %v1176 = vmax.f32 %v1112, 0.0
  %v1177 = vmax.f32 %v1113, 0.0
  %v1178 = vmax.f32 %v1114, 0.0
  %v1179 = vmax.f32 %v1115, 0.0
  %v1180 = vmax.f32 %v1116, 0.0
  %v1181 = vmax.f32 %v1117, 0.0
  %1182 = vst.msk [vmem:[#allocation2] sm:$0xff] %vm249, 0.0
  %vm1183 = vcmask 24576
  %1184 = vst.msk [vmem:[#allocation2 + $0x8] sm:$0x1] %vm1183, 0.0
  %1185 = vst.msk [vmem:[#allocation2 + $0x90] sm:$0xff] %vm249, 0.0
  %1186 = vst.msk [vmem:[#allocation2 + $0x98] sm:$0x1] %vm1183, 0.0
  %1187 = vst.msk [vmem:[#allocation2] sm:$0x1] %vm1183, 0.0
  %1188 = vst.msk [vmem:[#allocation2 + $0x10] sm:$0x1] %vm1183, 0.0
  %1189 = vst.msk [vmem:[#allocation2 + $0x20] sm:$0x1] %vm1183, 0.0
  %1190 = vst.msk [vmem:[#allocation2 + $0x30] sm:$0x1] %vm1183, 0.0
  %1191 = vst.msk [vmem:[#allocation2 + $0x40] sm:$0x1] %vm1183, 0.0
  %1192 = vst.msk [vmem:[#allocation2 + $0x50] sm:$0x1] %vm1183, 0.0
  %1193 = vst.msk [vmem:[#allocation2 + $0x60] sm:$0x1] %vm1183, 0.0
  %1194 = vst.msk [vmem:[#allocation2 + $0x70] sm:$0x1] %vm1183, 0.0
  %1195 = vst.msk [vmem:[#allocation2 + $0x80] sm:$0x1] %vm1183, 0.0
  %1196 = vst.msk [vmem:[#allocation2 + $0x90] sm:$0x1] %vm1183, 0.0
  %1197 = vst.msk [vmem:[#allocation2 + $0xa0] sm:$0x1] %vm1183, 0.0
  %1198 = vst.msk [vmem:[#allocation2 + $0xb0] sm:$0x1] %vm1183, 0.0
  %1199 = vst.msk [vmem:[#allocation2 + $0xc0] sm:$0x1] %vm1183, 0.0
  %1200 = vst.msk [vmem:[#allocation2 + $0xd0] sm:$0x1] %vm1183, 0.0
  %1201 = vst.msk [vmem:[#allocation2 + $0xe0] sm:$0x1] %vm1183, 0.0
  %1202 = vst.msk [vmem:[#allocation2 + $0xf0] sm:$0x1] %vm1183, 0.0
  %1203 = vst.msk [vmem:[#allocation2 + $0x100] sm:$0x1] %vm1183, 0.0
  %1204 = vst.msk [vmem:[#allocation2 + $0x110] sm:$0x1] %vm1183, 0.0
  %s1205 = scalar_lea.vmem [#allocation2], 16
  %1206 = vst.msk [vmem:[%s1205 + $0x1] sm:$0xff] %vm249, %v1166
  %1207 = vst.msk [vmem:[%s1205 + $0x11] sm:$0xff] %vm249, %v1167
  %1208 = vst.msk [vmem:[%s1205 + $0x21] sm:$0xff] %vm249, %v1168
  %1209 = vst.msk [vmem:[%s1205 + $0x31] sm:$0xff] %vm249, %v1169
  %1210 = vst.msk [vmem:[%s1205 + $0x41] sm:$0xff] %vm249, %v1170
  %1211 = vst.msk [vmem:[%s1205 + $0x51] sm:$0xff] %vm249, %v1171
  %1212 = vst.msk [vmem:[%s1205 + $0x61] sm:$0xff] %vm249, %v1172
  %1213 = vst.msk [vmem:[%s1205 + $0x71] sm:$0xff] %vm249, %v1173
  %1214 = vst.msk [vmem:[%s1205 + $0x91] sm:$0xff] %vm249, %v1174
  %1215 = vst.msk [vmem:[%s1205 + $0xa1] sm:$0xff] %vm249, %v1175
  %1216 = vst.msk [vmem:[%s1205 + $0xb1] sm:$0xff] %vm249, %v1176
  %1217 = vst.msk [vmem:[%s1205 + $0xc1] sm:$0xff] %vm249, %v1177
  %1218 = vst.msk [vmem:[%s1205 + $0xd1] sm:$0xff] %vm249, %v1178
  %1219 = vst.msk [vmem:[%s1205 + $0xe1] sm:$0xff] %vm249, %v1179
  %1220 = vst.msk [vmem:[%s1205 + $0xf1] sm:$0xff] %vm249, %v1180
  %1221 = vst.msk [vmem:[%s1205 + $0x101] sm:$0xff] %vm249, %v1181
  %s1222 = scalar_lea.vmem [#allocation2], 288
  %1223 = vst.msk [vmem:[%s1222] sm:$0xff] %vm249, 0.0
  %1224 = vst.msk [vmem:[%s1222 + $0x8] sm:$0x1] %vm1183, 0.0
  %1225 = vst.msk [vmem:[%s1222 + $0x90] sm:$0xff] %vm249, 0.0
  %1226 = vst.msk [vmem:[%s1222 + $0x98] sm:$0x1] %vm1183, 0.0
  %1227 = vst.msk [vmem:[%s1222 + $0x8] sm:$0x1] %vm1183, 0.0
  %1228 = vst.msk [vmem:[%s1222 + $0x18] sm:$0x1] %vm1183, 0.0
  %1229 = vst.msk [vmem:[%s1222 + $0x28] sm:$0x1] %vm1183, 0.0
  %1230 = vst.msk [vmem:[%s1222 + $0x38] sm:$0x1] %vm1183, 0.0
  %1231 = vst.msk [vmem:[%s1222 + $0x48] sm:$0x1] %vm1183, 0.0
  %1232 = vst.msk [vmem:[%s1222 + $0x58] sm:$0x1] %vm1183, 0.0
  %1233 = vst.msk [vmem:[%s1222 + $0x68] sm:$0x1] %vm1183, 0.0
  %1234 = vst.msk [vmem:[%s1222 + $0x78] sm:$0x1] %vm1183, 0.0
  %1235 = vst.msk [vmem:[%s1222 + $0x88] sm:$0x1] %vm1183, 0.0
  %1236 = vst.msk [vmem:[%s1222 + $0x98] sm:$0x1] %vm1183, 0.0
  %1237 = vst.msk [vmem:[%s1222 + $0xa8] sm:$0x1] %vm1183, 0.0
  %1238 = vst.msk [vmem:[%s1222 + $0xb8] sm:$0x1] %vm1183, 0.0
  %1239 = vst.msk [vmem:[%s1222 + $0xc8] sm:$0x1] %vm1183, 0.0
  %1240 = vst.msk [vmem:[%s1222 + $0xd8] sm:$0x1] %vm1183, 0.0
  %1241 = vst.msk [vmem:[%s1222 + $0xe8] sm:$0x1] %vm1183, 0.0
  %1242 = vst.msk [vmem:[%s1222 + $0xf8] sm:$0x1] %vm1183, 0.0
  %1243 = vst.msk [vmem:[%s1222 + $0x108] sm:$0x1] %vm1183, 0.0
  %1244 = vst.msk [vmem:[%s1222 + $0x118] sm:$0x1] %vm1183, 0.0
  %s1245 = scalar_lea.vmem [#allocation2], 304
  %1246 = vst.msk [vmem:[%s1245] sm:$0xff] %vm249, %v1150
  %1247 = vst.msk [vmem:[%s1245 + $0x10] sm:$0xff] %vm249, %v1151
  %1248 = vst.msk [vmem:[%s1245 + $0x20] sm:$0xff] %vm249, %v1152
  %1249 = vst.msk [vmem:[%s1245 + $0x30] sm:$0xff] %vm249, %v1153
  %1250 = vst.msk [vmem:[%s1245 + $0x40] sm:$0xff] %vm249, %v1154
  %1251 = vst.msk [vmem:[%s1245 + $0x50] sm:$0xff] %vm249, %v1155
  %1252 = vst.msk [vmem:[%s1245 + $0x60] sm:$0xff] %vm249, %v1156
  %1253 = vst.msk [vmem:[%s1245 + $0x70] sm:$0xff] %vm249, %v1157
  %1254 = vst.msk [vmem:[%s1245 + $0x90] sm:$0xff] %vm249, %v1158
  %1255 = vst.msk [vmem:[%s1245 + $0xa0] sm:$0xff] %vm249, %v1159
  %1256 = vst.msk [vmem:[%s1245 + $0xb0] sm:$0xff] %vm249, %v1160
  %1257 = vst.msk [vmem:[%s1245 + $0xc0] sm:$0xff] %vm249, %v1161
  %1258 = vst.msk [vmem:[%s1245 + $0xd0] sm:$0xff] %vm249, %v1162
  %1259 = vst.msk [vmem:[%s1245 + $0xe0] sm:$0xff] %vm249, %v1163
  %1260 = vst.msk [vmem:[%s1245 + $0xf0] sm:$0xff] %vm249, %v1164
  %1261 = vst.msk [vmem:[%s1245 + $0x100] sm:$0xff] %vm249, %v1165
  %s1262 = scalar_lea.vmem [#allocation2], 704
  %1263 = vst.msk [vmem:[%s1262] sm:$0xff] %vm249, 0.0
  %1264 = vst.msk [vmem:[%s1262 + $0x8] sm:$0x1] %vm1183, 0.0
  %1265 = vst.msk [vmem:[%s1262 + $0x90] sm:$0xff] %vm249, 0.0
  %1266 = vst.msk [vmem:[%s1262 + $0x98] sm:$0x1] %vm1183, 0.0
  %s1267 = scalar_lea.vmem [#allocation2], 576
  %1268 = vst.msk [vmem:[%s1267] sm:$0x1] %vm1183, 0.0
  %1269 = vst.msk [vmem:[%s1267 + $0x10] sm:$0x1] %vm1183, 0.0
  %1270 = vst.msk [vmem:[%s1267 + $0x20] sm:$0x1] %vm1183, 0.0
  %1271 = vst.msk [vmem:[%s1267 + $0x30] sm:$0x1] %vm1183, 0.0
  %1272 = vst.msk [vmem:[%s1267 + $0x40] sm:$0x1] %vm1183, 0.0
  %1273 = vst.msk [vmem:[%s1267 + $0x50] sm:$0x1] %vm1183, 0.0
  %1274 = vst.msk [vmem:[%s1267 + $0x60] sm:$0x1] %vm1183, 0.0
  %1275 = vst.msk [vmem:[%s1267 + $0x70] sm:$0x1] %vm1183, 0.0
  %1276 = vst.msk [vmem:[%s1267 + $0x80] sm:$0x1] %vm1183, 0.0
  %1277 = vst.msk [vmem:[%s1267 + $0x90] sm:$0x1] %vm1183, 0.0
  %1278 = vst.msk [vmem:[%s1267 + $0xa0] sm:$0x1] %vm1183, 0.0
  %1279 = vst.msk [vmem:[%s1267 + $0xb0] sm:$0x1] %vm1183, 0.0
  %1280 = vst.msk [vmem:[%s1267 + $0xc0] sm:$0x1] %vm1183, 0.0
  %1281 = vst.msk [vmem:[%s1267 + $0xd0] sm:$0x1] %vm1183, 0.0
  %1282 = vst.msk [vmem:[%s1267 + $0xe0] sm:$0x1] %vm1183, 0.0
  %1283 = vst.msk [vmem:[%s1267 + $0xf0] sm:$0x1] %vm1183, 0.0
  %1284 = vst.msk [vmem:[%s1267 + $0x100] sm:$0x1] %vm1183, 0.0
  %1285 = vst.msk [vmem:[%s1267 + $0x110] sm:$0x1] %vm1183, 0.0
  %1286 = vst.msk [vmem:[%s1267 + $0x1] sm:$0xff] %vm249, %v1134
  %1287 = vst.msk [vmem:[%s1267 + $0x11] sm:$0xff] %vm249, %v1135
  %1288 = vst.msk [vmem:[%s1267 + $0x21] sm:$0xff] %vm249, %v1136
  %1289 = vst.msk [vmem:[%s1267 + $0x31] sm:$0xff] %vm249, %v1137
  %1290 = vst.msk [vmem:[%s1267 + $0x41] sm:$0xff] %vm249, %v1138
  %1291 = vst.msk [vmem:[%s1267 + $0x51] sm:$0xff] %vm249, %v1139
  %1292 = vst.msk [vmem:[%s1267 + $0x61] sm:$0xff] %vm249, %v1140
  %1293 = vst.msk [vmem:[%s1267 + $0x71] sm:$0xff] %vm249, %v1141
  %1294 = vst.msk [vmem:[%s1267 + $0x91] sm:$0xff] %vm249, %v1142
  %1295 = vst.msk [vmem:[%s1267 + $0xa1] sm:$0xff] %vm249, %v1143
  %1296 = vst.msk [vmem:[%s1267 + $0xb1] sm:$0xff] %vm249, %v1144
  %1297 = vst.msk [vmem:[%s1267 + $0xc1] sm:$0xff] %vm249, %v1145
  %1298 = vst.msk [vmem:[%s1267 + $0xd1] sm:$0xff] %vm249, %v1146
  %1299 = vst.msk [vmem:[%s1267 + $0xe1] sm:$0xff] %vm249, %v1147
  %1300 = vst.msk [vmem:[%s1267 + $0xf1] sm:$0xff] %vm249, %v1148
  %1301 = vst.msk [vmem:[%s1267 + $0x101] sm:$0xff] %vm249, %v1149
  %s1302 = scalar_lea.vmem [#allocation2], 992
  %1303 = vst.msk [vmem:[%s1302] sm:$0xff] %vm249, 0.0
  %1304 = vst.msk [vmem:[%s1302 + $0x8] sm:$0x1] %vm1183, 0.0
  %1305 = vst.msk [vmem:[%s1302 + $0x90] sm:$0xff] %vm249, 0.0
  %1306 = vst.msk [vmem:[%s1302 + $0x98] sm:$0x1] %vm1183, 0.0
  %s1307 = scalar_lea.vmem [#allocation2], 864
  %1308 = vst.msk [vmem:[%s1307 + $0x8] sm:$0x1] %vm1183, 0.0
  %1309 = vst.msk [vmem:[%s1307 + $0x18] sm:$0x1] %vm1183, 0.0
  %1310 = vst.msk [vmem:[%s1307 + $0x28] sm:$0x1] %vm1183, 0.0
  %1311 = vst.msk [vmem:[%s1307 + $0x38] sm:$0x1] %vm1183, 0.0
  %1312 = vst.msk [vmem:[%s1307 + $0x48] sm:$0x1] %vm1183, 0.0
  %1313 = vst.msk [vmem:[%s1307 + $0x58] sm:$0x1] %vm1183, 0.0
  %1314 = vst.msk [vmem:[%s1307 + $0x68] sm:$0x1] %vm1183, 0.0
  %1315 = vst.msk [vmem:[%s1307 + $0x78] sm:$0x1] %vm1183, 0.0
  %1316 = vst.msk [vmem:[%s1307 + $0x88] sm:$0x1] %vm1183, 0.0
  %1317 = vst.msk [vmem:[%s1307 + $0x98] sm:$0x1] %vm1183, 0.0
  %1318 = vst.msk [vmem:[%s1307 + $0xa8] sm:$0x1] %vm1183, 0.0
  %1319 = vst.msk [vmem:[%s1307 + $0xb8] sm:$0x1] %vm1183, 0.0
  %1320 = vst.msk [vmem:[%s1307 + $0xc8] sm:$0x1] %vm1183, 0.0
  %1321 = vst.msk [vmem:[%s1307 + $0xd8] sm:$0x1] %vm1183, 0.0
  %1322 = vst.msk [vmem:[%s1307 + $0xe8] sm:$0x1] %vm1183, 0.0
  %1323 = vst.msk [vmem:[%s1307 + $0xf8] sm:$0x1] %vm1183, 0.0
  %1324 = vst.msk [vmem:[%s1307 + $0x108] sm:$0x1] %vm1183, 0.0
  %1325 = vst.msk [vmem:[%s1307 + $0x118] sm:$0x1] %vm1183, 0.0
  %1326 = vst.msk [vmem:[%s1307] sm:$0xff] %vm249, %v1118
  %1327 = vst.msk [vmem:[%s1307 + $0x10] sm:$0xff] %vm249, %v1119
  %1328 = vst.msk [vmem:[%s1307 + $0x20] sm:$0xff] %vm249, %v1120
  %1329 = vst.msk [vmem:[%s1307 + $0x30] sm:$0xff] %vm249, %v1121
  %1330 = vst.msk [vmem:[%s1307 + $0x40] sm:$0xff] %vm249, %v1122
  %1331 = vst.msk [vmem:[%s1307 + $0x50] sm:$0xff] %vm249, %v1123
  %1332 = vst.msk [vmem:[%s1307 + $0x60] sm:$0xff] %vm249, %v1124
  %1333 = vst.msk [vmem:[%s1307 + $0x70] sm:$0xff] %vm249, %v1125
  %1334 = vst.msk [vmem:[%s1307 + $0x90] sm:$0xff] %vm249, %v1126
  %1335 = vst.msk [vmem:[%s1307 + $0xa0] sm:$0xff] %vm249, %v1127
  %1336 = vst.msk [vmem:[%s1307 + $0xb0] sm:$0xff] %vm249, %v1128
  %1337 = vst.msk [vmem:[%s1307 + $0xc0] sm:$0xff] %vm249, %v1129
  %1338 = vst.msk [vmem:[%s1307 + $0xd0] sm:$0xff] %vm249, %v1130
  %1339 = vst.msk [vmem:[%s1307 + $0xe0] sm:$0xff] %vm249, %v1131
  %1340 = vst.msk [vmem:[%s1307 + $0xf0] sm:$0xff] %vm249, %v1132
  %1341 = vst.msk [vmem:[%s1307 + $0x100] sm:$0xff] %vm249, %v1133
  %v1342 = vld [vmem:[#allocation2] sm:$0xff]
  %v1343 = vld [vmem:[#allocation2 + $0x10] sm:$0xff]
  %v1344 = vld [vmem:[#allocation2 + $0x20] sm:$0xff]
  %v1345 = vld [vmem:[#allocation2 + $0x30] sm:$0xff]
  %v1346 = vld [vmem:[#allocation2 + $0x40] sm:$0xff]
  %v1347 = vld [vmem:[#allocation2 + $0x50] sm:$0xff]
  %v1348 = vld [vmem:[#allocation2 + $0x60] sm:$0xff]
  %v1349 = vld [vmem:[#allocation2 + $0x70] sm:$0xff]
  %v1350 = vld [vmem:[#allocation2 + $0x90] sm:$0xff]
  %v1351 = vld [vmem:[#allocation2 + $0xa0] sm:$0xff]
  %v1352 = vld [vmem:[#allocation2 + $0xb0] sm:$0xff]
  %v1353 = vld [vmem:[#allocation2 + $0xc0] sm:$0xff]
  %v1354 = vld [vmem:[#allocation2 + $0xd0] sm:$0xff]
  %v1355 = vld [vmem:[#allocation2 + $0xe0] sm:$0xff]
  %v1356 = vld [vmem:[#allocation2 + $0xf0] sm:$0xff]
  %v1357 = vld [vmem:[#allocation2 + $0x100] sm:$0xff]
  %v1358 = vld [vmem:[%s1222] sm:$0xff]
  %v1359 = vld [vmem:[%s1222 + $0x10] sm:$0xff]
  %v1360 = vld [vmem:[%s1222 + $0x20] sm:$0xff]
  %v1361 = vld [vmem:[%s1222 + $0x30] sm:$0xff]
  %v1362 = vld [vmem:[%s1222 + $0x40] sm:$0xff]
  %v1363 = vld [vmem:[%s1222 + $0x50] sm:$0xff]
  %v1364 = vld [vmem:[%s1222 + $0x60] sm:$0xff]
  %v1365 = vld [vmem:[%s1222 + $0x70] sm:$0xff]
  %v1366 = vld [vmem:[%s1222 + $0x90] sm:$0xff]
  %v1367 = vld [vmem:[%s1222 + $0xa0] sm:$0xff]
  %v1368 = vld [vmem:[%s1222 + $0xb0] sm:$0xff]
  %v1369 = vld [vmem:[%s1222 + $0xc0] sm:$0xff]
  %v1370 = vld [vmem:[%s1222 + $0xd0] sm:$0xff]
  %v1371 = vld [vmem:[%s1222 + $0xe0] sm:$0xff]
  %v1372 = vld [vmem:[%s1222 + $0xf0] sm:$0xff]
  %v1373 = vld [vmem:[%s1222 + $0x100] sm:$0xff]
  %v1374 = vld [vmem:[#allocation2 + $0x1] sm:$0xff]
  %v1375 = vld [vmem:[#allocation2 + $0x11] sm:$0xff]
  %v1376 = vld [vmem:[#allocation2 + $0x21] sm:$0xff]
  %v1377 = vld [vmem:[#allocation2 + $0x31] sm:$0xff]
  %v1378 = vld [vmem:[#allocation2 + $0x41] sm:$0xff]
  %v1379 = vld [vmem:[#allocation2 + $0x51] sm:$0xff]
  %v1380 = vld [vmem:[#allocation2 + $0x61] sm:$0xff]
  %v1381 = vld [vmem:[#allocation2 + $0x71] sm:$0xff]
  %v1382 = vld [vmem:[#allocation2 + $0x91] sm:$0xff]
  %v1383 = vld [vmem:[#allocation2 + $0xa1] sm:$0xff]
  %v1384 = vld [vmem:[#allocation2 + $0xb1] sm:$0xff]
  %v1385 = vld [vmem:[#allocation2 + $0xc1] sm:$0xff]
  %v1386 = vld [vmem:[#allocation2 + $0xd1] sm:$0xff]
  %v1387 = vld [vmem:[#allocation2 + $0xe1] sm:$0xff]
  %v1388 = vld [vmem:[#allocation2 + $0xf1] sm:$0xff]
  %v1389 = vld [vmem:[#allocation2 + $0x101] sm:$0xff]
  %1406 = vrot.lane.b32.xlu0 %v1358, 4
  %v1407 = vpop.permute.xlu0 %1406
  %1408 = vrot.lane.b32.xlu0 %v1359, 4
  %v1409 = vpop.permute.xlu0 %1408
  %1410 = vrot.lane.b32.xlu0 %v1360, 4
  %v1411 = vpop.permute.xlu0 %1410
  %1412 = vrot.lane.b32.xlu0 %v1361, 4
  %v1413 = vpop.permute.xlu0 %1412
  %1414 = vrot.lane.b32.xlu0 %v1362, 4
  %v1415 = vpop.permute.xlu0 %1414
  %1416 = vrot.lane.b32.xlu0 %v1363, 4
  %v1417 = vpop.permute.xlu0 %1416
  %1418 = vrot.lane.b32.xlu0 %v1364, 4
  %v1419 = vpop.permute.xlu0 %1418
  %1420 = vrot.lane.b32.xlu0 %v1365, 4
  %v1421 = vpop.permute.xlu0 %1420
  %1422 = vrot.lane.b32.xlu0 %v1366, 4
  %v1423 = vpop.permute.xlu0 %1422
  %1424 = vrot.lane.b32.xlu0 %v1367, 4
  %v1425 = vpop.permute.xlu0 %1424
  %1426 = vrot.lane.b32.xlu0 %v1368, 4
  %v1427 = vpop.permute.xlu0 %1426
  %1428 = vrot.lane.b32.xlu0 %v1369, 4
  %v1429 = vpop.permute.xlu0 %1428
  %1430 = vrot.lane.b32.xlu0 %v1370, 4
  %v1431 = vpop.permute.xlu0 %1430
  %1432 = vrot.lane.b32.xlu0 %v1371, 4
  %v1433 = vpop.permute.xlu0 %1432
  %1434 = vrot.lane.b32.xlu0 %v1372, 4
  %v1435 = vpop.permute.xlu0 %1434
  %1436 = vrot.lane.b32.xlu0 %v1373, 4
  %v1437 = vpop.permute.xlu0 %1436
  %1470 = vrot.lane.b32.xlu0 %v1374, 8
  %v1471 = vpop.permute.xlu0 %1470
  %1472 = vrot.lane.b32.xlu0 %v1375, 8
  %v1473 = vpop.permute.xlu0 %1472
  %1474 = vrot.lane.b32.xlu0 %v1376, 8
  %v1475 = vpop.permute.xlu0 %1474
  %1476 = vrot.lane.b32.xlu0 %v1377, 8
  %v1477 = vpop.permute.xlu0 %1476
  %1478 = vrot.lane.b32.xlu0 %v1378, 8
  %v1479 = vpop.permute.xlu0 %1478
  %1480 = vrot.lane.b32.xlu0 %v1379, 8
  %v1481 = vpop.permute.xlu0 %1480
  %1482 = vrot.lane.b32.xlu0 %v1380, 8
  %v1483 = vpop.permute.xlu0 %1482
  %1484 = vrot.lane.b32.xlu0 %v1381, 8
  %v1485 = vpop.permute.xlu0 %1484
  %1486 = vrot.lane.b32.xlu0 %v1382, 8
  %v1487 = vpop.permute.xlu0 %1486
  %1488 = vrot.lane.b32.xlu0 %v1383, 8
  %v1489 = vpop.permute.xlu0 %1488
  %1490 = vrot.lane.b32.xlu0 %v1384, 8
  %v1491 = vpop.permute.xlu0 %1490
  %1492 = vrot.lane.b32.xlu0 %v1385, 8
  %v1493 = vpop.permute.xlu0 %1492
  %1494 = vrot.lane.b32.xlu0 %v1386, 8
  %v1495 = vpop.permute.xlu0 %1494
  %1496 = vrot.lane.b32.xlu0 %v1387, 8
  %v1497 = vpop.permute.xlu0 %1496
  %1498 = vrot.lane.b32.xlu0 %v1388, 8
  %v1499 = vpop.permute.xlu0 %1498
  %1500 = vrot.lane.b32.xlu0 %v1389, 8
  %v1501 = vpop.permute.xlu0 %1500
  %v1518 = vsel %vm249, %v1342, %v1407
  %v1519 = vsel %vm249, %v1343, %v1409
  %v1520 = vsel %vm249, %v1344, %v1411
  %v1521 = vsel %vm249, %v1345, %v1413
  %v1522 = vsel %vm249, %v1346, %v1415
  %v1523 = vsel %vm249, %v1347, %v1417
  %v1524 = vsel %vm249, %v1348, %v1419
  %v1525 = vsel %vm249, %v1349, %v1421
  %v1526 = vsel %vm249, %v1350, %v1423
  %v1527 = vsel %vm249, %v1351, %v1425
  %v1528 = vsel %vm249, %v1352, %v1427
  %v1529 = vsel %vm249, %v1353, %v1429
  %v1530 = vsel %vm249, %v1354, %v1431
  %v1531 = vsel %vm249, %v1355, %v1433
  %v1532 = vsel %vm249, %v1356, %v1435
  %v1533 = vsel %vm249, %v1357, %v1437
  %vm1534 = vcmask 64512
  %v1535 = vsel %vm1534, %v1518, %v1471
  %v1536 = vsel %vm1534, %v1519, %v1473
  %v1537 = vsel %vm1534, %v1520, %v1475
  %v1538 = vsel %vm1534, %v1521, %v1477
  %v1539 = vsel %vm1534, %v1522, %v1479
  %v1540 = vsel %vm1534, %v1523, %v1481
  %v1541 = vsel %vm1534, %v1524, %v1483
  %v1542 = vsel %vm1534, %v1525, %v1485
  %v1543 = vsel %vm1534, %v1526, %v1487
  %v1544 = vsel %vm1534, %v1527, %v1489
  %v1545 = vsel %vm1534, %v1528, %v1491
  %v1546 = vsel %vm1534, %v1529, %v1493
  %v1547 = vsel %vm1534, %v1530, %v1495
  %v1548 = vsel %vm1534, %v1531, %v1497
  %v1549 = vsel %vm1534, %v1532, %v1499
  %v1550 = vsel %vm1534, %v1533, %v1501
  %v1551 = vpack.c.bf16 %v1536, %v1535
  %v1552 = vpack.c.bf16 %v1538, %v1537
  %v1553 = vpack.c.bf16 %v1540, %v1539
  %v1554 = vpack.c.bf16 %v1542, %v1541
  %v1555 = vpack.c.bf16 %v1544, %v1543
  %v1556 = vpack.c.bf16 %v1546, %v1545
  %v1557 = vpack.c.bf16 %v1548, %v1547
  %v1558 = vpack.c.bf16 %v1550, %v1549
  %v1559 = vld [vmem:[%s2] sm:$0xf]
  %v1560 = vld [vmem:[%s2 + $0x4] sm:$0x3]
  %v1561 = vld [vmem:[%s1267] sm:$0xff]
  %v1562 = vld [vmem:[%s1267 + $0x10] sm:$0xff]
  %v1563 = vld [vmem:[%s1267 + $0x20] sm:$0xff]
  %v1564 = vld [vmem:[%s1267 + $0x30] sm:$0xff]
  %v1565 = vld [vmem:[%s1267 + $0x40] sm:$0xff]
  %v1566 = vld [vmem:[%s1267 + $0x50] sm:$0xff]
  %v1567 = vld [vmem:[%s1267 + $0x60] sm:$0xff]
  %v1568 = vld [vmem:[%s1267 + $0x70] sm:$0xff]
  %v1569 = vld [vmem:[%s1267 + $0x90] sm:$0xff]
  %v1570 = vld [vmem:[%s1267 + $0xa0] sm:$0xff]
  %v1571 = vld [vmem:[%s1267 + $0xb0] sm:$0xff]
  %v1572 = vld [vmem:[%s1267 + $0xc0] sm:$0xff]
  %v1573 = vld [vmem:[%s1267 + $0xd0] sm:$0xff]
  %v1574 = vld [vmem:[%s1267 + $0xe0] sm:$0xff]
  %v1575 = vld [vmem:[%s1267 + $0xf0] sm:$0xff]
  %v1576 = vld [vmem:[%s1267 + $0x100] sm:$0xff]
  %v1577 = vld [vmem:[%s1307] sm:$0xff]
  %v1578 = vld [vmem:[%s1307 + $0x10] sm:$0xff]
  %v1579 = vld [vmem:[%s1307 + $0x20] sm:$0xff]
  %v1580 = vld [vmem:[%s1307 + $0x30] sm:$0xff]
  %v1581 = vld [vmem:[%s1307 + $0x40] sm:$0xff]
  %v1582 = vld [vmem:[%s1307 + $0x50] sm:$0xff]
  %v1583 = vld [vmem:[%s1307 + $0x60] sm:$0xff]
  %v1584 = vld [vmem:[%s1307 + $0x70] sm:$0xff]
  %v1585 = vld [vmem:[%s1307 + $0x90] sm:$0xff]
  %v1586 = vld [vmem:[%s1307 + $0xa0] sm:$0xff]
  %v1587 = vld [vmem:[%s1307 + $0xb0] sm:$0xff]
  %v1588 = vld [vmem:[%s1307 + $0xc0] sm:$0xff]
  %v1589 = vld [vmem:[%s1307 + $0xd0] sm:$0xff]
  %v1590 = vld [vmem:[%s1307 + $0xe0] sm:$0xff]
  %v1591 = vld [vmem:[%s1307 + $0xf0] sm:$0xff]
  %v1592 = vld [vmem:[%s1307 + $0x100] sm:$0xff]
  %v1593 = vld [vmem:[%s1267 + $0x1] sm:$0xff]
  %v1594 = vld [vmem:[%s1267 + $0x11] sm:$0xff]
  %v1595 = vld [vmem:[%s1267 + $0x21] sm:$0xff]
  %v1596 = vld [vmem:[%s1267 + $0x31] sm:$0xff]
  %v1597 = vld [vmem:[%s1267 + $0x41] sm:$0xff]
  %v1598 = vld [vmem:[%s1267 + $0x51] sm:$0xff]
  %v1599 = vld [vmem:[%s1267 + $0x61] sm:$0xff]
  %v1600 = vld [vmem:[%s1267 + $0x71] sm:$0xff]
  %v1601 = vld [vmem:[%s1267 + $0x91] sm:$0xff]
  %v1602 = vld [vmem:[%s1267 + $0xa1] sm:$0xff]
  %v1603 = vld [vmem:[%s1267 + $0xb1] sm:$0xff]
  %v1604 = vld [vmem:[%s1267 + $0xc1] sm:$0xff]
  %v1605 = vld [vmem:[%s1267 + $0xd1] sm:$0xff]
  %v1606 = vld [vmem:[%s1267 + $0xe1] sm:$0xff]
  %v1607 = vld [vmem:[%s1267 + $0xf1] sm:$0xff]
  %v1608 = vld [vmem:[%s1267 + $0x101] sm:$0xff]
  %1625 = vrot.lane.b32.xlu0 %v1577, 4
  %v1626 = vpop.permute.xlu0 %1625
  %1627 = vrot.lane.b32.xlu0 %v1578, 4
  %v1628 = vpop.permute.xlu0 %1627
  %1629 = vrot.lane.b32.xlu0 %v1579, 4
  %v1630 = vpop.permute.xlu0 %1629
  %1631 = vrot.lane.b32.xlu0 %v1580, 4
  %v1632 = vpop.permute.xlu0 %1631
  %1633 = vrot.lane.b32.xlu0 %v1581, 4
  %v1634 = vpop.permute.xlu0 %1633
  %1635 = vrot.lane.b32.xlu0 %v1582, 4
  %v1636 = vpop.permute.xlu0 %1635
  %1637 = vrot.lane.b32.xlu0 %v1583, 4
  %v1638 = vpop.permute.xlu0 %1637
  %1639 = vrot.lane.b32.xlu0 %v1584, 4
  %v1640 = vpop.permute.xlu0 %1639
  %1641 = vrot.lane.b32.xlu0 %v1585, 4
  %v1642 = vpop.permute.xlu0 %1641
  %1643 = vrot.lane.b32.xlu0 %v1586, 4
  %v1644 = vpop.permute.xlu0 %1643
  %1645 = vrot.lane.b32.xlu0 %v1587, 4
  %v1646 = vpop.permute.xlu0 %1645
  %1647 = vrot.lane.b32.xlu0 %v1588, 4
  %v1648 = vpop.permute.xlu0 %1647
  %1649 = vrot.lane.b32.xlu0 %v1589, 4
  %v1650 = vpop.permute.xlu0 %1649
  %1651 = vrot.lane.b32.xlu0 %v1590, 4
  %v1652 = vpop.permute.xlu0 %1651
  %1653 = vrot.lane.b32.xlu0 %v1591, 4
  %v1654 = vpop.permute.xlu0 %1653
  %1655 = vrot.lane.b32.xlu0 %v1592, 4
  %v1656 = vpop.permute.xlu0 %1655
  %1689 = vrot.lane.b32.xlu0 %v1593, 8
  %v1690 = vpop.permute.xlu0 %1689
  %1691 = vrot.lane.b32.xlu0 %v1594, 8
  %v1692 = vpop.permute.xlu0 %1691
  %1693 = vrot.lane.b32.xlu0 %v1595, 8
  %v1694 = vpop.permute.xlu0 %1693
  %1695 = vrot.lane.b32.xlu0 %v1596, 8
  %v1696 = vpop.permute.xlu0 %1695
  %1697 = vrot.lane.b32.xlu0 %v1597, 8
  %v1698 = vpop.permute.xlu0 %1697
  %1699 = vrot.lane.b32.xlu0 %v1598, 8
  %v1700 = vpop.permute.xlu0 %1699
  %1701 = vrot.lane.b32.xlu0 %v1599, 8
  %v1702 = vpop.permute.xlu0 %1701
  %1703 = vrot.lane.b32.xlu0 %v1600, 8
  %v1704 = vpop.permute.xlu0 %1703
  %1705 = vrot.lane.b32.xlu0 %v1601, 8
  %v1706 = vpop.permute.xlu0 %1705
  %1707 = vrot.lane.b32.xlu0 %v1602, 8
  %v1708 = vpop.permute.xlu0 %1707
  %1709 = vrot.lane.b32.xlu0 %v1603, 8
  %v1710 = vpop.permute.xlu0 %1709
  %1711 = vrot.lane.b32.xlu0 %v1604, 8
  %v1712 = vpop.permute.xlu0 %1711
  %1713 = vrot.lane.b32.xlu0 %v1605, 8
  %v1714 = vpop.permute.xlu0 %1713
  %1715 = vrot.lane.b32.xlu0 %v1606, 8
  %v1716 = vpop.permute.xlu0 %1715
  %1717 = vrot.lane.b32.xlu0 %v1607, 8
  %v1718 = vpop.permute.xlu0 %1717
  %1719 = vrot.lane.b32.xlu0 %v1608, 8
  %v1720 = vpop.permute.xlu0 %1719
  %v1737 = vsel %vm249, %v1561, %v1626
  %v1738 = vsel %vm249, %v1562, %v1628
  %v1739 = vsel %vm249, %v1563, %v1630
  %v1740 = vsel %vm249, %v1564, %v1632
  %v1741 = vsel %vm249, %v1565, %v1634
  %v1742 = vsel %vm249, %v1566, %v1636
  %v1743 = vsel %vm249, %v1567, %v1638
  %v1744 = vsel %vm249, %v1568, %v1640
  %v1745 = vsel %vm249, %v1569, %v1642
  %v1746 = vsel %vm249, %v1570, %v1644
  %v1747 = vsel %vm249, %v1571, %v1646
  %v1748 = vsel %vm249, %v1572, %v1648
  %v1749 = vsel %vm249, %v1573, %v1650
  %v1750 = vsel %vm249, %v1574, %v1652
  %v1751 = vsel %vm249, %v1575, %v1654
  %v1752 = vsel %vm249, %v1576, %v1656
  %v1753 = vsel %vm1534, %v1737, %v1690
  %v1754 = vsel %vm1534, %v1738, %v1692
  %v1755 = vsel %vm1534, %v1739, %v1694
  %v1756 = vsel %vm1534, %v1740, %v1696
  %v1757 = vsel %vm1534, %v1741, %v1698
  %v1758 = vsel %vm1534, %v1742, %v1700
  %v1759 = vsel %vm1534, %v1743, %v1702
  %v1760 = vsel %vm1534, %v1744, %v1704
  %v1761 = vsel %vm1534, %v1745, %v1706
  %v1762 = vsel %vm1534, %v1746, %v1708
  %v1763 = vsel %vm1534, %v1747, %v1710
  %v1764 = vsel %vm1534, %v1748, %v1712
  %v1765 = vsel %vm1534, %v1749, %v1714
  %v1766 = vsel %vm1534, %v1750, %v1716
  %v1767 = vsel %vm1534, %v1751, %v1718
  %v1768 = vsel %vm1534, %v1752, %v1720
  %v1769 = vpack.c.bf16 %v1754, %v1753
  %v1770 = vpack.c.bf16 %v1756, %v1755
  %v1771 = vpack.c.bf16 %v1758, %v1757
  %v1772 = vpack.c.bf16 %v1760, %v1759
  %v1773 = vpack.c.bf16 %v1762, %v1761
  %v1774 = vpack.c.bf16 %v1764, %v1763
  %v1775 = vpack.c.bf16 %v1766, %v1765
  %v1776 = vpack.c.bf16 %v1768, %v1767
  %s1777 = scalar_lea.vmem %s2, 8
  %v1778 = vld [vmem:[%s1777] sm:$0xf]
  %v1779 = vld [vmem:[%s1777 + $0x4] sm:$0x3]
  %v1782 = vunpack.c.l.b16 %v1778
  %v1783 = vunpack.c.l.b16 %v1779
  %v1784 = vpack.c.b16 %v1783, %v1782
  %vm1785 = vcmask 97280
  %v1787 = vsel %vm1785, %v1769, 0
  %v1790 = vsel %vm1785, %v1770, 0
  %v1793 = vsel %vm1785, %v1771, 0
  %v1796 = vsel %vm1785, %v1772, 0
  %v1799 = vsel %vm1785, %v1773, 0
  %v1802 = vsel %vm1785, %v1774, 0
  %v1805 = vsel %vm1785, %v1775, 0
  %v1808 = vsel %vm1785, %v1776, 0
  %vm1810 = vcmask 1045504
  %v1812 = vsel %vm1810, %v1784, 0
  %1814 = vmatprep.subr.bf16.mxu0 0
  %1815 = vmatpush1.bf16.msra.mxu0 0
  %1816 = vmatprep.subr.bf16.mxu0 0
  %1817 = vmatpush1.bf16.msra.mxu0 0
  %1818 = vmatprep.subr.bf16.mxu0 0
  %1819 = vmatpush1.bf16.msra.mxu0 0
  %1820 = vmatprep.subr.bf16.mxu0 0
  %1821 = vmatpush1.bf16.msra.mxu0 0
  %1822 = vmatprep.subr.bf16.mxu0 0
  %1823 = vmatpush1.bf16.msra.mxu0 0
  %1824 = vmatprep.subr.bf16.mxu0 0
  %1825 = vmatpush1.bf16.msra.mxu0 0
  %1826 = vmatprep.subr.bf16.mxu0 0
  %1827 = vmatpush1.bf16.msra.mxu0 0
  %1828 = vmatprep.subr.bf16.mxu0 0
  %1829 = vmatpush1.bf16.msra.mxu0 %v1812
  %1830 = vmatprep.subr.bf16.mxu0 0
  %1831 = vmatpush2.bf16.msra.mxu0 0
  %1832 = vmatprep.subr.bf16.mxu0 0
  %1833 = vmatpush2.bf16.msra.mxu0 0
  %1834 = vmatprep.subr.bf16.mxu0 0
  %1835 = vmatpush2.bf16.msra.mxu0 0
  %1836 = vmatprep.subr.bf16.mxu0 0
  %1837 = vmatpush2.bf16.msra.mxu0 0
  %1838 = vmatprep.subr.bf16.mxu0 0
  %1839 = vmatpush2.bf16.msra.mxu0 0
  %1840 = vmatprep.subr.bf16.mxu0 0
  %1841 = vmatpush2.bf16.msra.mxu0 0
  %1842 = vmatprep.subr.bf16.mxu0 0
  %1843 = vmatpush2.bf16.msra.mxu0 0
  %1844 = vmatprep.subr.bf16.mxu0 0
  %1845 = vmatpush2.bf16.msra.mxu0 0
  %1846 = vmatprep.mubr.bf16.mxu0 0
  %1847 = vmatmul.mubr.bf16.gmra.mxu0 %v1787
  %v1848 = vpop.f32.mrf.mxu0
  %v1849 = vadd.f32 0.0, %v1848
  %v1850 = vpop.f32.mrf.mxu0
  %v1851 = vpop.f32.mrf.mxu0
  %v1852 = vadd.f32 0.0, %v1851
  %v1853 = vpop.f32.mrf.mxu0
  %1854 = vmatprep.mubr.bf16.mxu0 0
  %1855 = vmatmul.mubr.bf16.gmra.mxu0 %v1790
  %v1856 = vpop.f32.mrf.mxu0
  %v1857 = vadd.f32 0.0, %v1856
  %v1858 = vpop.f32.mrf.mxu0
  %v1859 = vpop.f32.mrf.mxu0
  %v1860 = vadd.f32 0.0, %v1859
  %v1861 = vpop.f32.mrf.mxu0
  %1862 = vmatprep.mubr.bf16.mxu0 0
  %1863 = vmatmul.mubr.bf16.gmra.mxu0 %v1793
  %v1864 = vpop.f32.mrf.mxu0
  %v1865 = vadd.f32 0.0, %v1864
  %v1866 = vpop.f32.mrf.mxu0
  %v1867 = vpop.f32.mrf.mxu0
  %v1868 = vadd.f32 0.0, %v1867
  %v1869 = vpop.f32.mrf.mxu0
  %1870 = vmatprep.mubr.bf16.mxu0 0
  %1871 = vmatmul.mubr.bf16.gmra.mxu0 %v1796
  %v1872 = vpop.f32.mrf.mxu0
  %v1873 = vadd.f32 0.0, %v1872
  %v1874 = vpop.f32.mrf.mxu0
  %v1875 = vpop.f32.mrf.mxu0
  %v1876 = vadd.f32 0.0, %v1875
  %v1877 = vpop.f32.mrf.mxu0
  %1878 = vmatprep.mubr.bf16.mxu0 0
  %1879 = vmatmul.mubr.bf16.gmra.mxu0 %v1799
  %v1880 = vpop.f32.mrf.mxu0
  %v1881 = vadd.f32 0.0, %v1880
  %v1882 = vpop.f32.mrf.mxu0
  %v1883 = vpop.f32.mrf.mxu0
  %v1884 = vadd.f32 0.0, %v1883
  %v1885 = vpop.f32.mrf.mxu0
  %1886 = vmatprep.mubr.bf16.mxu0 0
  %1887 = vmatmul.mubr.bf16.gmra.mxu0 %v1802
  %v1888 = vpop.f32.mrf.mxu0
  %v1889 = vadd.f32 0.0, %v1888
  %v1890 = vpop.f32.mrf.mxu0
  %v1891 = vpop.f32.mrf.mxu0
  %v1892 = vadd.f32 0.0, %v1891
  %v1893 = vpop.f32.mrf.mxu0
  %1894 = vmatprep.mubr.bf16.mxu0 0
  %1895 = vmatmul.mubr.bf16.gmra.mxu0 %v1805
  %v1896 = vpop.f32.mrf.mxu0
  %v1897 = vadd.f32 0.0, %v1896
  %v1898 = vpop.f32.mrf.mxu0
  %v1899 = vpop.f32.mrf.mxu0
  %v1900 = vadd.f32 0.0, %v1899
  %v1901 = vpop.f32.mrf.mxu0
  %1902 = vmatprep.mubr.bf16.mxu0 0
  %1903 = vmatmul.mubr.bf16.gmra.mxu0 %v1808
  %v1904 = vpop.f32.mrf.mxu0
  %v1905 = vadd.f32 0.0, %v1904
  %v1906 = vpop.f32.mrf.mxu0
  %v1907 = vpop.f32.mrf.mxu0
  %v1908 = vadd.f32 0.0, %v1907
  %v1909 = vpop.f32.mrf.mxu0
  %1910 = vdwg.mxu0
  %v1913 = vunpack.c.l.b16 %v1559
  %v1914 = vunpack.c.l.b16 %v1560
  %v1915 = vpack.c.b16 %v1914, %v1913
  %v1917 = vsel %vm1785, %v1551, 0
  %v1920 = vsel %vm1785, %v1552, 0
  %v1923 = vsel %vm1785, %v1553, 0
  %v1926 = vsel %vm1785, %v1554, 0
  %v1929 = vsel %vm1785, %v1555, 0
  %v1932 = vsel %vm1785, %v1556, 0
  %v1935 = vsel %vm1785, %v1557, 0
  %v1938 = vsel %vm1785, %v1558, 0
  %v1941 = vsel %vm1810, %v1915, 0
  %1943 = vmatprep.subr.bf16.mxu0 0
  %1944 = vmatpush1.bf16.msra.mxu0 0
  %1945 = vmatprep.subr.bf16.mxu0 0
  %1946 = vmatpush1.bf16.msra.mxu0 0
  %1947 = vmatprep.subr.bf16.mxu0 0
  %1948 = vmatpush1.bf16.msra.mxu0 0
  %1949 = vmatprep.subr.bf16.mxu0 0
  %1950 = vmatpush1.bf16.msra.mxu0 0
  %1951 = vmatprep.subr.bf16.mxu0 0
  %1952 = vmatpush1.bf16.msra.mxu0 0
  %1953 = vmatprep.subr.bf16.mxu0 0
  %1954 = vmatpush1.bf16.msra.mxu0 0
  %1955 = vmatprep.subr.bf16.mxu0 0
  %1956 = vmatpush1.bf16.msra.mxu0 0
  %1957 = vmatprep.subr.bf16.mxu0 0
  %1958 = vmatpush1.bf16.msra.mxu0 %v1941
  %1959 = vmatprep.subr.bf16.mxu0 0
  %1960 = vmatpush2.bf16.msra.mxu0 0
  %1961 = vmatprep.subr.bf16.mxu0 0
  %1962 = vmatpush2.bf16.msra.mxu0 0
  %1963 = vmatprep.subr.bf16.mxu0 0
  %1964 = vmatpush2.bf16.msra.mxu0 0
  %1965 = vmatprep.subr.bf16.mxu0 0
  %1966 = vmatpush2.bf16.msra.mxu0 0
  %1967 = vmatprep.subr.bf16.mxu0 0
  %1968 = vmatpush2.bf16.msra.mxu0 0
  %1969 = vmatprep.subr.bf16.mxu0 0
  %1970 = vmatpush2.bf16.msra.mxu0 0
  %1971 = vmatprep.subr.bf16.mxu0 0
  %1972 = vmatpush2.bf16.msra.mxu0 0
  %1973 = vmatprep.subr.bf16.mxu0 0
  %1974 = vmatpush2.bf16.msra.mxu0 0
  %1975 = vmatprep.mubr.bf16.mxu0 0
  %1976 = vmatmul.mubr.bf16.gmra.mxu0 %v1917
  %v1977 = vpop.f32.mrf.mxu0
  %v1978 = vadd.f32 %v1849, %v1977
  %v1979 = vpop.f32.mrf.mxu0
  %v1980 = vpop.f32.mrf.mxu0
  %v1981 = vadd.f32 %v1852, %v1980
  %v1982 = vpop.f32.mrf.mxu0
  %1983 = vmatprep.mubr.bf16.mxu0 0
  %1984 = vmatmul.mubr.bf16.gmra.mxu0 %v1920
  %v1985 = vpop.f32.mrf.mxu0
  %v1986 = vadd.f32 %v1857, %v1985
  %v1987 = vpop.f32.mrf.mxu0
  %v1988 = vpop.f32.mrf.mxu0
  %v1989 = vadd.f32 %v1860, %v1988
  %v1990 = vpop.f32.mrf.mxu0
  %1991 = vmatprep.mubr.bf16.mxu0 0
  %1992 = vmatmul.mubr.bf16.gmra.mxu0 %v1923
  %v1993 = vpop.f32.mrf.mxu0
  %v1994 = vadd.f32 %v1865, %v1993
  %v1995 = vpop.f32.mrf.mxu0
  %v1996 = vpop.f32.mrf.mxu0
  %v1997 = vadd.f32 %v1868, %v1996
  %v1998 = vpop.f32.mrf.mxu0
  %1999 = vmatprep.mubr.bf16.mxu0 0
  %2000 = vmatmul.mubr.bf16.gmra.mxu0 %v1926
  %v2001 = vpop.f32.mrf.mxu0
  %v2002 = vadd.f32 %v1873, %v2001
  %v2003 = vpop.f32.mrf.mxu0
  %v2004 = vpop.f32.mrf.mxu0
  %v2005 = vadd.f32 %v1876, %v2004
  %v2006 = vpop.f32.mrf.mxu0
  %2007 = vmatprep.mubr.bf16.mxu0 0
  %2008 = vmatmul.mubr.bf16.gmra.mxu0 %v1929
  %v2009 = vpop.f32.mrf.mxu0
  %v2010 = vadd.f32 %v1881, %v2009
  %v2011 = vpop.f32.mrf.mxu0
  %v2012 = vpop.f32.mrf.mxu0
  %v2013 = vadd.f32 %v1884, %v2012
  %v2014 = vpop.f32.mrf.mxu0
  %2015 = vmatprep.mubr.bf16.mxu0 0
  %2016 = vmatmul.mubr.bf16.gmra.mxu0 %v1932
  %v2017 = vpop.f32.mrf.mxu0
  %v2018 = vadd.f32 %v1889, %v2017
  %v2019 = vpop.f32.mrf.mxu0
  %v2020 = vpop.f32.mrf.mxu0
  %v2021 = vadd.f32 %v1892, %v2020
  %v2022 = vpop.f32.mrf.mxu0
  %2023 = vmatprep.mubr.bf16.mxu0 0
  %2024 = vmatmul.mubr.bf16.gmra.mxu0 %v1935
  %v2025 = vpop.f32.mrf.mxu0
  %v2026 = vadd.f32 %v1897, %v2025
  %v2027 = vpop.f32.mrf.mxu0
  %v2028 = vpop.f32.mrf.mxu0
  %v2029 = vadd.f32 %v1900, %v2028
  %v2030 = vpop.f32.mrf.mxu0
  %2031 = vmatprep.mubr.bf16.mxu0 0
  %2032 = vmatmul.mubr.bf16.gmra.mxu0 %v1938
  %v2033 = vpop.f32.mrf.mxu0
  %v2034 = vadd.f32 %v1905, %v2033
  %v2035 = vpop.f32.mrf.mxu0
  %v2036 = vpop.f32.mrf.mxu0
  %v2037 = vadd.f32 %v1908, %v2036
  %v2038 = vpop.f32.mrf.mxu0
  %2039 = vdwg.mxu0
  %v2040 = vld [vmem:[%s1205] sm:$0xff]
  %v2041 = vld [vmem:[%s1205 + $0x10] sm:$0xff]
  %v2042 = vld [vmem:[%s1205 + $0x20] sm:$0xff]
  %v2043 = vld [vmem:[%s1205 + $0x30] sm:$0xff]
  %v2044 = vld [vmem:[%s1205 + $0x40] sm:$0xff]
  %v2045 = vld [vmem:[%s1205 + $0x50] sm:$0xff]
  %v2046 = vld [vmem:[%s1205 + $0x60] sm:$0xff]
  %v2047 = vld [vmem:[%s1205 + $0x70] sm:$0xff]
  %v2048 = vld [vmem:[%s1205 + $0x90] sm:$0xff]
  %v2049 = vld [vmem:[%s1205 + $0xa0] sm:$0xff]
  %v2050 = vld [vmem:[%s1205 + $0xb0] sm:$0xff]
  %v2051 = vld [vmem:[%s1205 + $0xc0] sm:$0xff]
  %v2052 = vld [vmem:[%s1205 + $0xd0] sm:$0xff]
  %v2053 = vld [vmem:[%s1205 + $0xe0] sm:$0xff]
  %v2054 = vld [vmem:[%s1205 + $0xf0] sm:$0xff]
  %v2055 = vld [vmem:[%s1205 + $0x100] sm:$0xff]
  %v2056 = vld [vmem:[%s1245] sm:$0xff]
  %v2057 = vld [vmem:[%s1245 + $0x10] sm:$0xff]
  %v2058 = vld [vmem:[%s1245 + $0x20] sm:$0xff]
  %v2059 = vld [vmem:[%s1245 + $0x30] sm:$0xff]
  %v2060 = vld [vmem:[%s1245 + $0x40] sm:$0xff]
  %v2061 = vld [vmem:[%s1245 + $0x50] sm:$0xff]
  %v2062 = vld [vmem:[%s1245 + $0x60] sm:$0xff]
  %v2063 = vld [vmem:[%s1245 + $0x70] sm:$0xff]
  %v2064 = vld [vmem:[%s1245 + $0x90] sm:$0xff]
  %v2065 = vld [vmem:[%s1245 + $0xa0] sm:$0xff]
  %v2066 = vld [vmem:[%s1245 + $0xb0] sm:$0xff]
  %v2067 = vld [vmem:[%s1245 + $0xc0] sm:$0xff]
  %v2068 = vld [vmem:[%s1245 + $0xd0] sm:$0xff]
  %v2069 = vld [vmem:[%s1245 + $0xe0] sm:$0xff]
  %v2070 = vld [vmem:[%s1245 + $0xf0] sm:$0xff]
  %v2071 = vld [vmem:[%s1245 + $0x100] sm:$0xff]
  %v2072 = vld [vmem:[%s1205 + $0x1] sm:$0xff]
  %v2073 = vld [vmem:[%s1205 + $0x11] sm:$0xff]
  %v2074 = vld [vmem:[%s1205 + $0x21] sm:$0xff]
  %v2075 = vld [vmem:[%s1205 + $0x31] sm:$0xff]
  %v2076 = vld [vmem:[%s1205 + $0x41] sm:$0xff]
  %v2077 = vld [vmem:[%s1205 + $0x51] sm:$0xff]
  %v2078 = vld [vmem:[%s1205 + $0x61] sm:$0xff]
  %v2079 = vld [vmem:[%s1205 + $0x71] sm:$0xff]
  %v2080 = vld [vmem:[%s1205 + $0x91] sm:$0xff]
  %v2081 = vld [vmem:[%s1205 + $0xa1] sm:$0xff]
  %v2082 = vld [vmem:[%s1205 + $0xb1] sm:$0xff]
  %v2083 = vld [vmem:[%s1205 + $0xc1] sm:$0xff]
  %v2084 = vld [vmem:[%s1205 + $0xd1] sm:$0xff]
  %v2085 = vld [vmem:[%s1205 + $0xe1] sm:$0xff]
  %v2086 = vld [vmem:[%s1205 + $0xf1] sm:$0xff]
  %v2087 = vld [vmem:[%s1205 + $0x101] sm:$0xff]
  %2104 = vrot.lane.b32.xlu0 %v2056, 4
  %v2105 = vpop.permute.xlu0 %2104
  %2106 = vrot.lane.b32.xlu0 %v2057, 4
  %v2107 = vpop.permute.xlu0 %2106
  %2108 = vrot.lane.b32.xlu0 %v2058, 4
  %v2109 = vpop.permute.xlu0 %2108
  %2110 = vrot.lane.b32.xlu0 %v2059, 4
  %v2111 = vpop.permute.xlu0 %2110
  %2112 = vrot.lane.b32.xlu0 %v2060, 4
  %v2113 = vpop.permute.xlu0 %2112
  %2114 = vrot.lane.b32.xlu0 %v2061, 4
  %v2115 = vpop.permute.xlu0 %2114
  %2116 = vrot.lane.b32.xlu0 %v2062, 4
  %v2117 = vpop.permute.xlu0 %2116
  %2118 = vrot.lane.b32.xlu0 %v2063, 4
  %v2119 = vpop.permute.xlu0 %2118
  %2120 = vrot.lane.b32.xlu0 %v2064, 4
  %v2121 = vpop.permute.xlu0 %2120
  %2122 = vrot.lane.b32.xlu0 %v2065, 4
  %v2123 = vpop.permute.xlu0 %2122
  %2124 = vrot.lane.b32.xlu0 %v2066, 4
  %v2125 = vpop.permute.xlu0 %2124
  %2126 = vrot.lane.b32.xlu0 %v2067, 4
  %v2127 = vpop.permute.xlu0 %2126
  %2128 = vrot.lane.b32.xlu0 %v2068, 4
  %v2129 = vpop.permute.xlu0 %2128
  %2130 = vrot.lane.b32.xlu0 %v2069, 4
  %v2131 = vpop.permute.xlu0 %2130
  %2132 = vrot.lane.b32.xlu0 %v2070, 4
  %v2133 = vpop.permute.xlu0 %2132
  %2134 = vrot.lane.b32.xlu0 %v2071, 4
  %v2135 = vpop.permute.xlu0 %2134
  %2168 = vrot.lane.b32.xlu0 %v2072, 8
  %v2169 = vpop.permute.xlu0 %2168
  %2170 = vrot.lane.b32.xlu0 %v2073, 8
  %v2171 = vpop.permute.xlu0 %2170
  %2172 = vrot.lane.b32.xlu0 %v2074, 8
  %v2173 = vpop.permute.xlu0 %2172
  %2174 = vrot.lane.b32.xlu0 %v2075, 8
  %v2175 = vpop.permute.xlu0 %2174
  %2176 = vrot.lane.b32.xlu0 %v2076, 8
  %v2177 = vpop.permute.xlu0 %2176
  %2178 = vrot.lane.b32.xlu0 %v2077, 8
  %v2179 = vpop.permute.xlu0 %2178
  %2180 = vrot.lane.b32.xlu0 %v2078, 8
  %v2181 = vpop.permute.xlu0 %2180
  %2182 = vrot.lane.b32.xlu0 %v2079, 8
  %v2183 = vpop.permute.xlu0 %2182
  %2184 = vrot.lane.b32.xlu0 %v2080, 8
  %v2185 = vpop.permute.xlu0 %2184
  %2186 = vrot.lane.b32.xlu0 %v2081, 8
  %v2187 = vpop.permute.xlu0 %2186
  %2188 = vrot.lane.b32.xlu0 %v2082, 8
  %v2189 = vpop.permute.xlu0 %2188
  %2190 = vrot.lane.b32.xlu0 %v2083, 8
  %v2191 = vpop.permute.xlu0 %2190
  %2192 = vrot.lane.b32.xlu0 %v2084, 8
  %v2193 = vpop.permute.xlu0 %2192
  %2194 = vrot.lane.b32.xlu0 %v2085, 8
  %v2195 = vpop.permute.xlu0 %2194
  %2196 = vrot.lane.b32.xlu0 %v2086, 8
  %v2197 = vpop.permute.xlu0 %2196
  %2198 = vrot.lane.b32.xlu0 %v2087, 8
  %v2199 = vpop.permute.xlu0 %2198
  %v2216 = vsel %vm249, %v2040, %v2105
  %v2217 = vsel %vm249, %v2041, %v2107
  %v2218 = vsel %vm249, %v2042, %v2109
  %v2219 = vsel %vm249, %v2043, %v2111
  %v2220 = vsel %vm249, %v2044, %v2113
  %v2221 = vsel %vm249, %v2045, %v2115
  %v2222 = vsel %vm249, %v2046, %v2117
  %v2223 = vsel %vm249, %v2047, %v2119
  %v2224 = vsel %vm249, %v2048, %v2121
  %v2225 = vsel %vm249, %v2049, %v2123
  %v2226 = vsel %vm249, %v2050, %v2125
  %v2227 = vsel %vm249, %v2051, %v2127
  %v2228 = vsel %vm249, %v2052, %v2129
  %v2229 = vsel %vm249, %v2053, %v2131
  %v2230 = vsel %vm249, %v2054, %v2133
  %v2231 = vsel %vm249, %v2055, %v2135
  %v2232 = vsel %vm1534, %v2216, %v2169
  %v2233 = vsel %vm1534, %v2217, %v2171
  %v2234 = vsel %vm1534, %v2218, %v2173
  %v2235 = vsel %vm1534, %v2219, %v2175
  %v2236 = vsel %vm1534, %v2220, %v2177
  %v2237 = vsel %vm1534, %v2221, %v2179
  %v2238 = vsel %vm1534, %v2222, %v2181
  %v2239 = vsel %vm1534, %v2223, %v2183
  %v2240 = vsel %vm1534, %v2224, %v2185
  %v2241 = vsel %vm1534, %v2225, %v2187
  %v2242 = vsel %vm1534, %v2226, %v2189
  %v2243 = vsel %vm1534, %v2227, %v2191
  %v2244 = vsel %vm1534, %v2228, %v2193
  %v2245 = vsel %vm1534, %v2229, %v2195
  %v2246 = vsel %vm1534, %v2230, %v2197
  %v2247 = vsel %vm1534, %v2231, %v2199
  %v2248 = vpack.c.bf16 %v2233, %v2232
  %v2249 = vpack.c.bf16 %v2235, %v2234
  %v2250 = vpack.c.bf16 %v2237, %v2236
  %v2251 = vpack.c.bf16 %v2239, %v2238
  %v2252 = vpack.c.bf16 %v2241, %v2240
  %v2253 = vpack.c.bf16 %v2243, %v2242
  %v2254 = vpack.c.bf16 %v2245, %v2244
  %v2255 = vpack.c.bf16 %v2247, %v2246
  %s2256 = scalar_lea.vmem %s2, 16
  %v2257 = vld [vmem:[%s2256] sm:$0xf]
  %v2258 = vld [vmem:[%s2256 + $0x4] sm:$0x3]
  %v2261 = vunpack.c.l.b16 %v2257
  %v2262 = vunpack.c.l.b16 %v2258
  %v2263 = vpack.c.b16 %v2262, %v2261
  %v2265 = vsel %vm1785, %v2248, 0
  %v2268 = vsel %vm1785, %v2249, 0
  %v2271 = vsel %vm1785, %v2250, 0
  %v2274 = vsel %vm1785, %v2251, 0
  %v2277 = vsel %vm1785, %v2252, 0
  %v2280 = vsel %vm1785, %v2253, 0
  %v2283 = vsel %vm1785, %v2254, 0
  %v2286 = vsel %vm1785, %v2255, 0
  %v2289 = vsel %vm1810, %v2263, 0
  %2291 = vmatprep.subr.bf16.mxu0 0
  %2292 = vmatpush1.bf16.msra.mxu0 0
  %2293 = vmatprep.subr.bf16.mxu0 0
  %2294 = vmatpush1.bf16.msra.mxu0 0
  %2295 = vmatprep.subr.bf16.mxu0 0
  %2296 = vmatpush1.bf16.msra.mxu0 0
  %2297 = vmatprep.subr.bf16.mxu0 0
  %2298 = vmatpush1.bf16.msra.mxu0 0
  %2299 = vmatprep.subr.bf16.mxu0 0
  %2300 = vmatpush1.bf16.msra.mxu0 0
  %2301 = vmatprep.subr.bf16.mxu0 0
  %2302 = vmatpush1.bf16.msra.mxu0 0
  %2303 = vmatprep.subr.bf16.mxu0 0
  %2304 = vmatpush1.bf16.msra.mxu0 0
  %2305 = vmatprep.subr.bf16.mxu0 0
  %2306 = vmatpush1.bf16.msra.mxu0 %v2289
  %2307 = vmatprep.subr.bf16.mxu0 0
  %2308 = vmatpush2.bf16.msra.mxu0 0
  %2309 = vmatprep.subr.bf16.mxu0 0
  %2310 = vmatpush2.bf16.msra.mxu0 0
  %2311 = vmatprep.subr.bf16.mxu0 0
  %2312 = vmatpush2.bf16.msra.mxu0 0
  %2313 = vmatprep.subr.bf16.mxu0 0
  %2314 = vmatpush2.bf16.msra.mxu0 0
  %2315 = vmatprep.subr.bf16.mxu0 0
  %2316 = vmatpush2.bf16.msra.mxu0 0
  %2317 = vmatprep.subr.bf16.mxu0 0
  %2318 = vmatpush2.bf16.msra.mxu0 0
  %2319 = vmatprep.subr.bf16.mxu0 0
  %2320 = vmatpush2.bf16.msra.mxu0 0
  %2321 = vmatprep.subr.bf16.mxu0 0
  %2322 = vmatpush2.bf16.msra.mxu0 0
  %2323 = vmatprep.mubr.bf16.mxu0 0
  %2324 = vmatmul.mubr.bf16.gmra.mxu0 %v2265
  %v2325 = vpop.f32.mrf.mxu0
  %v2326 = vadd.f32 0.0, %v2325
  %v2327 = vpop.f32.mrf.mxu0
  %v2328 = vpop.f32.mrf.mxu0
  %v2329 = vadd.f32 0.0, %v2328
  %v2330 = vpop.f32.mrf.mxu0
  %2331 = vmatprep.mubr.bf16.mxu0 0
  %2332 = vmatmul.mubr.bf16.gmra.mxu0 %v2268
  %v2333 = vpop.f32.mrf.mxu0
  %v2334 = vadd.f32 0.0, %v2333
  %v2335 = vpop.f32.mrf.mxu0
  %v2336 = vpop.f32.mrf.mxu0
  %v2337 = vadd.f32 0.0, %v2336
  %v2338 = vpop.f32.mrf.mxu0
  %2339 = vmatprep.mubr.bf16.mxu0 0
  %2340 = vmatmul.mubr.bf16.gmra.mxu0 %v2271
  %v2341 = vpop.f32.mrf.mxu0
  %v2342 = vadd.f32 0.0, %v2341
  %v2343 = vpop.f32.mrf.mxu0
  %v2344 = vpop.f32.mrf.mxu0
  %v2345 = vadd.f32 0.0, %v2344
  %v2346 = vpop.f32.mrf.mxu0
  %2347 = vmatprep.mubr.bf16.mxu0 0
  %2348 = vmatmul.mubr.bf16.gmra.mxu0 %v2274
  %v2349 = vpop.f32.mrf.mxu0
  %v2350 = vadd.f32 0.0, %v2349
  %v2351 = vpop.f32.mrf.mxu0
  %v2352 = vpop.f32.mrf.mxu0
  %v2353 = vadd.f32 0.0, %v2352
  %v2354 = vpop.f32.mrf.mxu0
  %2355 = vmatprep.mubr.bf16.mxu0 0
  %2356 = vmatmul.mubr.bf16.gmra.mxu0 %v2277
  %v2357 = vpop.f32.mrf.mxu0
  %v2358 = vadd.f32 0.0, %v2357
  %v2359 = vpop.f32.mrf.mxu0
  %v2360 = vpop.f32.mrf.mxu0
  %v2361 = vadd.f32 0.0, %v2360
  %v2362 = vpop.f32.mrf.mxu0
  %2363 = vmatprep.mubr.bf16.mxu0 0
  %2364 = vmatmul.mubr.bf16.gmra.mxu0 %v2280
  %v2365 = vpop.f32.mrf.mxu0
  %v2366 = vadd.f32 0.0, %v2365
  %v2367 = vpop.f32.mrf.mxu0
  %v2368 = vpop.f32.mrf.mxu0
  %v2369 = vadd.f32 0.0, %v2368
  %v2370 = vpop.f32.mrf.mxu0
  %2371 = vmatprep.mubr.bf16.mxu0 0
  %2372 = vmatmul.mubr.bf16.gmra.mxu0 %v2283
  %v2373 = vpop.f32.mrf.mxu0
  %v2374 = vadd.f32 0.0, %v2373
  %v2375 = vpop.f32.mrf.mxu0
  %v2376 = vpop.f32.mrf.mxu0
  %v2377 = vadd.f32 0.0, %v2376
  %v2378 = vpop.f32.mrf.mxu0
  %2379 = vmatprep.mubr.bf16.mxu0 0
  %2380 = vmatmul.mubr.bf16.gmra.mxu0 %v2286
  %v2381 = vpop.f32.mrf.mxu0
  %v2382 = vadd.f32 0.0, %v2381
  %v2383 = vpop.f32.mrf.mxu0
  %v2384 = vpop.f32.mrf.mxu0
  %v2385 = vadd.f32 0.0, %v2384
  %v2386 = vpop.f32.mrf.mxu0
  %2387 = vdwg.mxu0
  %v2388 = vadd.f32 %v1978, %v2326
  %v2389 = vadd.f32 %v1981, %v2329
  %v2390 = vadd.f32 %v1986, %v2334
  %v2391 = vadd.f32 %v1989, %v2337
  %v2392 = vadd.f32 %v1994, %v2342
  %v2393 = vadd.f32 %v1997, %v2345
  %v2394 = vadd.f32 %v2002, %v2350
  %v2395 = vadd.f32 %v2005, %v2353
  %v2396 = vadd.f32 %v2010, %v2358
  %v2397 = vadd.f32 %v2013, %v2361
  %v2398 = vadd.f32 %v2018, %v2366
  %v2399 = vadd.f32 %v2021, %v2369
  %v2400 = vadd.f32 %v2026, %v2374
  %v2401 = vadd.f32 %v2029, %v2377
  %v2402 = vadd.f32 %v2034, %v2382
  %v2403 = vadd.f32 %v2037, %v2385
  %v2404 = vld [vmem:[%s5 + $0x2] sm:$0x1]
  %v2405 = vld [vmem:[%s5 + $0x3] sm:$0x1]
  %v2406 = vsel %vm249, %v2388, 0.0
  %v2407 = vsel %vm249, %v2389, 0.0
  %v2408 = vadd.f32 %v2406, %v2407
  %v2409 = vsel %vm249, %v2390, 0.0
  %v2410 = vadd.f32 %v2408, %v2409
  %v2411 = vsel %vm249, %v2391, 0.0
  %v2412 = vadd.f32 %v2410, %v2411
  %v2413 = vsel %vm249, %v2392, 0.0
  %v2414 = vadd.f32 %v2412, %v2413
  %v2415 = vsel %vm249, %v2393, 0.0
  %v2416 = vadd.f32 %v2414, %v2415
  %v2417 = vsel %vm249, %v2394, 0.0
  %v2418 = vadd.f32 %v2416, %v2417
  %v2419 = vsel %vm249, %v2395, 0.0
  %v2420 = vadd.f32 %v2418, %v2419
  %v2421 = vsel %vm249, %v2396, 0.0
  %v2422 = vadd.f32 %v2420, %v2421
  %v2423 = vsel %vm249, %v2397, 0.0
  %v2424 = vadd.f32 %v2422, %v2423
  %v2425 = vsel %vm249, %v2398, 0.0
  %v2426 = vadd.f32 %v2424, %v2425
  %v2427 = vsel %vm249, %v2399, 0.0
  %v2428 = vadd.f32 %v2426, %v2427
  %v2429 = vsel %vm249, %v2400, 0.0
  %v2430 = vadd.f32 %v2428, %v2429
  %v2431 = vsel %vm249, %v2401, 0.0
  %v2432 = vadd.f32 %v2430, %v2431
  %v2433 = vsel %vm249, %v2402, 0.0
  %v2434 = vadd.f32 %v2432, %v2433
  %v2435 = vsel %vm249, %v2403, 0.0
  %v2436 = vadd.f32 %v2434, %v2435
  %v2437 = vrot.slane %v2436, 4
  %v2438 = vadd.f32 %v2436, %v2437
  %v2439 = vrot.slane %v2438, 2
  %v2440 = vadd.f32 %v2438, %v2439
  %v2441 = vrot.slane %v2440, 1
  %v2442 = vadd.f32 %v2440, %v2441
  %v2443 = vrcp.pop 128.0
  %v2444 = vmul.f32 %v2442, %v2443
  %v2445 = vmul.f32 %v2388, %v2388
  %v2446 = vmul.f32 %v2389, %v2389
  %v2447 = vmul.f32 %v2390, %v2390
  %v2448 = vmul.f32 %v2391, %v2391
  %v2449 = vmul.f32 %v2392, %v2392
  %v2450 = vmul.f32 %v2393, %v2393
  %v2451 = vmul.f32 %v2394, %v2394
  %v2452 = vmul.f32 %v2395, %v2395
  %v2453 = vmul.f32 %v2396, %v2396
  %v2454 = vmul.f32 %v2397, %v2397
  %v2455 = vmul.f32 %v2398, %v2398
  %v2456 = vmul.f32 %v2399, %v2399
  %v2457 = vmul.f32 %v2400, %v2400
  %v2458 = vmul.f32 %v2401, %v2401
  %v2459 = vmul.f32 %v2402, %v2402
  %v2460 = vmul.f32 %v2403, %v2403
  %v2461 = vsel %vm249, %v2445, 0.0
  %v2462 = vsel %vm249, %v2446, 0.0
  %v2463 = vadd.f32 %v2461, %v2462
  %v2464 = vsel %vm249, %v2447, 0.0
  %v2465 = vadd.f32 %v2463, %v2464
  %v2466 = vsel %vm249, %v2448, 0.0
  %v2467 = vadd.f32 %v2465, %v2466
  %v2468 = vsel %vm249, %v2449, 0.0
  %v2469 = vadd.f32 %v2467, %v2468
  %v2470 = vsel %vm249, %v2450, 0.0
  %v2471 = vadd.f32 %v2469, %v2470
  %v2472 = vsel %vm249, %v2451, 0.0
  %v2473 = vadd.f32 %v2471, %v2472
  %v2474 = vsel %vm249, %v2452, 0.0
  %v2475 = vadd.f32 %v2473, %v2474
  %v2476 = vsel %vm249, %v2453, 0.0
  %v2477 = vadd.f32 %v2475, %v2476
  %v2478 = vsel %vm249, %v2454, 0.0
  %v2479 = vadd.f32 %v2477, %v2478
  %v2480 = vsel %vm249, %v2455, 0.0
  %v2481 = vadd.f32 %v2479, %v2480
  %v2482 = vsel %vm249, %v2456, 0.0
  %v2483 = vadd.f32 %v2481, %v2482
  %v2484 = vsel %vm249, %v2457, 0.0
  %v2485 = vadd.f32 %v2483, %v2484
  %v2486 = vsel %vm249, %v2458, 0.0
  %v2487 = vadd.f32 %v2485, %v2486
  %v2488 = vsel %vm249, %v2459, 0.0
  %v2489 = vadd.f32 %v2487, %v2488
  %v2490 = vsel %vm249, %v2460, 0.0
  %v2491 = vadd.f32 %v2489, %v2490
  %v2492 = vrot.slane %v2491, 4
  %v2493 = vadd.f32 %v2491, %v2492
  %v2494 = vrot.slane %v2493, 2
  %v2495 = vadd.f32 %v2493, %v2494
  %v2496 = vrot.slane %v2495, 1
  %v2497 = vadd.f32 %v2495, %v2496
  %v2498 = vmul.f32 %v2497, %v2443
  %v2499 = vmul.f32 %v2444, %v2444
  %v2500 = vsub.f32 %v2498, %v2499
  %v2501 = vmax.f32 %v2500, 0.0
  %v2502 = vadd.f32 %v2501, 1e-05
  %v2503 = vrsqrt.pop %v2502
  %v2504 = vmul.f32 %v2404, %v2503
  %v2505 = vmul.f32 %v2444, %v2504
  %v2506 = vsub.f32 %v2405, %v2505
  %v2507 = vlaneseq
  %v2508 = vshrl.u32 %v2507, 7
  %v2509 = vsub.s32 0, %v2508
  %v2510 = vrot.slane %v2504, %v2509
  %v2511 = vmul.f32 %v2388, %v2510
  %v2512 = vmul.f32 %v2389, %v2510
  %v2513 = vmul.f32 %v2390, %v2510
  %v2514 = vmul.f32 %v2391, %v2510
  %v2515 = vmul.f32 %v2392, %v2510
  %v2516 = vmul.f32 %v2393, %v2510
  %v2517 = vmul.f32 %v2394, %v2510
  %v2518 = vmul.f32 %v2395, %v2510
  %v2519 = vmul.f32 %v2396, %v2510
  %v2520 = vmul.f32 %v2397, %v2510
  %v2521 = vmul.f32 %v2398, %v2510
  %v2522 = vmul.f32 %v2399, %v2510
  %v2523 = vmul.f32 %v2400, %v2510
  %v2524 = vmul.f32 %v2401, %v2510
  %v2525 = vmul.f32 %v2402, %v2510
  %v2526 = vmul.f32 %v2403, %v2510
  %v2527 = vlaneseq
  %v2528 = vshrl.u32 %v2527, 7
  %v2529 = vsub.s32 0, %v2528
  %v2530 = vrot.slane %v2506, %v2529
  %v2531 = vadd.f32 %v2511, %v2530
  %v2532 = vadd.f32 %v2512, %v2530
  %v2533 = vadd.f32 %v2513, %v2530
  %v2534 = vadd.f32 %v2514, %v2530
  %v2535 = vadd.f32 %v2515, %v2530
  %v2536 = vadd.f32 %v2516, %v2530
  %v2537 = vadd.f32 %v2517, %v2530
  %v2538 = vadd.f32 %v2518, %v2530
  %v2539 = vadd.f32 %v2519, %v2530
  %v2540 = vadd.f32 %v2520, %v2530
  %v2541 = vadd.f32 %v2521, %v2530
  %v2542 = vadd.f32 %v2522, %v2530
  %v2543 = vadd.f32 %v2523, %v2530
  %v2544 = vadd.f32 %v2524, %v2530
  %v2545 = vadd.f32 %v2525, %v2530
  %v2546 = vadd.f32 %v2526, %v2530
  %v2547 = vmax.f32 %v2531, 0.0
  %v2548 = vmax.f32 %v2532, 0.0
  %v2549 = vmax.f32 %v2533, 0.0
  %v2550 = vmax.f32 %v2534, 0.0
  %v2551 = vmax.f32 %v2535, 0.0
  %v2552 = vmax.f32 %v2536, 0.0
  %v2553 = vmax.f32 %v2537, 0.0
  %v2554 = vmax.f32 %v2538, 0.0
  %v2555 = vmax.f32 %v2539, 0.0
  %v2556 = vmax.f32 %v2540, 0.0
  %v2557 = vmax.f32 %v2541, 0.0
  %v2558 = vmax.f32 %v2542, 0.0
  %v2559 = vmax.f32 %v2543, 0.0
  %v2560 = vmax.f32 %v2544, 0.0
  %v2561 = vmax.f32 %v2545, 0.0
  %v2562 = vmax.f32 %v2546, 0.0
  %v2563 = vpack.c.bf16 %v2548, %v2547
  %v2564 = vpack.c.bf16 %v2550, %v2549
  %v2565 = vpack.c.bf16 %v2552, %v2551
  %v2566 = vpack.c.bf16 %v2554, %v2553
  %v2567 = vpack.c.bf16 %v2556, %v2555
  %v2568 = vpack.c.bf16 %v2558, %v2557
  %v2569 = vpack.c.bf16 %v2560, %v2559
  %v2570 = vpack.c.bf16 %v2562, %v2561
  %v2571 = vld [vmem:[%s3] sm:$0x3]
  %v2573 = vsel %vm249, %v2563, 0
  %v2576 = vsel %vm249, %v2564, 0
  %v2579 = vsel %vm249, %v2565, 0
  %v2582 = vsel %vm249, %v2566, 0
  %v2585 = vsel %vm249, %v2567, 0
  %v2588 = vsel %vm249, %v2568, 0
  %v2591 = vsel %vm249, %v2569, 0
  %v2594 = vsel %vm249, %v2570, 0
  %v2597 = vsel %vm346, %v2571, 0
  %2599 = vmatprep.subr.bf16.mxu0 0
  %2600 = vmatpush1.bf16.msra.mxu0 0
  %2601 = vmatprep.subr.bf16.mxu0 0
  %2602 = vmatpush1.bf16.msra.mxu0 0
  %2603 = vmatprep.subr.bf16.mxu0 0
  %2604 = vmatpush1.bf16.msra.mxu0 0
  %2605 = vmatprep.subr.bf16.mxu0 0
  %2606 = vmatpush1.bf16.msra.mxu0 0
  %2607 = vmatprep.subr.bf16.mxu0 0
  %2608 = vmatpush1.bf16.msra.mxu0 0
  %2609 = vmatprep.subr.bf16.mxu0 0
  %2610 = vmatpush1.bf16.msra.mxu0 0
  %2611 = vmatprep.subr.bf16.mxu0 0
  %2612 = vmatpush1.bf16.msra.mxu0 0
  %2613 = vmatprep.subr.bf16.mxu0 0
  %2614 = vmatpush1.bf16.msra.mxu0 %v2597
  %2615 = vmatprep.subr.bf16.mxu0 0
  %2616 = vmatpush2.bf16.msra.mxu0 0
  %2617 = vmatprep.subr.bf16.mxu0 0
  %2618 = vmatpush2.bf16.msra.mxu0 0
  %2619 = vmatprep.subr.bf16.mxu0 0
  %2620 = vmatpush2.bf16.msra.mxu0 0
  %2621 = vmatprep.subr.bf16.mxu0 0
  %2622 = vmatpush2.bf16.msra.mxu0 0
  %2623 = vmatprep.subr.bf16.mxu0 0
  %2624 = vmatpush2.bf16.msra.mxu0 0
  %2625 = vmatprep.subr.bf16.mxu0 0
  %2626 = vmatpush2.bf16.msra.mxu0 0
  %2627 = vmatprep.subr.bf16.mxu0 0
  %2628 = vmatpush2.bf16.msra.mxu0 0
  %2629 = vmatprep.subr.bf16.mxu0 0
  %2630 = vmatpush2.bf16.msra.mxu0 0
  %2631 = vmatprep.mubr.bf16.mxu0 0
  %2632 = vmatmul.mubr.bf16.gmra.mxu0 %v2573
  %v2633 = vpop.f32.mrf.mxu0
  %v2634 = vadd.f32 0.0, %v2633
  %v2635 = vpop.f32.mrf.mxu0
  %v2636 = vpop.f32.mrf.mxu0
  %v2637 = vadd.f32 0.0, %v2636
  %v2638 = vpop.f32.mrf.mxu0
  %2639 = vmatprep.mubr.bf16.mxu0 0
  %2640 = vmatmul.mubr.bf16.gmra.mxu0 %v2576
  %v2641 = vpop.f32.mrf.mxu0
  %v2642 = vadd.f32 0.0, %v2641
  %v2643 = vpop.f32.mrf.mxu0
  %v2644 = vpop.f32.mrf.mxu0
  %v2645 = vadd.f32 0.0, %v2644
  %v2646 = vpop.f32.mrf.mxu0
  %2647 = vmatprep.mubr.bf16.mxu0 0
  %2648 = vmatmul.mubr.bf16.gmra.mxu0 %v2579
  %v2649 = vpop.f32.mrf.mxu0
  %v2650 = vadd.f32 0.0, %v2649
  %v2651 = vpop.f32.mrf.mxu0
  %v2652 = vpop.f32.mrf.mxu0
  %v2653 = vadd.f32 0.0, %v2652
  %v2654 = vpop.f32.mrf.mxu0
  %2655 = vmatprep.mubr.bf16.mxu0 0
  %2656 = vmatmul.mubr.bf16.gmra.mxu0 %v2582
  %v2657 = vpop.f32.mrf.mxu0
  %v2658 = vadd.f32 0.0, %v2657
  %v2659 = vpop.f32.mrf.mxu0
  %v2660 = vpop.f32.mrf.mxu0
  %v2661 = vadd.f32 0.0, %v2660
  %v2662 = vpop.f32.mrf.mxu0
  %2663 = vmatprep.mubr.bf16.mxu0 0
  %2664 = vmatmul.mubr.bf16.gmra.mxu0 %v2585
  %v2665 = vpop.f32.mrf.mxu0
  %v2666 = vadd.f32 0.0, %v2665
  %v2667 = vpop.f32.mrf.mxu0
  %v2668 = vpop.f32.mrf.mxu0
  %v2669 = vadd.f32 0.0, %v2668
  %v2670 = vpop.f32.mrf.mxu0
  %2671 = vmatprep.mubr.bf16.mxu0 0
  %2672 = vmatmul.mubr.bf16.gmra.mxu0 %v2588
  %v2673 = vpop.f32.mrf.mxu0
  %v2674 = vadd.f32 0.0, %v2673
  %v2675 = vpop.f32.mrf.mxu0
  %v2676 = vpop.f32.mrf.mxu0
  %v2677 = vadd.f32 0.0, %v2676
  %v2678 = vpop.f32.mrf.mxu0
  %2679 = vmatprep.mubr.bf16.mxu0 0
  %2680 = vmatmul.mubr.bf16.gmra.mxu0 %v2591
  %v2681 = vpop.f32.mrf.mxu0
  %v2682 = vadd.f32 0.0, %v2681
  %v2683 = vpop.f32.mrf.mxu0
  %v2684 = vpop.f32.mrf.mxu0
  %v2685 = vadd.f32 0.0, %v2684
  %v2686 = vpop.f32.mrf.mxu0
  %2687 = vmatprep.mubr.bf16.mxu0 0
  %2688 = vmatmul.mubr.bf16.gmra.mxu0 %v2594
  %v2689 = vpop.f32.mrf.mxu0
  %v2690 = vadd.f32 0.0, %v2689
  %v2691 = vpop.f32.mrf.mxu0
  %v2692 = vpop.f32.mrf.mxu0
  %v2693 = vadd.f32 0.0, %v2692
  %v2694 = vpop.f32.mrf.mxu0
  %2695 = vdwg.mxu0
  %v2696 = vld [vmem:[%s5 + $0x4] sm:$0x1]
  %v2697 = vld [vmem:[%s5 + $0x5] sm:$0x1]
  %vm2698 = vcmask 130048
  %v2699 = vsel %vm2698, %v2634, 0.0
  %v2700 = vsel %vm2698, %v2637, 0.0
  %v2701 = vadd.f32 %v2699, %v2700
  %v2702 = vsel %vm2698, %v2642, 0.0
  %v2703 = vadd.f32 %v2701, %v2702
  %v2704 = vsel %vm2698, %v2645, 0.0
  %v2705 = vadd.f32 %v2703, %v2704
  %v2706 = vsel %vm2698, %v2650, 0.0
  %v2707 = vadd.f32 %v2705, %v2706
  %v2708 = vsel %vm2698, %v2653, 0.0
  %v2709 = vadd.f32 %v2707, %v2708
  %v2710 = vsel %vm2698, %v2658, 0.0
  %v2711 = vadd.f32 %v2709, %v2710
  %v2712 = vsel %vm2698, %v2661, 0.0
  %v2713 = vadd.f32 %v2711, %v2712
  %v2714 = vsel %vm2698, %v2666, 0.0
  %v2715 = vadd.f32 %v2713, %v2714
  %v2716 = vsel %vm2698, %v2669, 0.0
  %v2717 = vadd.f32 %v2715, %v2716
  %v2718 = vsel %vm2698, %v2674, 0.0
  %v2719 = vadd.f32 %v2717, %v2718
  %v2720 = vsel %vm2698, %v2677, 0.0
  %v2721 = vadd.f32 %v2719, %v2720
  %v2722 = vsel %vm2698, %v2682, 0.0
  %v2723 = vadd.f32 %v2721, %v2722
  %v2724 = vsel %vm2698, %v2685, 0.0
  %v2725 = vadd.f32 %v2723, %v2724
  %v2726 = vsel %vm2698, %v2690, 0.0
  %v2727 = vadd.f32 %v2725, %v2726
  %v2728 = vsel %vm2698, %v2693, 0.0
  %v2729 = vadd.f32 %v2727, %v2728
  %v2730 = vrot.slane %v2729, 4
  %v2731 = vadd.f32 %v2729, %v2730
  %v2732 = vrot.slane %v2731, 2
  %v2733 = vadd.f32 %v2731, %v2732
  %v2734 = vrot.slane %v2733, 1
  %v2735 = vadd.f32 %v2733, %v2734
  %v2736 = vmul.f32 %v2735, %v2443
  %v2737 = vmul.f32 %v2634, %v2634
  %v2738 = vmul.f32 %v2637, %v2637
  %v2739 = vmul.f32 %v2642, %v2642
  %v2740 = vmul.f32 %v2645, %v2645
  %v2741 = vmul.f32 %v2650, %v2650
  %v2742 = vmul.f32 %v2653, %v2653
  %v2743 = vmul.f32 %v2658, %v2658
  %v2744 = vmul.f32 %v2661, %v2661
  %v2745 = vmul.f32 %v2666, %v2666
  %v2746 = vmul.f32 %v2669, %v2669
  %v2747 = vmul.f32 %v2674, %v2674
  %v2748 = vmul.f32 %v2677, %v2677
  %v2749 = vmul.f32 %v2682, %v2682
  %v2750 = vmul.f32 %v2685, %v2685
  %v2751 = vmul.f32 %v2690, %v2690
  %v2752 = vmul.f32 %v2693, %v2693
  %v2753 = vsel %vm2698, %v2737, 0.0
  %v2754 = vsel %vm2698, %v2738, 0.0
  %v2755 = vadd.f32 %v2753, %v2754
  %v2756 = vsel %vm2698, %v2739, 0.0
  %v2757 = vadd.f32 %v2755, %v2756
  %v2758 = vsel %vm2698, %v2740, 0.0
  %v2759 = vadd.f32 %v2757, %v2758
  %v2760 = vsel %vm2698, %v2741, 0.0
  %v2761 = vadd.f32 %v2759, %v2760
  %v2762 = vsel %vm2698, %v2742, 0.0
  %v2763 = vadd.f32 %v2761, %v2762
  %v2764 = vsel %vm2698, %v2743, 0.0
  %v2765 = vadd.f32 %v2763, %v2764
  %v2766 = vsel %vm2698, %v2744, 0.0
  %v2767 = vadd.f32 %v2765, %v2766
  %v2768 = vsel %vm2698, %v2745, 0.0
  %v2769 = vadd.f32 %v2767, %v2768
  %v2770 = vsel %vm2698, %v2746, 0.0
  %v2771 = vadd.f32 %v2769, %v2770
  %v2772 = vsel %vm2698, %v2747, 0.0
  %v2773 = vadd.f32 %v2771, %v2772
  %v2774 = vsel %vm2698, %v2748, 0.0
  %v2775 = vadd.f32 %v2773, %v2774
  %v2776 = vsel %vm2698, %v2749, 0.0
  %v2777 = vadd.f32 %v2775, %v2776
  %v2778 = vsel %vm2698, %v2750, 0.0
  %v2779 = vadd.f32 %v2777, %v2778
  %v2780 = vsel %vm2698, %v2751, 0.0
  %v2781 = vadd.f32 %v2779, %v2780
  %v2782 = vsel %vm2698, %v2752, 0.0
  %v2783 = vadd.f32 %v2781, %v2782
  %v2784 = vrot.slane %v2783, 4
  %v2785 = vadd.f32 %v2783, %v2784
  %v2786 = vrot.slane %v2785, 2
  %v2787 = vadd.f32 %v2785, %v2786
  %v2788 = vrot.slane %v2787, 1
  %v2789 = vadd.f32 %v2787, %v2788
  %v2790 = vmul.f32 %v2789, %v2443
  %v2791 = vmul.f32 %v2736, %v2736
  %v2792 = vsub.f32 %v2790, %v2791
  %v2793 = vmax.f32 %v2792, 0.0
  %v2794 = vadd.f32 %v2793, 1e-05
  %v2795 = vrsqrt.pop %v2794
  %v2796 = vmul.f32 %v2696, %v2795
  %v2797 = vmul.f32 %v2736, %v2796
  %v2798 = vsub.f32 %v2697, %v2797
  %v2799 = vlaneseq
  %v2800 = vshrl.u32 %v2799, 7
  %v2801 = vsub.s32 0, %v2800
  %v2802 = vrot.slane %v2796, %v2801
  %v2803 = vmul.f32 %v2634, %v2802
  %v2804 = vmul.f32 %v2637, %v2802
  %v2805 = vmul.f32 %v2642, %v2802
  %v2806 = vmul.f32 %v2645, %v2802
  %v2807 = vmul.f32 %v2650, %v2802
  %v2808 = vmul.f32 %v2653, %v2802
  %v2809 = vmul.f32 %v2658, %v2802
  %v2810 = vmul.f32 %v2661, %v2802
  %v2811 = vmul.f32 %v2666, %v2802
  %v2812 = vmul.f32 %v2669, %v2802
  %v2813 = vmul.f32 %v2674, %v2802
  %v2814 = vmul.f32 %v2677, %v2802
  %v2815 = vmul.f32 %v2682, %v2802
  %v2816 = vmul.f32 %v2685, %v2802
  %v2817 = vmul.f32 %v2690, %v2802
  %v2818 = vmul.f32 %v2693, %v2802
  %v2819 = vlaneseq
  %v2820 = vshrl.u32 %v2819, 7
  %v2821 = vsub.s32 0, %v2820
  %v2822 = vrot.slane %v2798, %v2821
  %v2823 = vadd.f32 %v2803, %v2822
  %v2824 = vadd.f32 %v2804, %v2822
  %v2825 = vadd.f32 %v2805, %v2822
  %v2826 = vadd.f32 %v2806, %v2822
  %v2827 = vadd.f32 %v2807, %v2822
  %v2828 = vadd.f32 %v2808, %v2822
  %v2829 = vadd.f32 %v2809, %v2822
  %v2830 = vadd.f32 %v2810, %v2822
  %v2831 = vadd.f32 %v2811, %v2822
  %v2832 = vadd.f32 %v2812, %v2822
  %v2833 = vadd.f32 %v2813, %v2822
  %v2834 = vadd.f32 %v2814, %v2822
  %v2835 = vadd.f32 %v2815, %v2822
  %v2836 = vadd.f32 %v2816, %v2822
  %v2837 = vadd.f32 %v2817, %v2822
  %v2838 = vadd.f32 %v2818, %v2822
  %v2839 = vld [vmem:[%s4] sm:$0x3]
  %v2841 = vsel %vm346, %v2839, 0
  %2843 = vmatprep.subr.bf16.mxu0 0
  %2844 = vmatpush1.bf16.msra.mxu0 0
  %2845 = vmatprep.subr.bf16.mxu0 0
  %2846 = vmatpush1.bf16.msra.mxu0 0
  %2847 = vmatprep.subr.bf16.mxu0 0
  %2848 = vmatpush1.bf16.msra.mxu0 0
  %2849 = vmatprep.subr.bf16.mxu0 0
  %2850 = vmatpush1.bf16.msra.mxu0 0
  %2851 = vmatprep.subr.bf16.mxu0 0
  %2852 = vmatpush1.bf16.msra.mxu0 0
  %2853 = vmatprep.subr.bf16.mxu0 0
  %2854 = vmatpush1.bf16.msra.mxu0 0
  %2855 = vmatprep.subr.bf16.mxu0 0
  %2856 = vmatpush1.bf16.msra.mxu0 0
  %2857 = vmatprep.subr.bf16.mxu0 0
  %2858 = vmatpush1.bf16.msra.mxu0 %v2841
  %2859 = vmatprep.subr.bf16.mxu0 0
  %2860 = vmatpush2.bf16.msra.mxu0 0
  %2861 = vmatprep.subr.bf16.mxu0 0
  %2862 = vmatpush2.bf16.msra.mxu0 0
  %2863 = vmatprep.subr.bf16.mxu0 0
  %2864 = vmatpush2.bf16.msra.mxu0 0
  %2865 = vmatprep.subr.bf16.mxu0 0
  %2866 = vmatpush2.bf16.msra.mxu0 0
  %2867 = vmatprep.subr.bf16.mxu0 0
  %2868 = vmatpush2.bf16.msra.mxu0 0
  %2869 = vmatprep.subr.bf16.mxu0 0
  %2870 = vmatpush2.bf16.msra.mxu0 0
  %2871 = vmatprep.subr.bf16.mxu0 0
  %2872 = vmatpush2.bf16.msra.mxu0 0
  %2873 = vmatprep.subr.bf16.mxu0 0
  %2874 = vmatpush2.bf16.msra.mxu0 0
  %2875 = vmatprep.mubr.bf16.mxu0 0
  %2876 = vmatmul.mubr.bf16.gmra.mxu0 %v251
  %v2877 = vpop.f32.mrf.mxu0
  %v2878 = vadd.f32 0.0, %v2877
  %v2879 = vpop.f32.mrf.mxu0
  %v2880 = vpop.f32.mrf.mxu0
  %v2881 = vadd.f32 0.0, %v2880
  %v2882 = vpop.f32.mrf.mxu0
  %2883 = vmatprep.mubr.bf16.mxu0 0
  %2884 = vmatmul.mubr.bf16.gmra.mxu0 %v254
  %v2885 = vpop.f32.mrf.mxu0
  %v2886 = vadd.f32 0.0, %v2885
  %v2887 = vpop.f32.mrf.mxu0
  %v2888 = vpop.f32.mrf.mxu0
  %v2889 = vadd.f32 0.0, %v2888
  %v2890 = vpop.f32.mrf.mxu0
  %2891 = vmatprep.mubr.bf16.mxu0 0
  %2892 = vmatmul.mubr.bf16.gmra.mxu0 %v257
  %v2893 = vpop.f32.mrf.mxu0
  %v2894 = vadd.f32 0.0, %v2893
  %v2895 = vpop.f32.mrf.mxu0
  %v2896 = vpop.f32.mrf.mxu0
  %v2897 = vadd.f32 0.0, %v2896
  %v2898 = vpop.f32.mrf.mxu0
  %2899 = vmatprep.mubr.bf16.mxu0 0
  %2900 = vmatmul.mubr.bf16.gmra.mxu0 %v260
  %v2901 = vpop.f32.mrf.mxu0
  %v2902 = vadd.f32 0.0, %v2901
  %v2903 = vpop.f32.mrf.mxu0
  %v2904 = vpop.f32.mrf.mxu0
  %v2905 = vadd.f32 0.0, %v2904
  %v2906 = vpop.f32.mrf.mxu0
  %2907 = vmatprep.mubr.bf16.mxu0 0
  %2908 = vmatmul.mubr.bf16.gmra.mxu0 %v263
  %v2909 = vpop.f32.mrf.mxu0
  %v2910 = vadd.f32 0.0, %v2909
  %v2911 = vpop.f32.mrf.mxu0
  %v2912 = vpop.f32.mrf.mxu0
  %v2913 = vadd.f32 0.0, %v2912
  %v2914 = vpop.f32.mrf.mxu0
  %2915 = vmatprep.mubr.bf16.mxu0 0
  %2916 = vmatmul.mubr.bf16.gmra.mxu0 %v266
  %v2917 = vpop.f32.mrf.mxu0
  %v2918 = vadd.f32 0.0, %v2917
  %v2919 = vpop.f32.mrf.mxu0
  %v2920 = vpop.f32.mrf.mxu0
  %v2921 = vadd.f32 0.0, %v2920
  %v2922 = vpop.f32.mrf.mxu0
  %2923 = vmatprep.mubr.bf16.mxu0 0
  %2924 = vmatmul.mubr.bf16.gmra.mxu0 %v269
  %v2925 = vpop.f32.mrf.mxu0
  %v2926 = vadd.f32 0.0, %v2925
  %v2927 = vpop.f32.mrf.mxu0
  %v2928 = vpop.f32.mrf.mxu0
  %v2929 = vadd.f32 0.0, %v2928
  %v2930 = vpop.f32.mrf.mxu0
  %2931 = vmatprep.mubr.bf16.mxu0 0
  %2932 = vmatmul.mubr.bf16.gmra.mxu0 %v272
  %v2933 = vpop.f32.mrf.mxu0
  %v2934 = vadd.f32 0.0, %v2933
  %v2935 = vpop.f32.mrf.mxu0
  %v2936 = vpop.f32.mrf.mxu0
  %v2937 = vadd.f32 0.0, %v2936
  %v2938 = vpop.f32.mrf.mxu0
  %2939 = vdwg.mxu0
  %v2940 = vld [vmem:[%s5 + $0x6] sm:$0x1]
  %v2941 = vld [vmem:[%s5 + $0x7] sm:$0x1]
  %v2942 = vsel %vm2698, %v2878, 0.0
  %v2943 = vsel %vm2698, %v2881, 0.0
  %v2944 = vadd.f32 %v2942, %v2943
  %v2945 = vsel %vm2698, %v2886, 0.0
  %v2946 = vadd.f32 %v2944, %v2945
  %v2947 = vsel %vm2698, %v2889, 0.0
  %v2948 = vadd.f32 %v2946, %v2947
  %v2949 = vsel %vm2698, %v2894, 0.0
  %v2950 = vadd.f32 %v2948, %v2949
  %v2951 = vsel %vm2698, %v2897, 0.0
  %v2952 = vadd.f32 %v2950, %v2951
  %v2953 = vsel %vm2698, %v2902, 0.0
  %v2954 = vadd.f32 %v2952, %v2953
  %v2955 = vsel %vm2698, %v2905, 0.0
  %v2956 = vadd.f32 %v2954, %v2955
  %v2957 = vsel %vm2698, %v2910, 0.0
  %v2958 = vadd.f32 %v2956, %v2957
  %v2959 = vsel %vm2698, %v2913, 0.0
  %v2960 = vadd.f32 %v2958, %v2959
  %v2961 = vsel %vm2698, %v2918, 0.0
  %v2962 = vadd.f32 %v2960, %v2961
  %v2963 = vsel %vm2698, %v2921, 0.0
  %v2964 = vadd.f32 %v2962, %v2963
  %v2965 = vsel %vm2698, %v2926, 0.0
  %v2966 = vadd.f32 %v2964, %v2965
  %v2967 = vsel %vm2698, %v2929, 0.0
  %v2968 = vadd.f32 %v2966, %v2967
  %v2969 = vsel %vm2698, %v2934, 0.0
  %v2970 = vadd.f32 %v2968, %v2969
  %v2971 = vsel %vm2698, %v2937, 0.0
  %v2972 = vadd.f32 %v2970, %v2971
  %v2973 = vrot.slane %v2972, 4
  %v2974 = vadd.f32 %v2972, %v2973
  %v2975 = vrot.slane %v2974, 2
  %v2976 = vadd.f32 %v2974, %v2975
  %v2977 = vrot.slane %v2976, 1
  %v2978 = vadd.f32 %v2976, %v2977
  %v2979 = vmul.f32 %v2978, %v2443
  %v2980 = vmul.f32 %v2878, %v2878
  %v2981 = vmul.f32 %v2881, %v2881
  %v2982 = vmul.f32 %v2886, %v2886
  %v2983 = vmul.f32 %v2889, %v2889
  %v2984 = vmul.f32 %v2894, %v2894
  %v2985 = vmul.f32 %v2897, %v2897
  %v2986 = vmul.f32 %v2902, %v2902
  %v2987 = vmul.f32 %v2905, %v2905
  %v2988 = vmul.f32 %v2910, %v2910
  %v2989 = vmul.f32 %v2913, %v2913
  %v2990 = vmul.f32 %v2918, %v2918
  %v2991 = vmul.f32 %v2921, %v2921
  %v2992 = vmul.f32 %v2926, %v2926
  %v2993 = vmul.f32 %v2929, %v2929
  %v2994 = vmul.f32 %v2934, %v2934
  %v2995 = vmul.f32 %v2937, %v2937
  %v2996 = vsel %vm2698, %v2980, 0.0
  %v2997 = vsel %vm2698, %v2981, 0.0
  %v2998 = vadd.f32 %v2996, %v2997
  %v2999 = vsel %vm2698, %v2982, 0.0
  %v3000 = vadd.f32 %v2998, %v2999
  %v3001 = vsel %vm2698, %v2983, 0.0
  %v3002 = vadd.f32 %v3000, %v3001
  %v3003 = vsel %vm2698, %v2984, 0.0
  %v3004 = vadd.f32 %v3002, %v3003
  %v3005 = vsel %vm2698, %v2985, 0.0
  %v3006 = vadd.f32 %v3004, %v3005
  %v3007 = vsel %vm2698, %v2986, 0.0
  %v3008 = vadd.f32 %v3006, %v3007
  %v3009 = vsel %vm2698, %v2987, 0.0
  %v3010 = vadd.f32 %v3008, %v3009
  %v3011 = vsel %vm2698, %v2988, 0.0
  %v3012 = vadd.f32 %v3010, %v3011
  %v3013 = vsel %vm2698, %v2989, 0.0
  %v3014 = vadd.f32 %v3012, %v3013
  %v3015 = vsel %vm2698, %v2990, 0.0
  %v3016 = vadd.f32 %v3014, %v3015
  %v3017 = vsel %vm2698, %v2991, 0.0
  %v3018 = vadd.f32 %v3016, %v3017
  %v3019 = vsel %vm2698, %v2992, 0.0
  %v3020 = vadd.f32 %v3018, %v3019
  %v3021 = vsel %vm2698, %v2993, 0.0
  %v3022 = vadd.f32 %v3020, %v3021
  %v3023 = vsel %vm2698, %v2994, 0.0
  %v3024 = vadd.f32 %v3022, %v3023
  %v3025 = vsel %vm2698, %v2995, 0.0
  %v3026 = vadd.f32 %v3024, %v3025
  %v3027 = vrot.slane %v3026, 4
  %v3028 = vadd.f32 %v3026, %v3027
  %v3029 = vrot.slane %v3028, 2
  %v3030 = vadd.f32 %v3028, %v3029
  %v3031 = vrot.slane %v3030, 1
  %v3032 = vadd.f32 %v3030, %v3031
  %v3033 = vmul.f32 %v3032, %v2443
  %v3034 = vmul.f32 %v2979, %v2979
  %v3035 = vsub.f32 %v3033, %v3034
  %v3036 = vmax.f32 %v3035, 0.0
  %v3037 = vadd.f32 %v3036, 1e-05
  %v3038 = vrsqrt.pop %v3037
  %v3039 = vmul.f32 %v2940, %v3038
  %v3040 = vmul.f32 %v2979, %v3039
  %v3041 = vsub.f32 %v2941, %v3040
  %v3042 = vlaneseq
  %v3043 = vshrl.u32 %v3042, 7
  %v3044 = vsub.s32 0, %v3043
  %v3045 = vrot.slane %v3039, %v3044
  %v3046 = vmul.f32 %v2878, %v3045
  %v3047 = vmul.f32 %v2881, %v3045
  %v3048 = vmul.f32 %v2886, %v3045
  %v3049 = vmul.f32 %v2889, %v3045
  %v3050 = vmul.f32 %v2894, %v3045
  %v3051 = vmul.f32 %v2897, %v3045
  %v3052 = vmul.f32 %v2902, %v3045
  %v3053 = vmul.f32 %v2905, %v3045
  %v3054 = vmul.f32 %v2910, %v3045
  %v3055 = vmul.f32 %v2913, %v3045
  %v3056 = vmul.f32 %v2918, %v3045
  %v3057 = vmul.f32 %v2921, %v3045
  %v3058 = vmul.f32 %v2926, %v3045
  %v3059 = vmul.f32 %v2929, %v3045
  %v3060 = vmul.f32 %v2934, %v3045
  %v3061 = vmul.f32 %v2937, %v3045
  %v3062 = vlaneseq
  %v3063 = vshrl.u32 %v3062, 7
  %v3064 = vsub.s32 0, %v3063
  %v3065 = vrot.slane %v3041, %v3064
  %v3066 = vadd.f32 %v3046, %v3065
  %v3067 = vadd.f32 %v3047, %v3065
  %v3068 = vadd.f32 %v3048, %v3065
  %v3069 = vadd.f32 %v3049, %v3065
  %v3070 = vadd.f32 %v3050, %v3065
  %v3071 = vadd.f32 %v3051, %v3065
  %v3072 = vadd.f32 %v3052, %v3065
  %v3073 = vadd.f32 %v3053, %v3065
  %v3074 = vadd.f32 %v3054, %v3065
  %v3075 = vadd.f32 %v3055, %v3065
  %v3076 = vadd.f32 %v3056, %v3065
  %v3077 = vadd.f32 %v3057, %v3065
  %v3078 = vadd.f32 %v3058, %v3065
  %v3079 = vadd.f32 %v3059, %v3065
  %v3080 = vadd.f32 %v3060, %v3065
  %v3081 = vadd.f32 %v3061, %v3065
  %v3082 = vadd.f32 %v2823, %v3066
  %v3083 = vadd.f32 %v2824, %v3067
  %v3084 = vadd.f32 %v2825, %v3068
  %v3085 = vadd.f32 %v2826, %v3069
  %v3086 = vadd.f32 %v2827, %v3070
  %v3087 = vadd.f32 %v2828, %v3071
  %v3088 = vadd.f32 %v2829, %v3072
  %v3089 = vadd.f32 %v2830, %v3073
  %v3090 = vadd.f32 %v2831, %v3074
  %v3091 = vadd.f32 %v2832, %v3075
  %v3092 = vadd.f32 %v2833, %v3076
  %v3093 = vadd.f32 %v2834, %v3077
  %v3094 = vadd.f32 %v2835, %v3078
  %v3095 = vadd.f32 %v2836, %v3079
  %v3096 = vadd.f32 %v2837, %v3080
  %v3097 = vadd.f32 %v2838, %v3081
  %v3098 = vmax.f32 %v3082, 0.0
  %v3099 = vmax.f32 %v3083, 0.0
  %v3100 = vmax.f32 %v3084, 0.0
  %v3101 = vmax.f32 %v3085, 0.0
  %v3102 = vmax.f32 %v3086, 0.0
  %v3103 = vmax.f32 %v3087, 0.0
  %v3104 = vmax.f32 %v3088, 0.0
  %v3105 = vmax.f32 %v3089, 0.0
  %v3106 = vmax.f32 %v3090, 0.0
  %v3107 = vmax.f32 %v3091, 0.0
  %v3108 = vmax.f32 %v3092, 0.0
  %v3109 = vmax.f32 %v3093, 0.0
  %v3110 = vmax.f32 %v3094, 0.0
  %v3111 = vmax.f32 %v3095, 0.0
  %v3112 = vmax.f32 %v3096, 0.0
  %v3113 = vmax.f32 %v3097, 0.0
  %v3114 = vpack.c.bf16 %v3099, %v3098
  %v3115 = vpack.c.bf16 %v3101, %v3100
  %v3116 = vpack.c.bf16 %v3103, %v3102
  %v3117 = vpack.c.bf16 %v3105, %v3104
  %v3118 = vpack.c.bf16 %v3107, %v3106
  %v3119 = vpack.c.bf16 %v3109, %v3108
  %v3120 = vpack.c.bf16 %v3111, %v3110
  %v3121 = vpack.c.bf16 %v3113, %v3112
  %v3130 = vunpack.c.l.b16 %v3114
  %v3131 = vunpack.c.h.b16 %v3114
  %v3132 = vunpack.c.l.b16 %v3115
  %v3133 = vunpack.c.h.b16 %v3115
  %v3134 = vunpack.c.l.b16 %v3116
  %v3135 = vunpack.c.h.b16 %v3116
  %v3136 = vunpack.c.l.b16 %v3117
  %v3137 = vunpack.c.h.b16 %v3117
  %v3138 = vunpack.c.l.b16 %v3118
  %v3139 = vunpack.c.h.b16 %v3118
  %v3140 = vunpack.c.l.b16 %v3119
  %v3141 = vunpack.c.h.b16 %v3119
  %v3142 = vunpack.c.l.b16 %v3120
  %v3143 = vunpack.c.h.b16 %v3120
  %v3144 = vunpack.c.l.b16 %v3121
  %v3145 = vunpack.c.h.b16 %v3121
  %v3146 = vpack.c.b16 %v3130, %v3130
  %v3147 = vpack.c.b16 %v3131, %v3131
  %v3148 = vpack.c.b16 %v3132, %v3132
  %v3149 = vpack.c.b16 %v3133, %v3133
  %v3150 = vpack.c.b16 %v3134, %v3134
  %v3151 = vpack.c.b16 %v3135, %v3135
  %v3152 = vpack.c.b16 %v3136, %v3136
  %v3153 = vpack.c.b16 %v3137, %v3137
  %v3154 = vpack.c.b16 %v3138, %v3138
  %v3155 = vpack.c.b16 %v3139, %v3139
  %v3156 = vpack.c.b16 %v3140, %v3140
  %v3157 = vpack.c.b16 %v3141, %v3141
  %v3158 = vpack.c.b16 %v3142, %v3142
  %v3159 = vpack.c.b16 %v3143, %v3143
  %v3160 = vpack.c.b16 %v3144, %v3144
  %v3161 = vpack.c.b16 %v3145, %v3145
  %vm3178 = vcmask 125952
  %3179 = vst.msk [vmem:[%s6] sm:$0xf] %vm3178, %v3146
  %3180 = vst.msk [vmem:[%s6 + $0x4] sm:$0xf] %vm3178, %v3147
  %3181 = vst.msk [vmem:[%s6 + $0x8] sm:$0xf] %vm3178, %v3148
  %3182 = vst.msk [vmem:[%s6 + $0xc] sm:$0xf] %vm3178, %v3149
  %3183 = vst.msk [vmem:[%s6 + $0x10] sm:$0xf] %vm3178, %v3150
  %3184 = vst.msk [vmem:[%s6 + $0x14] sm:$0xf] %vm3178, %v3151
  %3185 = vst.msk [vmem:[%s6 + $0x18] sm:$0xf] %vm3178, %v3152
  %3186 = vst.msk [vmem:[%s6 + $0x1c] sm:$0xf] %vm3178, %v3153
  %3187 = vst.msk [vmem:[%s6 + $0x20] sm:$0xf] %vm3178, %v3154
  %3188 = vst.msk [vmem:[%s6 + $0x24] sm:$0xf] %vm3178, %v3155
  %3189 = vst.msk [vmem:[%s6 + $0x28] sm:$0xf] %vm3178, %v3156
  %3190 = vst.msk [vmem:[%s6 + $0x2c] sm:$0xf] %vm3178, %v3157
  %3191 = vst.msk [vmem:[%s6 + $0x30] sm:$0xf] %vm3178, %v3158
  %3192 = vst.msk [vmem:[%s6 + $0x34] sm:$0xf] %vm3178, %v3159
  %3193 = vst.msk [vmem:[%s6 + $0x38] sm:$0xf] %vm3178, %v3160
  %3194 = vst.msk [vmem:[%s6 + $0x3c] sm:$0xf] %vm3178, %v3161
  // Predicated region
  $region26: #{tpu_custom_call.1} parent=0 // pred_check
    _
  $region27: #{tpu_custom_call.1} parent=0 // pred_check_branch
    %3196 = sbr.rel (0) target = $region29
  $region28: #{tpu_custom_call.1} parent=0 // pred_region
    _
  $region29: #{tpu_custom_call.1} parent=0 // pred_fallthru
    _
  // Predicated region
  $region30: #{tpu_custom_call.1} parent=0 // pred_check
    _
  $region31: #{tpu_custom_call.1} parent=0 // pred_check_branch
    %3198 = sbr.rel (0) target = $region33
  $region32: #{tpu_custom_call.1} parent=0 // pred_region
    _
  $region33: #{tpu_custom_call.1} parent=0 // pred_fallthru
    _

</llo_original>
